<compile_context>
chip_gen: v5e
topology: v5e:2x2
jax: 0.10.0
libtpu: 0.0.40
codegen_flags: <defaults>
</compile_context>

<pallas_src>
import functools

import jax
import jax.numpy as jnp
from jax.experimental import pallas as pl
from jax.experimental.pallas import tpu as pltpu


def _residual_block_kernel(stride, has_proj, im2col_1, im2col_2, H, W, H_out, W_out,
                           x_ref, w1_ref, s1_ref, b1_ref,
                           w2_ref, s2_ref, b2_ref, *rest):
    rest = list(rest)
    if has_proj:
        wsc_ref, ssc_ref, bsc_ref = rest[0], rest[1], rest[2]
        rest = rest[3:]
    out_ref, xpad_ref, y1p_ref = rest[0], rest[1], rest[2]
    im_ref = rest[3] if (im2col_1 or im2col_2) else None

    Cin = x_ref.shape[-1]
    Cout = s1_ref.shape[-1]
    HW = H_out * W_out

    def conv3x3(src_pad, C, w_ref, s, use_im2col):
        # src_pad: (Hs+2, Ws+2, C) bf16 value.  Returns (HW, Cout) f32.
        taps = []
        for t in range(9):
            kh, kw = divmod(t, 3)
            taps.append(src_pad[kh:kh + s * H_out:s,
                                kw:kw + s * W_out:s, :].reshape(HW, C))
        if use_im2col:
            # Write taps straight into the shared bf16 staging scratch (no concat of
            # 9 temporaries) -> one (HW, 9C) @ (9C, Cout) MXU matmul.
            for t in range(9):
                im_ref[:, t * C:(t + 1) * C] = taps[t]
            return jnp.dot(im_ref[:, :9 * C], w_ref[...],
                           preferred_element_type=jnp.float32)
        # Large-C path: 9 accumulating bf16 matmuls, no im2col staging tax.
        acc = jnp.dot(taps[0], w_ref[0], preferred_element_type=jnp.float32)
        for t in range(1, 9):
            acc = acc + jnp.dot(taps[t], w_ref[t], preferred_element_type=jnp.float32)
        return acc

    x = x_ref[0]                                      # (H, W, Cin) f32

    # ---- stage x (bf16) in a padded scratch: zero the two full border rows, fold the
    #      left/right zero columns into the single full-width interior store. ----
    zrow_x = jnp.zeros((1, W + 2, Cin), jnp.bfloat16)
    zcol_x = jnp.zeros((H, 1, Cin), jnp.bfloat16)
    xpad_ref[0:1, :, :] = zrow_x
    xpad_ref[H + 1:H + 2, :, :] = zrow_x
    xpad_ref[1:H + 1, :, :] = jnp.concatenate(
        [zcol_x, x.astype(jnp.bfloat16), zcol_x], axis=1)
    xp = xpad_ref[...]                                # (H+2, W+2, Cin) bf16

    # ---- conv1 (3x3, stride s, pad 1) + BN1 (folded) + ReLU ----
    acc1 = conv3x3(xp, Cin, w1_ref, stride, im2col_1)
    y1 = jnp.maximum(acc1 * s1_ref[...] + b1_ref[...], 0.0)      # (HW, Cout) f32

    # ---- stage y1 (bf16) in a padded scratch for conv2's halo ----
    zrow_y = jnp.zeros((1, W_out + 2, Cout), jnp.bfloat16)
    zcol_y = jnp.zeros((H_out, 1, Cout), jnp.bfloat16)
    y1p_ref[0:1, :, :] = zrow_y
    y1p_ref[H_out + 1:H_out + 2, :, :] = zrow_y
    y1p_ref[1:H_out + 1, :, :] = jnp.concatenate(
        [zcol_y, y1.reshape(H_out, W_out, Cout).astype(jnp.bfloat16), zcol_y], axis=1)
    y1p = y1p_ref[...]                                # (H_out+2, W_out+2, Cout) bf16

    # ---- conv2 (3x3, stride 1, pad 1) + BN2 (folded) ----
    acc2 = conv3x3(y1p, Cout, w2_ref, 1, im2col_2)
    left = acc2 * s2_ref[...] + b2_ref[...]

    # ---- shortcut (identity in f32, or 1x1 conv + BN) ----
    if has_proj:
        xin = x if stride == 1 else x[::stride, ::stride, :]
        xin = xin.reshape(HW, Cin).astype(jnp.bfloat16)
        sc = jnp.dot(xin, wsc_ref[...], preferred_element_type=jnp.float32)
        sc = sc * ssc_ref[...] + bsc_ref[...]
    else:
        sc = x.reshape(HW, Cout)                      # identity kept in f32

    out = jnp.maximum(left + sc, 0.0)
    out_ref[0] = out.reshape(H_out, W_out, Cout).astype(out_ref.dtype)


def _fold_bn(gamma, beta, mean, var, eps=1e-5):
    scale = gamma / jnp.sqrt(var + eps)
    bias = beta - mean * scale
    return (scale.reshape(1, -1).astype(jnp.float32),
            bias.reshape(1, -1).astype(jnp.float32))


def residual_block_pallas_nhwc(x_nhwc, params, stride=1, conv_path="auto"):
    """Core NHWC API: x_nhwc (N, H, W, Cin) f32 -> (N, H_out, W_out, Cout) f32."""
    N, H, W, Cin = x_nhwc.shape
    Cout = params["w1"].shape[0]
    has_proj = "wsc" in params
    if not has_proj:
        assert stride == 1 and Cin == Cout, "identity shortcut requires stride=1, Cin==Cout"
    H_out = (H - 1) // stride + 1
    W_out = (W - 1) // stride + 1
    HW = H_out * W_out

    if conv_path == "auto":
        im2col_1, im2col_2 = Cin < 128, Cout < 128    # im2col only pays off for small K
    elif conv_path == "im2col":
        im2col_1 = im2col_2 = True
    elif conv_path == "accum":
        im2col_1 = im2col_2 = False
    else:
        raise ValueError(conv_path)

    # OIHW -> (kh,kw,Cin,Cout); flattened (9*C, Cout) for im2col, (9, C, Cout) for accum.
    def conv_w(w, use_im2col):
        C = w.shape[1]
        w_t = jnp.transpose(w, (2, 3, 1, 0)).reshape(9, C, Cout).astype(jnp.bfloat16)
        return w_t.reshape(9 * C, Cout) if use_im2col else w_t

    w1 = conv_w(params["w1"], im2col_1)
    w2 = conv_w(params["w2"], im2col_2)
    s1, b1 = _fold_bn(*params["bn1"])
    s2, b2 = _fold_bn(*params["bn2"])

    def _full(shape):
        n = len(shape)
        return pl.BlockSpec(shape, lambda b: (0,) * n)

    args = [x_nhwc.astype(jnp.float32), w1, s1, b1, w2, s2, b2]
    in_specs = [
        pl.BlockSpec((1, H, W, Cin), lambda b: (b, 0, 0, 0)),
        _full(w1.shape), _full((1, Cout)), _full((1, Cout)),
        _full(w2.shape), _full((1, Cout)), _full((1, Cout)),
    ]
    if has_proj:
        wsc = jnp.transpose(params["wsc"][:, :, 0, 0], (1, 0)).astype(jnp.bfloat16)
        ssc, bsc = _fold_bn(*params["bnsc"])
        args += [wsc, ssc, bsc]
        in_specs += [_full((Cin, Cout)), _full((1, Cout)), _full((1, Cout))]

    scratch = [pltpu.VMEM((H + 2, W + 2, Cin), jnp.bfloat16),          # padded x (bf16)
               pltpu.VMEM((H_out + 2, W_out + 2, Cout), jnp.bfloat16)]  # padded y1 (bf16)
    im_cols = max((9 * Cin) if im2col_1 else 0, (9 * Cout) if im2col_2 else 0)
    if im_cols:
        scratch.append(pltpu.VMEM((HW, im_cols), jnp.bfloat16))        # shared im2col stage

    # Rough per-step VMEM estimate (double-buffered I/O blocks + scratches); only raise
    # the scoped limit when it exceeds the conservative default (v5e 16 MiB scoped).
    est = 2 * (H * W * Cin + HW * Cout) * 4 \
        + ((H + 2) * (W + 2) * Cin + (H_out + 2) * (W_out + 2) * Cout + HW * im_cols) * 2
    vmem_limit = min(2 * est, 64 * 1024 * 1024) if est > 12 * 1024 * 1024 else None

    kernel = functools.partial(_residual_block_kernel, stride, has_proj,
                               im2col_1, im2col_2, H, W, H_out, W_out)

    return pl.pallas_call(
        kernel,
        out_shape=jax.ShapeDtypeStruct((N, H_out, W_out, Cout), jnp.float32),
        grid=(N,),
        in_specs=in_specs,
        out_specs=pl.BlockSpec((1, H_out, W_out, Cout), lambda b: (b, 0, 0, 0)),
        scratch_shapes=scratch,
        compiler_params=pltpu.CompilerParams(
            dimension_semantics=("parallel",),       # independent batch elems -> megacore
            vmem_limit_bytes=vmem_limit),
    )(*args)


def residual_block_pallas(x_nchw, params, stride=1, conv_path="auto"):
    """NCHW wrapper for parity with the PyTorch module.  The NCHW<->NHWC transposes are a
    model-boundary cost; inside a network keep activations NHWC and call the _nhwc API."""
    x_nhwc = jnp.transpose(x_nchw, (0, 2, 3, 1))
    out_nhwc = residual_block_pallas_nhwc(x_nhwc, params, stride=stride, conv_path=conv_path)
    return jnp.transpose(out_nhwc, (0, 3, 1, 2))


# ------------------------- pure-JAX reference (for checking) -------------------------
def _ref_forward(x, params, stride):
    def conv(x, w, s, pad):
        return jax.lax.conv_general_dilated(
            x, w, (s, s), [(pad, pad), (pad, pad)],
            dimension_numbers=("NCHW", "OIHW", "NCHW"),
            precision=jax.lax.Precision.HIGHEST)

    def bn(x, p, eps=1e-5):
        g, b, m, v = p
        inv = g / jnp.sqrt(v + eps)
        return x * inv[None, :, None, None] + (b - m * inv)[None, :, None, None]

    out = jax.nn.relu(bn(conv(x, params["w1"], stride, 1), params["bn1"]))
    out = bn(conv(out, params["w2"], 1, 1), params["bn2"])
    if "wsc" in params:
        sc = bn(conv(x, params["wsc"], stride, 0), params["bnsc"])
    else:
        sc = x
    return jax.nn.relu(out + sc)


def _make_params(key, inchannel, outchannel, has_proj):
    ks = jax.random.split(key, 8)

    def bn_params(k, c):
        k1, k2, k3, k4 = jax.random.split(k, 4)
        gamma = 1.0 + 0.1 * jax.random.normal(k1, (c,), jnp.float32)
        beta = 0.1 * jax.random.normal(k2, (c,), jnp.float32)
        mean = 0.1 * jax.random.normal(k3, (c,), jnp.float32)
        var = 1.0 + 0.2 * jnp.abs(jax.random.normal(k4, (c,), jnp.float32))
        return (gamma, beta, mean, var)

    params = {
        "w1": 0.1 * jax.random.normal(ks[0], (outchannel, inchannel, 3, 3), jnp.float32),
        "bn1": bn_params(ks[1], outchannel),
        "w2": 0.1 * jax.random.normal(ks[2], (outchannel, outchannel, 3, 3), jnp.float32),
        "bn2": bn_params(ks[3], outchannel),
    }
    if has_proj:
        params["wsc"] = 0.1 * jax.random.normal(ks[4], (outchannel, inchannel, 1, 1), jnp.float32)
        params["bnsc"] = bn_params(ks[5], outchannel)
    return params


def _check(x, params, stride, tol, conv_path="auto"):
    out = jax.block_until_ready(
        residual_block_pallas(x, params, stride=stride, conv_path=conv_path))
    ref = jax.block_until_ready(_ref_forward(x, params, stride))
    assert out.shape == ref.shape, (out.shape, ref.shape)
    err = float(jnp.max(jnp.abs(out - ref)))
    # matmuls run in bf16 (f32 accumulation); tolerance sized accordingly
    assert err < tol, (conv_path, err)


if __name__ == "__main__":
    key = jax.random.PRNGKey(0)
    k1, k2, k3, k4 = jax.random.split(key, 4)

    # Config A: projection shortcut (Cin != Cout), stride 1, im2col path.
    N, Cin, Cout, H, W = 2, 4, 8, 16, 16
    x_a = jax.random.normal(k1, (N, Cin, H, W), jnp.float32)
    params_a = _make_params(k2, Cin, Cout, has_proj=True)
    _check(x_a, params_a, stride=1, tol=5e-2)

    # Config B: identity shortcut (Cin == Cout, stride 1), im2col path.
    x_b = jax.random.normal(k3, (N, Cout, H, W), jnp.float32)
    params_b = _make_params(k4, Cout, Cout, has_proj=False)
    _check(x_b, params_b, stride=1, tol=5e-2)

    # Config B again, forcing the large-channel accumulating-matmul path to validate it.
    _check(x_b, params_b, stride=1, tol=5e-2, conv_path="accum")

    print("KERNEL_OK")
</pallas_src>

<mosaic_0001>
module attributes {stable_mosaic.version = 11 : i64} {
  func.func @_residual_block_kernel(%arg0: i32, %arg1: memref<1x16x16x4xf32, #tpu.memory_space<vmem>>, %arg2: memref<36x8xbf16, #tpu.memory_space<vmem>>, %arg3: memref<1x8xf32, #tpu.memory_space<vmem>>, %arg4: memref<1x8xf32, #tpu.memory_space<vmem>>, %arg5: memref<72x8xbf16, #tpu.memory_space<vmem>>, %arg6: memref<1x8xf32, #tpu.memory_space<vmem>>, %arg7: memref<1x8xf32, #tpu.memory_space<vmem>>, %arg8: memref<4x8xbf16, #tpu.memory_space<vmem>>, %arg9: memref<1x8xf32, #tpu.memory_space<vmem>>, %arg10: memref<1x8xf32, #tpu.memory_space<vmem>>, %arg11: memref<1x16x16x8xf32, #tpu.memory_space<vmem>>, %arg12: memref<18x18x4xbf16, #tpu.memory_space<vmem>>, %arg13: memref<18x18x8xbf16, #tpu.memory_space<vmem>>, %arg14: memref<256x72xbf16, #tpu.memory_space<vmem>>) attributes {dimension_semantics = [#tpu.dimension_semantics<parallel>], iteration_bounds = array<i64: 2>, scalar_prefetch = 0 : i64, scratch_operands = 3 : i64, tpu.core_type = #tpu.core_type<tc>, window_params = [{transform_indices = @transform_0, window_bounds = array<i64: 1, 16, 16, 4>}, {pipeline_mode = #tpu.pipeline_mode<synchronous>, transform_indices = @transform_1, window_bounds = array<i64: 36, 8>}, {pipeline_mode = #tpu.pipeline_mode<synchronous>, transform_indices = @transform_2, window_bounds = array<i64: 1, 8>}, {pipeline_mode = #tpu.pipeline_mode<synchronous>, transform_indices = @transform_3, window_bounds = array<i64: 1, 8>}, {pipeline_mode = #tpu.pipeline_mode<synchronous>, transform_indices = @transform_4, window_bounds = array<i64: 72, 8>}, {pipeline_mode = #tpu.pipeline_mode<synchronous>, transform_indices = @transform_5, window_bounds = array<i64: 1, 8>}, {pipeline_mode = #tpu.pipeline_mode<synchronous>, transform_indices = @transform_6, window_bounds = array<i64: 1, 8>}, {pipeline_mode = #tpu.pipeline_mode<synchronous>, transform_indices = @transform_7, window_bounds = array<i64: 4, 8>}, {pipeline_mode = #tpu.pipeline_mode<synchronous>, transform_indices = @transform_8, window_bounds = array<i64: 1, 8>}, {pipeline_mode = #tpu.pipeline_mode<synchronous>, transform_indices = @transform_9, window_bounds = array<i64: 1, 8>}, {transform_indices = @transform_10, window_bounds = array<i64: 1, 16, 16, 8>}]} {
    %c0 = arith.constant 0 : index
    %c0_0 = arith.constant 0 : index
    %c0_1 = arith.constant 0 : index
    %c0_2 = arith.constant 0 : index
    %0 = vector.load %arg1[%c0, %c0_0, %c0_1, %c0_2] : memref<1x16x16x4xf32, #tpu.memory_space<vmem>>, vector<1x16x16x4xf32>
    %1 = vector.shape_cast %0 : vector<1x16x16x4xf32> to vector<16x16x4xf32>
    %cst = arith.constant 0.000000e+00 : bf16
    %2 = vector.broadcast %cst : bf16 to vector<1x18x4xbf16>
    %cst_3 = arith.constant 0.000000e+00 : bf16
    %3 = vector.broadcast %cst_3 : bf16 to vector<16x1x4xbf16>
    %c0_4 = arith.constant 0 : index
    %c0_5 = arith.constant 0 : index
    %c0_6 = arith.constant 0 : index
    %4 = vector.load %arg12[%c0_4, %c0_5, %c0_6] : memref<18x18x4xbf16, #tpu.memory_space<vmem>>, vector<1x18x4xbf16>
    tpu.vector_store %arg12[%c0_4, %c0_5, %c0_6], %2 {strides = array<i32>} : memref<18x18x4xbf16, #tpu.memory_space<vmem>>, vector<1x18x4xbf16>,
    %c17 = arith.constant 17 : index
    %c0_7 = arith.constant 0 : index
    %c0_8 = arith.constant 0 : index
    %5 = vector.load %arg12[%c17, %c0_7, %c0_8] : memref<18x18x4xbf16, #tpu.memory_space<vmem>>, vector<1x18x4xbf16>
    tpu.vector_store %arg12[%c17, %c0_7, %c0_8], %2 {strides = array<i32>} : memref<18x18x4xbf16, #tpu.memory_space<vmem>>, vector<1x18x4xbf16>,
    %6 = arith.truncf %1 : vector<16x16x4xf32> to vector<16x16x4xbf16>
    %7 = tpu.concatenate %3, %6, %3 in 1 : vector<16x1x4xbf16>, vector<16x16x4xbf16>, vector<16x1x4xbf16> -> vector<16x18x4xbf16>
    %c1 = arith.constant 1 : index
    %c0_9 = arith.constant 0 : index
    %c0_10 = arith.constant 0 : index
    %8 = vector.load %arg12[%c1, %c0_9, %c0_10] : memref<18x18x4xbf16, #tpu.memory_space<vmem>>, vector<16x18x4xbf16>
    tpu.vector_store %arg12[%c1, %c0_9, %c0_10], %7 {strides = array<i32>} : memref<18x18x4xbf16, #tpu.memory_space<vmem>>, vector<16x18x4xbf16>,
    %c0_11 = arith.constant 0 : index
    %c0_12 = arith.constant 0 : index
    %c0_13 = arith.constant 0 : index
    %9 = vector.load %arg12[%c0_11, %c0_12, %c0_13] : memref<18x18x4xbf16, #tpu.memory_space<vmem>>, vector<18x18x4xbf16>
    %10 = vector.extract_strided_slice %9 {offsets = [0, 0, 0], sizes = [16, 16, 4], strides = [1, 1, 1]} : vector<18x18x4xbf16> to vector<16x16x4xbf16>
    %11 = vector.shape_cast %10 : vector<16x16x4xbf16> to vector<256x4xbf16>
    %12 = vector.extract_strided_slice %9 {offsets = [0, 1, 0], sizes = [16, 16, 4], strides = [1, 1, 1]} : vector<18x18x4xbf16> to vector<16x16x4xbf16>
    %13 = vector.shape_cast %12 : vector<16x16x4xbf16> to vector<256x4xbf16>
    %14 = vector.extract_strided_slice %9 {offsets = [0, 2, 0], sizes = [16, 16, 4], strides = [1, 1, 1]} : vector<18x18x4xbf16> to vector<16x16x4xbf16>
    %15 = vector.shape_cast %14 : vector<16x16x4xbf16> to vector<256x4xbf16>
    %16 = vector.extract_strided_slice %9 {offsets = [1, 0, 0], sizes = [16, 16, 4], strides = [1, 1, 1]} : vector<18x18x4xbf16> to vector<16x16x4xbf16>
    %17 = vector.shape_cast %16 : vector<16x16x4xbf16> to vector<256x4xbf16>
    %18 = vector.extract_strided_slice %9 {offsets = [1, 1, 0], sizes = [16, 16, 4], strides = [1, 1, 1]} : vector<18x18x4xbf16> to vector<16x16x4xbf16>
    %19 = vector.shape_cast %18 : vector<16x16x4xbf16> to vector<256x4xbf16>
    %20 = vector.extract_strided_slice %9 {offsets = [1, 2, 0], sizes = [16, 16, 4], strides = [1, 1, 1]} : vector<18x18x4xbf16> to vector<16x16x4xbf16>
    %21 = vector.shape_cast %20 : vector<16x16x4xbf16> to vector<256x4xbf16>
    %22 = vector.extract_strided_slice %9 {offsets = [2, 0, 0], sizes = [16, 16, 4], strides = [1, 1, 1]} : vector<18x18x4xbf16> to vector<16x16x4xbf16>
    %23 = vector.shape_cast %22 : vector<16x16x4xbf16> to vector<256x4xbf16>
    %24 = vector.extract_strided_slice %9 {offsets = [2, 1, 0], sizes = [16, 16, 4], strides = [1, 1, 1]} : vector<18x18x4xbf16> to vector<16x16x4xbf16>
    %25 = vector.shape_cast %24 : vector<16x16x4xbf16> to vector<256x4xbf16>
    %26 = vector.extract_strided_slice %9 {offsets = [2, 2, 0], sizes = [16, 16, 4], strides = [1, 1, 1]} : vector<18x18x4xbf16> to vector<16x16x4xbf16>
    %27 = vector.shape_cast %26 : vector<16x16x4xbf16> to vector<256x4xbf16>
    %c0_14 = arith.constant 0 : index
    %c0_15 = arith.constant 0 : index
    %28 = vector.load %arg14[%c0_14, %c0_15] : memref<256x72xbf16, #tpu.memory_space<vmem>>, vector<256x4xbf16>
    tpu.vector_store %arg14[%c0_14, %c0_15], %11 {strides = array<i32>} : memref<256x72xbf16, #tpu.memory_space<vmem>>, vector<256x4xbf16>,
    %c0_16 = arith.constant 0 : index
    %c4 = arith.constant 4 : index
    %29 = vector.load %arg14[%c0_16, %c4] : memref<256x72xbf16, #tpu.memory_space<vmem>>, vector<256x4xbf16>
    tpu.vector_store %arg14[%c0_16, %c4], %13 {strides = array<i32>} : memref<256x72xbf16, #tpu.memory_space<vmem>>, vector<256x4xbf16>,
    %c0_17 = arith.constant 0 : index
    %c8 = arith.constant 8 : index
    %30 = vector.load %arg14[%c0_17, %c8] : memref<256x72xbf16, #tpu.memory_space<vmem>>, vector<256x4xbf16>
    tpu.vector_store %arg14[%c0_17, %c8], %15 {strides = array<i32>} : memref<256x72xbf16, #tpu.memory_space<vmem>>, vector<256x4xbf16>,
    %c0_18 = arith.constant 0 : index
    %c12 = arith.constant 12 : index
    %31 = vector.load %arg14[%c0_18, %c12] : memref<256x72xbf16, #tpu.memory_space<vmem>>, vector<256x4xbf16>
    tpu.vector_store %arg14[%c0_18, %c12], %17 {strides = array<i32>} : memref<256x72xbf16, #tpu.memory_space<vmem>>, vector<256x4xbf16>,
    %c0_19 = arith.constant 0 : index
    %c16 = arith.constant 16 : index
    %32 = vector.load %arg14[%c0_19, %c16] : memref<256x72xbf16, #tpu.memory_space<vmem>>, vector<256x4xbf16>
    tpu.vector_store %arg14[%c0_19, %c16], %19 {strides = array<i32>} : memref<256x72xbf16, #tpu.memory_space<vmem>>, vector<256x4xbf16>,
    %c0_20 = arith.constant 0 : index
    %c20 = arith.constant 20 : index
    %33 = vector.load %arg14[%c0_20, %c20] : memref<256x72xbf16, #tpu.memory_space<vmem>>, vector<256x4xbf16>
    tpu.vector_store %arg14[%c0_20, %c20], %21 {strides = array<i32>} : memref<256x72xbf16, #tpu.memory_space<vmem>>, vector<256x4xbf16>,
    %c0_21 = arith.constant 0 : index
    %c24 = arith.constant 24 : index
    %34 = vector.load %arg14[%c0_21, %c24] : memref<256x72xbf16, #tpu.memory_space<vmem>>, vector<256x4xbf16>
    tpu.vector_store %arg14[%c0_21, %c24], %23 {strides = array<i32>} : memref<256x72xbf16, #tpu.memory_space<vmem>>, vector<256x4xbf16>,
    %c0_22 = arith.constant 0 : index
    %c28 = arith.constant 28 : index
    %35 = vector.load %arg14[%c0_22, %c28] : memref<256x72xbf16, #tpu.memory_space<vmem>>, vector<256x4xbf16>
    tpu.vector_store %arg14[%c0_22, %c28], %25 {strides = array<i32>} : memref<256x72xbf16, #tpu.memory_space<vmem>>, vector<256x4xbf16>,
    %c0_23 = arith.constant 0 : index
    %c32 = arith.constant 32 : index
    %36 = vector.load %arg14[%c0_23, %c32] : memref<256x72xbf16, #tpu.memory_space<vmem>>, vector<256x4xbf16>
    tpu.vector_store %arg14[%c0_23, %c32], %27 {strides = array<i32>} : memref<256x72xbf16, #tpu.memory_space<vmem>>, vector<256x4xbf16>,
    %c0_24 = arith.constant 0 : index
    %c0_25 = arith.constant 0 : index
    %37 = vector.load %arg14[%c0_24, %c0_25] : memref<256x72xbf16, #tpu.memory_space<vmem>>, vector<256x36xbf16>
    %c0_26 = arith.constant 0 : index
    %c0_27 = arith.constant 0 : index
    %38 = vector.load %arg2[%c0_26, %c0_27] : memref<36x8xbf16, #tpu.memory_space<vmem>>, vector<36x8xbf16>
    %cst_28 = arith.constant dense<0.000000e+00> : vector<256x8xf32>
    %39 = tpu.matmul %37, %38, %cst_28 {dimension_numbers = #tpu.dot_dimension_numbers<[1], [0], [0], [1], [0, 0, 1, 1], [], []>} : vector<256x36xbf16>, vector<36x8xbf16>, vector<256x8xf32> -> vector<256x8xf32>
    %c0_29 = arith.constant 0 : index
    %c0_30 = arith.constant 0 : index
    %40 = vector.load %arg3[%c0_29, %c0_30] : memref<1x8xf32, #tpu.memory_space<vmem>>, vector<1x8xf32>
    %41 = vector.broadcast %40 : vector<1x8xf32> to vector<256x8xf32>
    %42 = arith.mulf %39, %41 : vector<256x8xf32>
    %c0_31 = arith.constant 0 : index
    %c0_32 = arith.constant 0 : index
    %43 = vector.load %arg4[%c0_31, %c0_32] : memref<1x8xf32, #tpu.memory_space<vmem>>, vector<1x8xf32>
    %44 = vector.broadcast %43 : vector<1x8xf32> to vector<256x8xf32>
    %45 = arith.addf %42, %44 : vector<256x8xf32>
    %cst_33 = arith.constant 0.000000e+00 : f32
    %46 = vector.broadcast %cst_33 : f32 to vector<256x8xf32>
    %47 = arith.maximumf %45, %46 : vector<256x8xf32>
    %cst_34 = arith.constant 0.000000e+00 : bf16
    %48 = vector.broadcast %cst_34 : bf16 to vector<1x18x8xbf16>
    %cst_35 = arith.constant 0.000000e+00 : bf16
    %49 = vector.broadcast %cst_35 : bf16 to vector<16x1x8xbf16>
    %c0_36 = arith.constant 0 : index
    %c0_37 = arith.constant 0 : index
    %c0_38 = arith.constant 0 : index
    %50 = vector.load %arg13[%c0_36, %c0_37, %c0_38] : memref<18x18x8xbf16, #tpu.memory_space<vmem>>, vector<1x18x8xbf16>
    tpu.vector_store %arg13[%c0_36, %c0_37, %c0_38], %48 {strides = array<i32>} : memref<18x18x8xbf16, #tpu.memory_space<vmem>>, vector<1x18x8xbf16>,
    %c17_39 = arith.constant 17 : index
    %c0_40 = arith.constant 0 : index
    %c0_41 = arith.constant 0 : index
    %51 = vector.load %arg13[%c17_39, %c0_40, %c0_41] : memref<18x18x8xbf16, #tpu.memory_space<vmem>>, vector<1x18x8xbf16>
    tpu.vector_store %arg13[%c17_39, %c0_40, %c0_41], %48 {strides = array<i32>} : memref<18x18x8xbf16, #tpu.memory_space<vmem>>, vector<1x18x8xbf16>,
    %52 = vector.shape_cast %47 : vector<256x8xf32> to vector<16x16x8xf32>
    %53 = arith.truncf %52 : vector<16x16x8xf32> to vector<16x16x8xbf16>
    %54 = tpu.concatenate %49, %53, %49 in 1 : vector<16x1x8xbf16>, vector<16x16x8xbf16>, vector<16x1x8xbf16> -> vector<16x18x8xbf16>
    %c1_42 = arith.constant 1 : index
    %c0_43 = arith.constant 0 : index
    %c0_44 = arith.constant 0 : index
    %55 = vector.load %arg13[%c1_42, %c0_43, %c0_44] : memref<18x18x8xbf16, #tpu.memory_space<vmem>>, vector<16x18x8xbf16>
    tpu.vector_store %arg13[%c1_42, %c0_43, %c0_44], %54 {strides = array<i32>} : memref<18x18x8xbf16, #tpu.memory_space<vmem>>, vector<16x18x8xbf16>,
    %c0_45 = arith.constant 0 : index
    %c0_46 = arith.constant 0 : index
    %c0_47 = arith.constant 0 : index
    %56 = vector.load %arg13[%c0_45, %c0_46, %c0_47] : memref<18x18x8xbf16, #tpu.memory_space<vmem>>, vector<18x18x8xbf16>
    %57 = vector.extract_strided_slice %56 {offsets = [0, 0, 0], sizes = [16, 16, 8], strides = [1, 1, 1]} : vector<18x18x8xbf16> to vector<16x16x8xbf16>
    %58 = vector.shape_cast %57 : vector<16x16x8xbf16> to vector<256x8xbf16>
    %59 = vector.extract_strided_slice %56 {offsets = [0, 1, 0], sizes = [16, 16, 8], strides = [1, 1, 1]} : vector<18x18x8xbf16> to vector<16x16x8xbf16>
    %60 = vector.shape_cast %59 : vector<16x16x8xbf16> to vector<256x8xbf16>
    %61 = vector.extract_strided_slice %56 {offsets = [0, 2, 0], sizes = [16, 16, 8], strides = [1, 1, 1]} : vector<18x18x8xbf16> to vector<16x16x8xbf16>
    %62 = vector.shape_cast %61 : vector<16x16x8xbf16> to vector<256x8xbf16>
    %63 = vector.extract_strided_slice %56 {offsets = [1, 0, 0], sizes = [16, 16, 8], strides = [1, 1, 1]} : vector<18x18x8xbf16> to vector<16x16x8xbf16>
    %64 = vector.shape_cast %63 : vector<16x16x8xbf16> to vector<256x8xbf16>
    %65 = vector.extract_strided_slice %56 {offsets = [1, 1, 0], sizes = [16, 16, 8], strides = [1, 1, 1]} : vector<18x18x8xbf16> to vector<16x16x8xbf16>
    %66 = vector.shape_cast %65 : vector<16x16x8xbf16> to vector<256x8xbf16>
    %67 = vector.extract_strided_slice %56 {offsets = [1, 2, 0], sizes = [16, 16, 8], strides = [1, 1, 1]} : vector<18x18x8xbf16> to vector<16x16x8xbf16>
    %68 = vector.shape_cast %67 : vector<16x16x8xbf16> to vector<256x8xbf16>
    %69 = vector.extract_strided_slice %56 {offsets = [2, 0, 0], sizes = [16, 16, 8], strides = [1, 1, 1]} : vector<18x18x8xbf16> to vector<16x16x8xbf16>
    %70 = vector.shape_cast %69 : vector<16x16x8xbf16> to vector<256x8xbf16>
    %71 = vector.extract_strided_slice %56 {offsets = [2, 1, 0], sizes = [16, 16, 8], strides = [1, 1, 1]} : vector<18x18x8xbf16> to vector<16x16x8xbf16>
    %72 = vector.shape_cast %71 : vector<16x16x8xbf16> to vector<256x8xbf16>
    %73 = vector.extract_strided_slice %56 {offsets = [2, 2, 0], sizes = [16, 16, 8], strides = [1, 1, 1]} : vector<18x18x8xbf16> to vector<16x16x8xbf16>
    %74 = vector.shape_cast %73 : vector<16x16x8xbf16> to vector<256x8xbf16>
    %c0_48 = arith.constant 0 : index
    %c0_49 = arith.constant 0 : index
    %75 = vector.load %arg14[%c0_48, %c0_49] : memref<256x72xbf16, #tpu.memory_space<vmem>>, vector<256x8xbf16>
    tpu.vector_store %arg14[%c0_48, %c0_49], %58 {strides = array<i32>} : memref<256x72xbf16, #tpu.memory_space<vmem>>, vector<256x8xbf16>,
    %c0_50 = arith.constant 0 : index
    %c8_51 = arith.constant 8 : index
    %76 = vector.load %arg14[%c0_50, %c8_51] : memref<256x72xbf16, #tpu.memory_space<vmem>>, vector<256x8xbf16>
    tpu.vector_store %arg14[%c0_50, %c8_51], %60 {strides = array<i32>} : memref<256x72xbf16, #tpu.memory_space<vmem>>, vector<256x8xbf16>,
    %c0_52 = arith.constant 0 : index
    %c16_53 = arith.constant 16 : index
    %77 = vector.load %arg14[%c0_52, %c16_53] : memref<256x72xbf16, #tpu.memory_space<vmem>>, vector<256x8xbf16>
    tpu.vector_store %arg14[%c0_52, %c16_53], %62 {strides = array<i32>} : memref<256x72xbf16, #tpu.memory_space<vmem>>, vector<256x8xbf16>,
    %c0_54 = arith.constant 0 : index
    %c24_55 = arith.constant 24 : index
    %78 = vector.load %arg14[%c0_54, %c24_55] : memref<256x72xbf16, #tpu.memory_space<vmem>>, vector<256x8xbf16>
    tpu.vector_store %arg14[%c0_54, %c24_55], %64 {strides = array<i32>} : memref<256x72xbf16, #tpu.memory_space<vmem>>, vector<256x8xbf16>,
    %c0_56 = arith.constant 0 : index
    %c32_57 = arith.constant 32 : index
    %79 = vector.load %arg14[%c0_56, %c32_57] : memref<256x72xbf16, #tpu.memory_space<vmem>>, vector<256x8xbf16>
    tpu.vector_store %arg14[%c0_56, %c32_57], %66 {strides = array<i32>} : memref<256x72xbf16, #tpu.memory_space<vmem>>, vector<256x8xbf16>,
    %c0_58 = arith.constant 0 : index
    %c40 = arith.constant 40 : index
    %80 = vector.load %arg14[%c0_58, %c40] : memref<256x72xbf16, #tpu.memory_space<vmem>>, vector<256x8xbf16>
    tpu.vector_store %arg14[%c0_58, %c40], %68 {strides = array<i32>} : memref<256x72xbf16, #tpu.memory_space<vmem>>, vector<256x8xbf16>,
    %c0_59 = arith.constant 0 : index
    %c48 = arith.constant 48 : index
    %81 = vector.load %arg14[%c0_59, %c48] : memref<256x72xbf16, #tpu.memory_space<vmem>>, vector<256x8xbf16>
    tpu.vector_store %arg14[%c0_59, %c48], %70 {strides = array<i32>} : memref<256x72xbf16, #tpu.memory_space<vmem>>, vector<256x8xbf16>,
    %c0_60 = arith.constant 0 : index
    %c56 = arith.constant 56 : index
    %82 = vector.load %arg14[%c0_60, %c56] : memref<256x72xbf16, #tpu.memory_space<vmem>>, vector<256x8xbf16>
    tpu.vector_store %arg14[%c0_60, %c56], %72 {strides = array<i32>} : memref<256x72xbf16, #tpu.memory_space<vmem>>, vector<256x8xbf16>,
    %c0_61 = arith.constant 0 : index
    %c64 = arith.constant 64 : index
    %83 = vector.load %arg14[%c0_61, %c64] : memref<256x72xbf16, #tpu.memory_space<vmem>>, vector<256x8xbf16>
    tpu.vector_store %arg14[%c0_61, %c64], %74 {strides = array<i32>} : memref<256x72xbf16, #tpu.memory_space<vmem>>, vector<256x8xbf16>,
    %c0_62 = arith.constant 0 : index
    %c0_63 = arith.constant 0 : index
    %84 = vector.load %arg14[%c0_62, %c0_63] : memref<256x72xbf16, #tpu.memory_space<vmem>>, vector<256x72xbf16>
    %c0_64 = arith.constant 0 : index
    %c0_65 = arith.constant 0 : index
    %85 = vector.load %arg5[%c0_64, %c0_65] : memref<72x8xbf16, #tpu.memory_space<vmem>>, vector<72x8xbf16>
    %cst_66 = arith.constant dense<0.000000e+00> : vector<256x8xf32>
    %86 = tpu.matmul %84, %85, %cst_66 {dimension_numbers = #tpu.dot_dimension_numbers<[1], [0], [0], [1], [0, 0, 1, 1], [], []>} : vector<256x72xbf16>, vector<72x8xbf16>, vector<256x8xf32> -> vector<256x8xf32>
    %c0_67 = arith.constant 0 : index
    %c0_68 = arith.constant 0 : index
    %87 = vector.load %arg6[%c0_67, %c0_68] : memref<1x8xf32, #tpu.memory_space<vmem>>, vector<1x8xf32>
    %88 = vector.broadcast %87 : vector<1x8xf32> to vector<256x8xf32>
    %89 = arith.mulf %86, %88 : vector<256x8xf32>
    %c0_69 = arith.constant 0 : index
    %c0_70 = arith.constant 0 : index
    %90 = vector.load %arg7[%c0_69, %c0_70] : memref<1x8xf32, #tpu.memory_space<vmem>>, vector<1x8xf32>
    %91 = vector.broadcast %90 : vector<1x8xf32> to vector<256x8xf32>
    %92 = arith.addf %89, %91 : vector<256x8xf32>
    %93 = vector.shape_cast %1 : vector<16x16x4xf32> to vector<256x4xf32>
    %94 = arith.truncf %93 : vector<256x4xf32> to vector<256x4xbf16>
    %c0_71 = arith.constant 0 : index
    %c0_72 = arith.constant 0 : index
    %95 = vector.load %arg8[%c0_71, %c0_72] : memref<4x8xbf16, #tpu.memory_space<vmem>>, vector<4x8xbf16>
    %cst_73 = arith.constant dense<0.000000e+00> : vector<256x8xf32>
    %96 = tpu.matmul %94, %95, %cst_73 {dimension_numbers = #tpu.dot_dimension_numbers<[1], [0], [0], [1], [0, 0, 1, 1], [], []>} : vector<256x4xbf16>, vector<4x8xbf16>, vector<256x8xf32> -> vector<256x8xf32>
    %c0_74 = arith.constant 0 : index
    %c0_75 = arith.constant 0 : index
    %97 = vector.load %arg9[%c0_74, %c0_75] : memref<1x8xf32, #tpu.memory_space<vmem>>, vector<1x8xf32>
    %98 = vector.broadcast %97 : vector<1x8xf32> to vector<256x8xf32>
    %99 = arith.mulf %96, %98 : vector<256x8xf32>
    %c0_76 = arith.constant 0 : index
    %c0_77 = arith.constant 0 : index
    %100 = vector.load %arg10[%c0_76, %c0_77] : memref<1x8xf32, #tpu.memory_space<vmem>>, vector<1x8xf32>
    %101 = vector.broadcast %100 : vector<1x8xf32> to vector<256x8xf32>
    %102 = arith.addf %99, %101 : vector<256x8xf32>
    %103 = arith.addf %92, %102 : vector<256x8xf32>
    %cst_78 = arith.constant 0.000000e+00 : f32
    %104 = vector.broadcast %cst_78 : f32 to vector<256x8xf32>
    %105 = arith.maximumf %103, %104 : vector<256x8xf32>
    %106 = vector.shape_cast %105 : vector<256x8xf32> to vector<16x16x8xf32>
    %c0_79 = arith.constant 0 : index
    %c0_80 = arith.constant 0 : index
    %c0_81 = arith.constant 0 : index
    %c0_82 = arith.constant 0 : index
    %107 = vector.load %arg11[%c0_79, %c0_80, %c0_81, %c0_82] : memref<1x16x16x8xf32, #tpu.memory_space<vmem>>, vector<1x16x16x8xf32>
    %108 = vector.shape_cast %107 : vector<1x16x16x8xf32> to vector<16x16x8xf32>
    %109 = vector.shape_cast %106 : vector<16x16x8xf32> to vector<1x16x16x8xf32>
    tpu.vector_store %arg11[%c0_79, %c0_80, %c0_81, %c0_82], %109 {strides = array<i32>} : memref<1x16x16x8xf32, #tpu.memory_space<vmem>>, vector<1x16x16x8xf32>,
    return
  }
  func.func @transform_0(%arg0: i32) -> (i32, i32, i32, i32) {
    %c0_i32 = arith.constant 0 : i32
    %c0_i32_0 = arith.constant 0 : i32
    %c0_i32_1 = arith.constant 0 : i32
    %c0_i32_2 = arith.constant 0 : i32
    return %arg0, %c0_i32, %c0_i32_0, %c0_i32_1 : i32, i32, i32, i32
  }
  func.func @transform_1(%arg0: i32) -> (i32, i32) {
    %c0_i32 = arith.constant 0 : i32
    %c0_i32_0 = arith.constant 0 : i32
    %c0_i32_1 = arith.constant 0 : i32
    return %c0_i32, %c0_i32_0 : i32, i32
  }
  func.func @transform_2(%arg0: i32) -> (i32, i32) {
    %c0_i32 = arith.constant 0 : i32
    %c0_i32_0 = arith.constant 0 : i32
    %c0_i32_1 = arith.constant 0 : i32
    return %c0_i32, %c0_i32_0 : i32, i32
  }
  func.func @transform_3(%arg0: i32) -> (i32, i32) {
    %c0_i32 = arith.constant 0 : i32
    %c0_i32_0 = arith.constant 0 : i32
    %c0_i32_1 = arith.constant 0 : i32
    return %c0_i32, %c0_i32_0 : i32, i32
  }
  func.func @transform_4(%arg0: i32) -> (i32, i32) {
    %c0_i32 = arith.constant 0 : i32
    %c0_i32_0 = arith.constant 0 : i32
    %c0_i32_1 = arith.constant 0 : i32
    return %c0_i32, %c0_i32_0 : i32, i32
  }
  func.func @transform_5(%arg0: i32) -> (i32, i32) {
    %c0_i32 = arith.constant 0 : i32
    %c0_i32_0 = arith.constant 0 : i32
    %c0_i32_1 = arith.constant 0 : i32
    return %c0_i32, %c0_i32_0 : i32, i32
  }
  func.func @transform_6(%arg0: i32) -> (i32, i32) {
    %c0_i32 = arith.constant 0 : i32
    %c0_i32_0 = arith.constant 0 : i32
    %c0_i32_1 = arith.constant 0 : i32
    return %c0_i32, %c0_i32_0 : i32, i32
  }
  func.func @transform_7(%arg0: i32) -> (i32, i32) {
    %c0_i32 = arith.constant 0 : i32
    %c0_i32_0 = arith.constant 0 : i32
    %c0_i32_1 = arith.constant 0 : i32
    return %c0_i32, %c0_i32_0 : i32, i32
  }
  func.func @transform_8(%arg0: i32) -> (i32, i32) {
    %c0_i32 = arith.constant 0 : i32
    %c0_i32_0 = arith.constant 0 : i32
    %c0_i32_1 = arith.constant 0 : i32
    return %c0_i32, %c0_i32_0 : i32, i32
  }
  func.func @transform_9(%arg0: i32) -> (i32, i32) {
    %c0_i32 = arith.constant 0 : i32
    %c0_i32_0 = arith.constant 0 : i32
    %c0_i32_1 = arith.constant 0 : i32
    return %c0_i32, %c0_i32_0 : i32, i32
  }
  func.func @transform_10(%arg0: i32) -> (i32, i32, i32, i32) {
    %c0_i32 = arith.constant 0 : i32
    %c0_i32_0 = arith.constant 0 : i32
    %c0_i32_1 = arith.constant 0 : i32
    %c0_i32_2 = arith.constant 0 : i32
    return %arg0, %c0_i32, %c0_i32_0, %c0_i32_1 : i32, i32, i32, i32
  }
}

</mosaic_0001>

<llo_original>
// kernel: tpu_custom_call.1
$region0: #{tpu_custom_call.1}
  #allocation0 [shape = 'u32[]', space=smem, size = 0x4, offset = 0x4, fixed_abs, tag = 'smem constant byte address 0x4 - core index']
  #allocation1 [shape = 'u32[72,128]{1,0:T(1,128)}', space=vmem, size = 0x9000, scoped, tag = 'internal scratch']
  #allocation2 [shape = 'bf16[18,18,4]{2,1,0:T(8,128)(2,1)}', space=vmem, size = 0x1b000, scoped, tag = 'scratch operand']
  #allocation3 [shape = 'bf16[18,18,8]{2,1,0:T(8,128)(2,1)}', space=vmem, size = 0x1b000, scoped, tag = 'scratch operand']
  #allocation4 [shape = 'bf16[256,72]{1,0:T(8,128)(2,1)}', space=vmem, size = 0x10000, scoped, tag = 'scratch operand']
  %s0 = inlined_call_operand.vmem [shape: f32[2,16,16,4], index: 0, kind: input, shape index: {}]
  %s1 = inlined_call_operand.vmem [shape: bf16[36,8], index: 1, kind: input, shape index: {}]
  %s2 = inlined_call_operand.vmem [shape: f32[1,8], index: 2, kind: input, shape index: {}]
  %s3 = inlined_call_operand.vmem [shape: f32[1,8], index: 3, kind: input, shape index: {}]
  %s4 = inlined_call_operand.vmem [shape: bf16[72,8], index: 4, kind: input, shape index: {}]
  %s5 = inlined_call_operand.vmem [shape: f32[1,8], index: 5, kind: input, shape index: {}]
  %s6 = inlined_call_operand.vmem [shape: f32[1,8], index: 6, kind: input, shape index: {}]
  %s7 = inlined_call_operand.vmem [shape: bf16[4,8], index: 7, kind: input, shape index: {}]
  %s8 = inlined_call_operand.vmem [shape: f32[1,8], index: 8, kind: input, shape index: {}]
  %s9 = inlined_call_operand.vmem [shape: f32[1,8], index: 9, kind: input, shape index: {}]
  %s10 = inlined_call_operand.vmem [shape: f32[2,16,16,8], index: 10, kind: output, shape index: {}]
  %s11 = sld [smem:[#allocation0]]
  $region73: #{tpu_custom_call.1} parent=0
    _
  %s13 = ssub.s32 1, %s11
  %s14 = scalar_select 0, %s13, %s11
  loop: start=0, step=1, limit=4
  $region2: #{tpu_custom_call.1} parent=0 // loop_pre_header
    _
  $region3: #{tpu_custom_call.1} parent=0 // loop_header
    %s16 = sphi 0, %s20
    %p17 = scmp.ge.s32.totalorder %s16, 4
    %s26 = sphi 0, %s28
    %s29 = sphi 0, %s26
    %s30 = sphi 0, %s29
    %s46 = sphi 0, %s30
    %s50 = sphi 0, %s50
    %s52 = sphi 0, %s50
    %s53 = sphi 0, %s52
    %s67 = sphi 0, %s53
    %s71 = sphi 0, %s71
    %s73 = sphi 0, %s71
    %s74 = sphi 0, %s73
    %s88 = sphi 0, %s74
    %s92 = sphi 0, %s92
    %s94 = sphi 0, %s92
    %s95 = sphi 0, %s94
    %s109 = sphi 0, %s95
    %s113 = sphi 0, %s113
    %s115 = sphi 0, %s113
    %s116 = sphi 0, %s115
    %s130 = sphi 0, %s116
    %s134 = sphi 0, %s134
    %s136 = sphi 0, %s134
    %s137 = sphi 0, %s136
    %s151 = sphi 0, %s137
    %s155 = sphi 0, %s155
    %s157 = sphi 0, %s155
    %s158 = sphi 0, %s157
    %s172 = sphi 0, %s158
    %s176 = sphi 0, %s176
    %s178 = sphi 0, %s176
    %s179 = sphi 0, %s178
    %s193 = sphi 0, %s179
    %s197 = sphi 0, %s197
    %s199 = sphi 0, %s197
    %s200 = sphi 0, %s199
    %s214 = sphi 0, %s200
    %s218 = sphi 0, %s218
    %s220 = sphi 0, %s218
    %s221 = sphi 0, %s220
    %s235 = sphi 0, %s221
    %s241 = sphi 0, %s243
    %s244 = sphi 0, %s241
    %s245 = sphi 0, %s244
    %s261 = sphi 0, %s245
  $region4: #{tpu_custom_call.1} parent=0 // loop_header_branch
    %19 = sbr.rel (%p17) target = $region8
  $region5: #{tpu_custom_call.1} parent=0 // loop_body
    %s21 = ssub.s32 %s16, 1
    %s22 = ssub.s32 %s16, 2
    %s23 = sadd.s32 %s16, 1
    %s24 = ssub.s32 %s16, %s23
    %p25 = scmp.eq.s32.totalorder %s24, 0
    %s27 = sadd.s32 %s26, 1
    %s28 = scalar_select %p25, %s26, %s27
    %p31 = pneg %p25
    %p32 = scmp.eq.s32.totalorder %s16, 1
    %p33 = por %p31, %p32
    %p34 = scmp.ne.s32.totalorder %s26, %s29
    %p35 = scmp.eq.s32.totalorder %s16, 0
    %p36 = por %p34, %p35
    %p37 = scmp.ne.s32.totalorder %s26, %s29
    %p38 = scmp.eq.s32.totalorder %s21, 1
    %p39 = por %p37, %p38
    %p40 = scmp.ne.s32.totalorder %s29, %s30
    %p41 = scmp.eq.s32.totalorder %s21, 0
    %p42 = por %p40, %p41
    %p43 = scmp.ne.s32.totalorder %s29, %s30
    %p44 = scmp.eq.s32.totalorder %s22, 1
    %p45 = por %p43, %p44
    %p47 = scmp.ne.s32.totalorder %s30, %s46
    %p48 = scmp.eq.s32.totalorder %s22, 0
    %p49 = por %p47, %p48
    %s51 = sadd.s32 %s50, 1
    %p54 = scmp.eq.s32.totalorder %s16, 1
    %p55 = scmp.ne.s32.totalorder %s50, %s52
    %p56 = scmp.eq.s32.totalorder %s16, 0
    %p57 = por %p55, %p56
    %p58 = scmp.ne.s32.totalorder %s50, %s52
    %p59 = scmp.eq.s32.totalorder %s21, 1
    %p60 = por %p58, %p59
    %p61 = scmp.ne.s32.totalorder %s52, %s53
    %p62 = scmp.eq.s32.totalorder %s21, 0
    %p63 = por %p61, %p62
    %p64 = scmp.ne.s32.totalorder %s52, %s53
    %p65 = scmp.eq.s32.totalorder %s22, 1
    %p66 = por %p64, %p65
    %p68 = scmp.ne.s32.totalorder %s53, %s67
    %p69 = scmp.eq.s32.totalorder %s22, 0
    %p70 = por %p68, %p69
    %s72 = sadd.s32 %s71, 1
    %p75 = scmp.eq.s32.totalorder %s16, 1
    %p76 = scmp.ne.s32.totalorder %s71, %s73
    %p77 = scmp.eq.s32.totalorder %s16, 0
    %p78 = por %p76, %p77
    %p79 = scmp.ne.s32.totalorder %s71, %s73
    %p80 = scmp.eq.s32.totalorder %s21, 1
    %p81 = por %p79, %p80
    %p82 = scmp.ne.s32.totalorder %s73, %s74
    %p83 = scmp.eq.s32.totalorder %s21, 0
    %p84 = por %p82, %p83
    %p85 = scmp.ne.s32.totalorder %s73, %s74
    %p86 = scmp.eq.s32.totalorder %s22, 1
    %p87 = por %p85, %p86
    %p89 = scmp.ne.s32.totalorder %s74, %s88
    %p90 = scmp.eq.s32.totalorder %s22, 0
    %p91 = por %p89, %p90
    %s93 = sadd.s32 %s92, 1
    %p96 = scmp.eq.s32.totalorder %s16, 1
    %p97 = scmp.ne.s32.totalorder %s92, %s94
    %p98 = scmp.eq.s32.totalorder %s16, 0
    %p99 = por %p97, %p98
    %p100 = scmp.ne.s32.totalorder %s92, %s94
    %p101 = scmp.eq.s32.totalorder %s21, 1
    %p102 = por %p100, %p101
    %p103 = scmp.ne.s32.totalorder %s94, %s95
    %p104 = scmp.eq.s32.totalorder %s21, 0
    %p105 = por %p103, %p104
    %p106 = scmp.ne.s32.totalorder %s94, %s95
    %p107 = scmp.eq.s32.totalorder %s22, 1
    %p108 = por %p106, %p107
    %p110 = scmp.ne.s32.totalorder %s95, %s109
    %p111 = scmp.eq.s32.totalorder %s22, 0
    %p112 = por %p110, %p111
    %s114 = sadd.s32 %s113, 1
    %p117 = scmp.eq.s32.totalorder %s16, 1
    %p118 = scmp.ne.s32.totalorder %s113, %s115
    %p119 = scmp.eq.s32.totalorder %s16, 0
    %p120 = por %p118, %p119
    %p121 = scmp.ne.s32.totalorder %s113, %s115
    %p122 = scmp.eq.s32.totalorder %s21, 1
    %p123 = por %p121, %p122
    %p124 = scmp.ne.s32.totalorder %s115, %s116
    %p125 = scmp.eq.s32.totalorder %s21, 0
    %p126 = por %p124, %p125
    %p127 = scmp.ne.s32.totalorder %s115, %s116
    %p128 = scmp.eq.s32.totalorder %s22, 1
    %p129 = por %p127, %p128
    %p131 = scmp.ne.s32.totalorder %s116, %s130
    %p132 = scmp.eq.s32.totalorder %s22, 0
    %p133 = por %p131, %p132
    %s135 = sadd.s32 %s134, 1
    %p138 = scmp.eq.s32.totalorder %s16, 1
    %p139 = scmp.ne.s32.totalorder %s134, %s136
    %p140 = scmp.eq.s32.totalorder %s16, 0
    %p141 = por %p139, %p140
    %p142 = scmp.ne.s32.totalorder %s134, %s136
    %p143 = scmp.eq.s32.totalorder %s21, 1
    %p144 = por %p142, %p143
    %p145 = scmp.ne.s32.totalorder %s136, %s137
    %p146 = scmp.eq.s32.totalorder %s21, 0
    %p147 = por %p145, %p146
    %p148 = scmp.ne.s32.totalorder %s136, %s137
    %p149 = scmp.eq.s32.totalorder %s22, 1
    %p150 = por %p148, %p149
    %p152 = scmp.ne.s32.totalorder %s137, %s151
    %p153 = scmp.eq.s32.totalorder %s22, 0
    %p154 = por %p152, %p153
    %s156 = sadd.s32 %s155, 1
    %p159 = scmp.eq.s32.totalorder %s16, 1
    %p160 = scmp.ne.s32.totalorder %s155, %s157
    %p161 = scmp.eq.s32.totalorder %s16, 0
    %p162 = por %p160, %p161
    %p163 = scmp.ne.s32.totalorder %s155, %s157
    %p164 = scmp.eq.s32.totalorder %s21, 1
    %p165 = por %p163, %p164
    %p166 = scmp.ne.s32.totalorder %s157, %s158
    %p167 = scmp.eq.s32.totalorder %s21, 0
    %p168 = por %p166, %p167
    %p169 = scmp.ne.s32.totalorder %s157, %s158
    %p170 = scmp.eq.s32.totalorder %s22, 1
    %p171 = por %p169, %p170
    %p173 = scmp.ne.s32.totalorder %s158, %s172
    %p174 = scmp.eq.s32.totalorder %s22, 0
    %p175 = por %p173, %p174
    %s177 = sadd.s32 %s176, 1
    %p180 = scmp.eq.s32.totalorder %s16, 1
    %p181 = scmp.ne.s32.totalorder %s176, %s178
    %p182 = scmp.eq.s32.totalorder %s16, 0
    %p183 = por %p181, %p182
    %p184 = scmp.ne.s32.totalorder %s176, %s178
    %p185 = scmp.eq.s32.totalorder %s21, 1
    %p186 = por %p184, %p185
    %p187 = scmp.ne.s32.totalorder %s178, %s179
    %p188 = scmp.eq.s32.totalorder %s21, 0
    %p189 = por %p187, %p188
    %p190 = scmp.ne.s32.totalorder %s178, %s179
    %p191 = scmp.eq.s32.totalorder %s22, 1
    %p192 = por %p190, %p191
    %p194 = scmp.ne.s32.totalorder %s179, %s193
    %p195 = scmp.eq.s32.totalorder %s22, 0
    %p196 = por %p194, %p195
    %s198 = sadd.s32 %s197, 1
    %p201 = scmp.eq.s32.totalorder %s16, 1
    %p202 = scmp.ne.s32.totalorder %s197, %s199
    %p203 = scmp.eq.s32.totalorder %s16, 0
    %p204 = por %p202, %p203
    %p205 = scmp.ne.s32.totalorder %s197, %s199
    %p206 = scmp.eq.s32.totalorder %s21, 1
    %p207 = por %p205, %p206
    %p208 = scmp.ne.s32.totalorder %s199, %s200
    %p209 = scmp.eq.s32.totalorder %s21, 0
    %p210 = por %p208, %p209
    %p211 = scmp.ne.s32.totalorder %s199, %s200
    %p212 = scmp.eq.s32.totalorder %s22, 1
    %p213 = por %p211, %p212
    %p215 = scmp.ne.s32.totalorder %s200, %s214
    %p216 = scmp.eq.s32.totalorder %s22, 0
    %p217 = por %p215, %p216
    %s219 = sadd.s32 %s218, 1
    %p222 = scmp.eq.s32.totalorder %s16, 1
    %p223 = scmp.ne.s32.totalorder %s218, %s220
    %p224 = scmp.eq.s32.totalorder %s16, 0
    %p225 = por %p223, %p224
    %p226 = scmp.ne.s32.totalorder %s218, %s220
    %p227 = scmp.eq.s32.totalorder %s21, 1
    %p228 = por %p226, %p227
    %p229 = scmp.ne.s32.totalorder %s220, %s221
    %p230 = scmp.eq.s32.totalorder %s21, 0
    %p231 = por %p229, %p230
    %p232 = scmp.ne.s32.totalorder %s220, %s221
    %p233 = scmp.eq.s32.totalorder %s22, 1
    %p234 = por %p232, %p233
    %p236 = scmp.ne.s32.totalorder %s221, %s235
    %p237 = scmp.eq.s32.totalorder %s22, 0
    %p238 = por %p236, %p237
    %s239 = ssub.s32 %s16, %s23
    %p240 = scmp.eq.s32.totalorder %s239, 0
    %s242 = sadd.s32 %s241, 1
    %s243 = scalar_select %p240, %s241, %s242
    %p246 = pneg %p240
    %p247 = scmp.eq.s32.totalorder %s16, 1
    %p248 = por %p246, %p247
    %p249 = scmp.ne.s32.totalorder %s241, %s244
    %p250 = scmp.eq.s32.totalorder %s16, 0
    %p251 = por %p249, %p250
    %p252 = scmp.ne.s32.totalorder %s241, %s244
    %p253 = scmp.eq.s32.totalorder %s21, 1
    %p254 = por %p252, %p253
    %p255 = scmp.ne.s32.totalorder %s244, %s245
    %p256 = scmp.eq.s32.totalorder %s21, 0
    %p257 = por %p255, %p256
    %p258 = scmp.ne.s32.totalorder %s244, %s245
    %p259 = scmp.eq.s32.totalorder %s22, 1
    %p260 = por %p258, %p259
    %p262 = scmp.ne.s32.totalorder %s245, %s261
    %p263 = scmp.eq.s32.totalorder %s22, 0
    %p264 = por %p262, %p263
    %p265 = scmp.le.s32.totalorder 1, %s16
    %p266 = scmp.lt.s32.totalorder %s16, 3
    %p267 = pnand %p265, %p266
    %p268 = pneg %p267
    // Predicated region
    $region9: #{tpu_custom_call.1} parent=5 // pred_check
      _
    $region10: #{tpu_custom_call.1} parent=5 // pred_check_branch
      %270 = sbr.rel (%p267) target = $region12
    $region11: #{tpu_custom_call.1} parent=5 // pred_region
      %s271 = ssub.s32 %s16, 1
      // Predicated region
      $region13: #{tpu_custom_call.1} parent=11 // pred_check
        %p272 = pneg %p63
      $region14: #{tpu_custom_call.1} parent=11 // pred_check_branch
        %274 = sbr.rel (%p272) target = $region16
      $region15: #{tpu_custom_call.1} parent=11 // pred_region
        _
      $region16: #{tpu_custom_call.1} parent=11 // pred_fallthru
        _
      // Predicated region
      $region17: #{tpu_custom_call.1} parent=11 // pred_check
        %p275 = pneg %p84
      $region18: #{tpu_custom_call.1} parent=11 // pred_check_branch
        %277 = sbr.rel (%p275) target = $region20
      $region19: #{tpu_custom_call.1} parent=11 // pred_region
        _
      $region20: #{tpu_custom_call.1} parent=11 // pred_fallthru
        _
      // Predicated region
      $region21: #{tpu_custom_call.1} parent=11 // pred_check
        %p278 = pneg %p105
      $region22: #{tpu_custom_call.1} parent=11 // pred_check_branch
        %280 = sbr.rel (%p278) target = $region24
      $region23: #{tpu_custom_call.1} parent=11 // pred_region
        _
      $region24: #{tpu_custom_call.1} parent=11 // pred_fallthru
        _
      // Predicated region
      $region25: #{tpu_custom_call.1} parent=11 // pred_check
        %p281 = pneg %p126
      $region26: #{tpu_custom_call.1} parent=11 // pred_check_branch
        %283 = sbr.rel (%p281) target = $region28
      $region27: #{tpu_custom_call.1} parent=11 // pred_region
        _
      $region28: #{tpu_custom_call.1} parent=11 // pred_fallthru
        _
      // Predicated region
      $region29: #{tpu_custom_call.1} parent=11 // pred_check
        %p284 = pneg %p147
      $region30: #{tpu_custom_call.1} parent=11 // pred_check_branch
        %286 = sbr.rel (%p284) target = $region32
      $region31: #{tpu_custom_call.1} parent=11 // pred_region
        _
      $region32: #{tpu_custom_call.1} parent=11 // pred_fallthru
        _
      // Predicated region
      $region33: #{tpu_custom_call.1} parent=11 // pred_check
        %p287 = pneg %p168
      $region34: #{tpu_custom_call.1} parent=11 // pred_check_branch
        %289 = sbr.rel (%p287) target = $region36
      $region35: #{tpu_custom_call.1} parent=11 // pred_region
        _
      $region36: #{tpu_custom_call.1} parent=11 // pred_fallthru
        _
      // Predicated region
      $region37: #{tpu_custom_call.1} parent=11 // pred_check
        %p290 = pneg %p189
      $region38: #{tpu_custom_call.1} parent=11 // pred_check_branch
        %292 = sbr.rel (%p290) target = $region40
      $region39: #{tpu_custom_call.1} parent=11 // pred_region
        _
      $region40: #{tpu_custom_call.1} parent=11 // pred_fallthru
        _
      // Predicated region
      $region41: #{tpu_custom_call.1} parent=11 // pred_check
        %p293 = pneg %p210
      $region42: #{tpu_custom_call.1} parent=11 // pred_check_branch
        %295 = sbr.rel (%p293) target = $region44
      $region43: #{tpu_custom_call.1} parent=11 // pred_region
        _
      $region44: #{tpu_custom_call.1} parent=11 // pred_fallthru
        _
      // Predicated region
      $region45: #{tpu_custom_call.1} parent=11 // pred_check
        %p296 = pneg %p231
      $region46: #{tpu_custom_call.1} parent=11 // pred_check_branch
        %298 = sbr.rel (%p296) target = $region48
      $region47: #{tpu_custom_call.1} parent=11 // pred_region
        _
      $region48: #{tpu_custom_call.1} parent=11 // pred_fallthru
        _
    $region12: #{tpu_custom_call.1} parent=5 // pred_fallthru
      _
    %p299 = scmp.lt.s32.totalorder %s16, 2
    // Predicated region
    $region49: #{tpu_custom_call.1} parent=5 // pred_check
      %p300 = pneg %p299
    $region50: #{tpu_custom_call.1} parent=5 // pred_check_branch
      %302 = sbr.rel (%p300) target = $region52
    $region51: #{tpu_custom_call.1} parent=5 // pred_region
      // Predicated region
      $region53: #{tpu_custom_call.1} parent=51 // pred_check
        %p303 = pneg %p36
      $region54: #{tpu_custom_call.1} parent=51 // pred_check_branch
        %305 = sbr.rel (%p303) target = $region56
      $region55: #{tpu_custom_call.1} parent=51 // pred_region
        %p306 = scmp.lt.s32.totalorder %s16, 1
        %s307 = scalar_select %p306, %s16, 1
        %s308 = smul.addr %s307, 32
        %s309 = smul.addr %s308, 8
        %s310 = scalar_lea.vmem %s0, %s309
      $region56: #{tpu_custom_call.1} parent=51 // pred_fallthru
        _
    $region52: #{tpu_custom_call.1} parent=5 // pred_fallthru
      _
    %p311 = scmp.le.s32.totalorder 1, %s16
    %p312 = scmp.lt.s32.totalorder %s16, 3
    %p313 = pnand %p311, %p312
    %p314 = pneg %p313
    // Predicated region
    $region57: #{tpu_custom_call.1} parent=5 // pred_check
      _
    $region58: #{tpu_custom_call.1} parent=5 // pred_check_branch
      %316 = sbr.rel (%p313) target = $region60
    $region59: #{tpu_custom_call.1} parent=5 // pred_region
      %s317 = ssub.s32 %s16, 1
      %p318 = scmp.lt.s32.totalorder %s21, 1
      %s319 = scalar_select %p318, %s21, 1
      %s320 = smul.addr %s319, 32
      %s321 = smul.addr %s320, 8
      %s322 = scalar_lea.vmem %s0, %s321
      %p323 = pneg %p42
      %p324 = pneg %p39
      %p325 = pneg %p63
      %p326 = pneg %p60
      %p327 = pneg %p84
      %p328 = pneg %p81
      %p329 = pneg %p105
      %p330 = pneg %p102
      %p331 = pneg %p126
      %p332 = pneg %p123
      %p333 = pneg %p147
      %p334 = pneg %p144
      %p335 = pneg %p168
      %p336 = pneg %p165
      %p337 = pneg %p189
      %p338 = pneg %p186
      %p339 = pneg %p210
      %p340 = pneg %p207
      %p341 = pneg %p231
      %p342 = pneg %p228
      %p343 = pneg %p257
      %p344 = pneg %p254
      %p345 = scmp.lt.s32.totalorder %s21, 1
      %s346 = scalar_select %p345, %s21, 1
      %s347 = smul.addr %s346, 32
      %s348 = smul.addr %s347, 8
      %s349 = scalar_lea.vmem %s10, %s348
      %p350 = scmp.lt.s32.totalorder %s21, 1
      %s351 = scalar_select %p350, %s21, 1
      %s352 = smul.addr %s351, 32
      %s353 = smul.addr %s352, 8
      %s354 = scalar_lea.vmem %s0, %s353
      %p355 = scmp.lt.s32.totalorder %s21, 1
      %s356 = scalar_select %p355, %s21, 1
      %s357 = smul.addr %s356, 32
      %s358 = smul.addr %s357, 8
      %s359 = scalar_lea.vmem %s10, %s358
      %v361 = vld [vmem:[%s354] sm:$0xff]
      %v362 = vld [vmem:[%s354 + $0x8] sm:$0xff]
      %v363 = vld [vmem:[%s354 + $0x10] sm:$0xff]
      %v364 = vld [vmem:[%s354 + $0x18] sm:$0xff]
      %v365 = vld [vmem:[%s354 + $0x20] sm:$0xff]
      %v366 = vld [vmem:[%s354 + $0x28] sm:$0xff]
      %v367 = vld [vmem:[%s354 + $0x30] sm:$0xff]
      %v368 = vld [vmem:[%s354 + $0x38] sm:$0xff]
      %v369 = vld [vmem:[%s354 + $0x40] sm:$0xff]
      %v370 = vld [vmem:[%s354 + $0x48] sm:$0xff]
      %v371 = vld [vmem:[%s354 + $0x50] sm:$0xff]
      %v372 = vld [vmem:[%s354 + $0x58] sm:$0xff]
      %v373 = vld [vmem:[%s354 + $0x60] sm:$0xff]
      %v374 = vld [vmem:[%s354 + $0x68] sm:$0xff]
      %v375 = vld [vmem:[%s354 + $0x70] sm:$0xff]
      %v376 = vld [vmem:[%s354 + $0x78] sm:$0xff]
      %v377 = vld [vmem:[%s354 + $0x80] sm:$0xff]
      %v378 = vld [vmem:[%s354 + $0x88] sm:$0xff]
      %v379 = vld [vmem:[%s354 + $0x90] sm:$0xff]
      %v380 = vld [vmem:[%s354 + $0x98] sm:$0xff]
      %v381 = vld [vmem:[%s354 + $0xa0] sm:$0xff]
      %v382 = vld [vmem:[%s354 + $0xa8] sm:$0xff]
      %v383 = vld [vmem:[%s354 + $0xb0] sm:$0xff]
      %v384 = vld [vmem:[%s354 + $0xb8] sm:$0xff]
      %v385 = vld [vmem:[%s354 + $0xc0] sm:$0xff]
      %v386 = vld [vmem:[%s354 + $0xc8] sm:$0xff]
      %v387 = vld [vmem:[%s354 + $0xd0] sm:$0xff]
      %v388 = vld [vmem:[%s354 + $0xd8] sm:$0xff]
      %v389 = vld [vmem:[%s354 + $0xe0] sm:$0xff]
      %v390 = vld [vmem:[%s354 + $0xe8] sm:$0xff]
      %v391 = vld [vmem:[%s354 + $0xf0] sm:$0xff]
      %v392 = vld [vmem:[%s354 + $0xf8] sm:$0xff]
      %vm393 = vcmask 27648
      %394 = vst.msk [vmem:[#allocation2] sm:$0xf] %vm393, 0
      %395 = vst.msk [vmem:[#allocation2 + $0x4] sm:$0xf] %vm393, 0
      %vm396 = vcmask 24576
      %397 = vst.msk [vmem:[#allocation2 + $0x8] sm:$0x1] %vm396, 0
      %s398 = scalar_lea.vmem [#allocation2], 204
      %399 = vst.msk [vmem:[%s398] sm:$0xf] %vm393, 0
      %400 = vst.msk [vmem:[%s398 + $0x4] sm:$0xf] %vm393, 0
      %401 = vst.msk [vmem:[%s398 + $0x8] sm:$0x1] %vm396, 0
      %v402 = vpack.c.bf16 %v361, %v361
      %v403 = vpack.c.bf16 %v362, %v362
      %v404 = vpack.c.bf16 %v363, %v363
      %v405 = vpack.c.bf16 %v364, %v364
      %v406 = vpack.c.bf16 %v365, %v365
      %v407 = vpack.c.bf16 %v366, %v366
      %v408 = vpack.c.bf16 %v367, %v367
      %v409 = vpack.c.bf16 %v368, %v368
      %v410 = vpack.c.bf16 %v369, %v369
      %v411 = vpack.c.bf16 %v370, %v370
      %v412 = vpack.c.bf16 %v371, %v371
      %v413 = vpack.c.bf16 %v372, %v372
      %v414 = vpack.c.bf16 %v373, %v373
      %v415 = vpack.c.bf16 %v374, %v374
      %v416 = vpack.c.bf16 %v375, %v375
      %v417 = vpack.c.bf16 %v376, %v376
      %v418 = vpack.c.bf16 %v377, %v377
      %v419 = vpack.c.bf16 %v378, %v378
      %v420 = vpack.c.bf16 %v379, %v379
      %v421 = vpack.c.bf16 %v380, %v380
      %v422 = vpack.c.bf16 %v381, %v381
      %v423 = vpack.c.bf16 %v382, %v382
      %v424 = vpack.c.bf16 %v383, %v383
      %v425 = vpack.c.bf16 %v384, %v384
      %v426 = vpack.c.bf16 %v385, %v385
      %v427 = vpack.c.bf16 %v386, %v386
      %v428 = vpack.c.bf16 %v387, %v387
      %v429 = vpack.c.bf16 %v388, %v388
      %v430 = vpack.c.bf16 %v389, %v389
      %v431 = vpack.c.bf16 %v390, %v390
      %v432 = vpack.c.bf16 %v391, %v391
      %v433 = vpack.c.bf16 %v392, %v392
      %v466 = vunpack.c.l.b16 %v402
      %v467 = vunpack.c.l.b16 %v403
      %v468 = vunpack.c.l.b16 %v404
      %v469 = vunpack.c.l.b16 %v405
      %v470 = vunpack.c.l.b16 %v406
      %v471 = vunpack.c.l.b16 %v407
      %v472 = vunpack.c.l.b16 %v408
      %v473 = vunpack.c.l.b16 %v409
      %v474 = vunpack.c.l.b16 %v410
      %v475 = vunpack.c.l.b16 %v411
      %v476 = vunpack.c.l.b16 %v412
      %v477 = vunpack.c.l.b16 %v413
      %v478 = vunpack.c.l.b16 %v414
      %v479 = vunpack.c.l.b16 %v415
      %v480 = vunpack.c.l.b16 %v416
      %v481 = vunpack.c.l.b16 %v417
      %v482 = vunpack.c.l.b16 %v418
      %v483 = vunpack.c.l.b16 %v419
      %v484 = vunpack.c.l.b16 %v420
      %v485 = vunpack.c.l.b16 %v421
      %v486 = vunpack.c.l.b16 %v422
      %v487 = vunpack.c.l.b16 %v423
      %v488 = vunpack.c.l.b16 %v424
      %v489 = vunpack.c.l.b16 %v425
      %v490 = vunpack.c.l.b16 %v426
      %v491 = vunpack.c.l.b16 %v427
      %v492 = vunpack.c.l.b16 %v428
      %v493 = vunpack.c.l.b16 %v429
      %v494 = vunpack.c.l.b16 %v430
      %v495 = vunpack.c.l.b16 %v431
      %v496 = vunpack.c.l.b16 %v432
      %v497 = vunpack.c.l.b16 %v433
      %v498 = vpack.c.b16 %v467, %v466
      %v499 = vpack.c.b16 %v469, %v468
      %v500 = vpack.c.b16 %v471, %v470
      %v501 = vpack.c.b16 %v473, %v472
      %v502 = vpack.c.b16 %v475, %v474
      %v503 = vpack.c.b16 %v477, %v476
      %v504 = vpack.c.b16 %v479, %v478
      %v505 = vpack.c.b16 %v481, %v480
      %v506 = vpack.c.b16 %v483, %v482
      %v507 = vpack.c.b16 %v485, %v484
      %v508 = vpack.c.b16 %v487, %v486
      %v509 = vpack.c.b16 %v489, %v488
      %v510 = vpack.c.b16 %v491, %v490
      %v511 = vpack.c.b16 %v493, %v492
      %v512 = vpack.c.b16 %v495, %v494
      %v513 = vpack.c.b16 %v497, %v496
      %v515 = vshrl.u32 %v498, 16
      %v517 = vrot.slane %v515, 7
      %v518 = vshll.u32 %v498, 16
      %v520 = vor.u32 %v517, %v518
      %v522 = vshrl.u32 %v499, 16
      %v524 = vrot.slane %v522, 7
      %v525 = vshll.u32 %v499, 16
      %v527 = vor.u32 %v524, %v525
      %v529 = vshrl.u32 %v500, 16
      %v531 = vrot.slane %v529, 7
      %v532 = vshll.u32 %v500, 16
      %v534 = vor.u32 %v531, %v532
      %v536 = vshrl.u32 %v501, 16
      %v538 = vrot.slane %v536, 7
      %v539 = vshll.u32 %v501, 16
      %v541 = vor.u32 %v538, %v539
      %v543 = vshrl.u32 %v502, 16
      %v545 = vrot.slane %v543, 7
      %v546 = vshll.u32 %v502, 16
      %v548 = vor.u32 %v545, %v546
      %v550 = vshrl.u32 %v503, 16
      %v552 = vrot.slane %v550, 7
      %v553 = vshll.u32 %v503, 16
      %v555 = vor.u32 %v552, %v553
      %v557 = vshrl.u32 %v504, 16
      %v559 = vrot.slane %v557, 7
      %v560 = vshll.u32 %v504, 16
      %v562 = vor.u32 %v559, %v560
      %v564 = vshrl.u32 %v505, 16
      %v566 = vrot.slane %v564, 7
      %v567 = vshll.u32 %v505, 16
      %v569 = vor.u32 %v566, %v567
      %v571 = vshrl.u32 %v506, 16
      %v573 = vrot.slane %v571, 7
      %v574 = vshll.u32 %v506, 16
      %v576 = vor.u32 %v573, %v574
      %v578 = vshrl.u32 %v507, 16
      %v580 = vrot.slane %v578, 7
      %v581 = vshll.u32 %v507, 16
      %v583 = vor.u32 %v580, %v581
      %v585 = vshrl.u32 %v508, 16
      %v587 = vrot.slane %v585, 7
      %v588 = vshll.u32 %v508, 16
      %v590 = vor.u32 %v587, %v588
      %v592 = vshrl.u32 %v509, 16
      %v594 = vrot.slane %v592, 7
      %v595 = vshll.u32 %v509, 16
      %v597 = vor.u32 %v594, %v595
      %v599 = vshrl.u32 %v510, 16
      %v601 = vrot.slane %v599, 7
      %v602 = vshll.u32 %v510, 16
      %v604 = vor.u32 %v601, %v602
      %v606 = vshrl.u32 %v511, 16
      %v608 = vrot.slane %v606, 7
      %v609 = vshll.u32 %v511, 16
      %v611 = vor.u32 %v608, %v609
      %v613 = vshrl.u32 %v512, 16
      %v615 = vrot.slane %v613, 7
      %v616 = vshll.u32 %v512, 16
      %v618 = vor.u32 %v615, %v616
      %v620 = vshrl.u32 %v513, 16
      %v622 = vrot.slane %v620, 7
      %v623 = vshll.u32 %v513, 16
      %v625 = vor.u32 %v622, %v623
      %vm658 = vcmask 1040384
      %vm659 = vsmask.f32 256
      %vm660 = vmand %vm658, %vm659
      %v661 = vsel %vm660, 0, %v520
      %v662 = vsel %vm660, 0, %v527
      %v663 = vsel %vm660, 0, %v534
      %v664 = vsel %vm660, 0, %v541
      %v665 = vsel %vm660, 0, %v548
      %v666 = vsel %vm660, 0, %v555
      %v667 = vsel %vm660, 0, %v562
      %v668 = vsel %vm660, 0, %v569
      %v669 = vsel %vm660, 0, %v576
      %v670 = vsel %vm660, 0, %v583
      %v671 = vsel %vm660, 0, %v590
      %v672 = vsel %vm660, 0, %v597
      %v673 = vsel %vm660, 0, %v604
      %v674 = vsel %vm660, 0, %v611
      %v675 = vsel %vm660, 0, %v618
      %v676 = vsel %vm660, 0, %v625
      %v677 = vsel %vm660, %v517, 0
      %v678 = vsel %vm660, %v524, 0
      %v679 = vsel %vm660, %v531, 0
      %v680 = vsel %vm660, %v538, 0
      %v681 = vsel %vm660, %v545, 0
      %v682 = vsel %vm660, %v552, 0
      %v683 = vsel %vm660, %v559, 0
      %v684 = vsel %vm660, %v566, 0
      %v685 = vsel %vm660, %v573, 0
      %v686 = vsel %vm660, %v580, 0
      %v687 = vsel %vm660, %v587, 0
      %v688 = vsel %vm660, %v594, 0
      %v689 = vsel %vm660, %v601, 0
      %v690 = vsel %vm660, %v608, 0
      %v691 = vsel %vm660, %v615, 0
      %v692 = vsel %vm660, %v622, 0
      %v725 = vunpack.c.l.b16 %v661
      %v726 = vunpack.c.h.b16 %v661
      %v727 = vunpack.c.l.b16 %v677
      %v728 = vunpack.c.l.b16 %v662
      %v729 = vunpack.c.h.b16 %v662
      %v730 = vunpack.c.l.b16 %v678
      %v731 = vunpack.c.l.b16 %v663
      %v732 = vunpack.c.h.b16 %v663
      %v733 = vunpack.c.l.b16 %v679
      %v734 = vunpack.c.l.b16 %v664
      %v735 = vunpack.c.h.b16 %v664
      %v736 = vunpack.c.l.b16 %v680
      %v737 = vunpack.c.l.b16 %v665
      %v738 = vunpack.c.h.b16 %v665
      %v739 = vunpack.c.l.b16 %v681
      %v740 = vunpack.c.l.b16 %v666
      %v741 = vunpack.c.h.b16 %v666
      %v742 = vunpack.c.l.b16 %v682
      %v743 = vunpack.c.l.b16 %v667
      %v744 = vunpack.c.h.b16 %v667
      %v745 = vunpack.c.l.b16 %v683
      %v746 = vunpack.c.l.b16 %v668
      %v747 = vunpack.c.h.b16 %v668
      %v748 = vunpack.c.l.b16 %v684
      %v749 = vunpack.c.l.b16 %v669
      %v750 = vunpack.c.h.b16 %v669
      %v751 = vunpack.c.l.b16 %v685
      %v752 = vunpack.c.l.b16 %v670
      %v753 = vunpack.c.h.b16 %v670
      %v754 = vunpack.c.l.b16 %v686
      %v755 = vunpack.c.l.b16 %v671
      %v756 = vunpack.c.h.b16 %v671
      %v757 = vunpack.c.l.b16 %v687
      %v758 = vunpack.c.l.b16 %v672
      %v759 = vunpack.c.h.b16 %v672
      %v760 = vunpack.c.l.b16 %v688
      %v761 = vunpack.c.l.b16 %v673
      %v762 = vunpack.c.h.b16 %v673
      %v763 = vunpack.c.l.b16 %v689
      %v764 = vunpack.c.l.b16 %v674
      %v765 = vunpack.c.h.b16 %v674
      %v766 = vunpack.c.l.b16 %v690
      %v767 = vunpack.c.l.b16 %v675
      %v768 = vunpack.c.h.b16 %v675
      %v769 = vunpack.c.l.b16 %v691
      %v770 = vunpack.c.l.b16 %v676
      %v771 = vunpack.c.h.b16 %v676
      %v772 = vunpack.c.l.b16 %v692
      %v773 = vpack.c.b16 %v725, %v725
      %v774 = vpack.c.b16 %v726, %v726
      %v775 = vpack.c.b16 %v727, %v727
      %v776 = vpack.c.b16 %v728, %v728
      %v777 = vpack.c.b16 %v729, %v729
      %v778 = vpack.c.b16 %v730, %v730
      %v779 = vpack.c.b16 %v731, %v731
      %v780 = vpack.c.b16 %v732, %v732
      %v781 = vpack.c.b16 %v733, %v733
      %v782 = vpack.c.b16 %v734, %v734
      %v783 = vpack.c.b16 %v735, %v735
      %v784 = vpack.c.b16 %v736, %v736
      %v785 = vpack.c.b16 %v737, %v737
      %v786 = vpack.c.b16 %v738, %v738
      %v787 = vpack.c.b16 %v739, %v739
      %v788 = vpack.c.b16 %v740, %v740
      %v789 = vpack.c.b16 %v741, %v741
      %v790 = vpack.c.b16 %v742, %v742
      %v791 = vpack.c.b16 %v743, %v743
      %v792 = vpack.c.b16 %v744, %v744
      %v793 = vpack.c.b16 %v745, %v745
      %v794 = vpack.c.b16 %v746, %v746
      %v795 = vpack.c.b16 %v747, %v747
      %v796 = vpack.c.b16 %v748, %v748
      %v797 = vpack.c.b16 %v749, %v749
      %v798 = vpack.c.b16 %v750, %v750
      %v799 = vpack.c.b16 %v751, %v751
      %v800 = vpack.c.b16 %v752, %v752
      %v801 = vpack.c.b16 %v753, %v753
      %v802 = vpack.c.b16 %v754, %v754
      %v803 = vpack.c.b16 %v755, %v755
      %v804 = vpack.c.b16 %v756, %v756
      %v805 = vpack.c.b16 %v757, %v757
      %v806 = vpack.c.b16 %v758, %v758
      %v807 = vpack.c.b16 %v759, %v759
      %v808 = vpack.c.b16 %v760, %v760
      %v809 = vpack.c.b16 %v761, %v761
      %v810 = vpack.c.b16 %v762, %v762
      %v811 = vpack.c.b16 %v763, %v763
      %v812 = vpack.c.b16 %v764, %v764
      %v813 = vpack.c.b16 %v765, %v765
      %v814 = vpack.c.b16 %v766, %v766
      %v815 = vpack.c.b16 %v767, %v767
      %v816 = vpack.c.b16 %v768, %v768
      %v817 = vpack.c.b16 %v769, %v769
      %v818 = vpack.c.b16 %v770, %v770
      %v819 = vpack.c.b16 %v771, %v771
      %v820 = vpack.c.b16 %v772, %v772
      %s869 = scalar_lea.vmem [#allocation2], 12
      %870 = vst.msk [vmem:[%s869] sm:$0xf] %vm393, %v773
      %871 = vst.msk [vmem:[%s869 + $0x4] sm:$0xf] %vm393, %v774
      %872 = vst.msk [vmem:[%s869 + $0x8] sm:$0x1] %vm396, %v775
      %873 = vst.msk [vmem:[%s869 + $0xc] sm:$0xf] %vm393, %v776
      %874 = vst.msk [vmem:[%s869 + $0x10] sm:$0xf] %vm393, %v777
      %875 = vst.msk [vmem:[%s869 + $0x14] sm:$0x1] %vm396, %v778
      %876 = vst.msk [vmem:[%s869 + $0x18] sm:$0xf] %vm393, %v779
      %877 = vst.msk [vmem:[%s869 + $0x1c] sm:$0xf] %vm393, %v780
      %878 = vst.msk [vmem:[%s869 + $0x20] sm:$0x1] %vm396, %v781
      %879 = vst.msk [vmem:[%s869 + $0x24] sm:$0xf] %vm393, %v782
      %880 = vst.msk [vmem:[%s869 + $0x28] sm:$0xf] %vm393, %v783
      %881 = vst.msk [vmem:[%s869 + $0x2c] sm:$0x1] %vm396, %v784
      %882 = vst.msk [vmem:[%s869 + $0x30] sm:$0xf] %vm393, %v785
      %883 = vst.msk [vmem:[%s869 + $0x34] sm:$0xf] %vm393, %v786
      %884 = vst.msk [vmem:[%s869 + $0x38] sm:$0x1] %vm396, %v787
      %885 = vst.msk [vmem:[%s869 + $0x3c] sm:$0xf] %vm393, %v788
      %886 = vst.msk [vmem:[%s869 + $0x40] sm:$0xf] %vm393, %v789
      %887 = vst.msk [vmem:[%s869 + $0x44] sm:$0x1] %vm396, %v790
      %888 = vst.msk [vmem:[%s869 + $0x48] sm:$0xf] %vm393, %v791
      %889 = vst.msk [vmem:[%s869 + $0x4c] sm:$0xf] %vm393, %v792
      %890 = vst.msk [vmem:[%s869 + $0x50] sm:$0x1] %vm396, %v793
      %891 = vst.msk [vmem:[%s869 + $0x54] sm:$0xf] %vm393, %v794
      %892 = vst.msk [vmem:[%s869 + $0x58] sm:$0xf] %vm393, %v795
      %893 = vst.msk [vmem:[%s869 + $0x5c] sm:$0x1] %vm396, %v796
      %894 = vst.msk [vmem:[%s869 + $0x60] sm:$0xf] %vm393, %v797
      %895 = vst.msk [vmem:[%s869 + $0x64] sm:$0xf] %vm393, %v798
      %896 = vst.msk [vmem:[%s869 + $0x68] sm:$0x1] %vm396, %v799
      %897 = vst.msk [vmem:[%s869 + $0x6c] sm:$0xf] %vm393, %v800
      %898 = vst.msk [vmem:[%s869 + $0x70] sm:$0xf] %vm393, %v801
      %899 = vst.msk [vmem:[%s869 + $0x74] sm:$0x1] %vm396, %v802
      %900 = vst.msk [vmem:[%s869 + $0x78] sm:$0xf] %vm393, %v803
      %901 = vst.msk [vmem:[%s869 + $0x7c] sm:$0xf] %vm393, %v804
      %902 = vst.msk [vmem:[%s869 + $0x80] sm:$0x1] %vm396, %v805
      %903 = vst.msk [vmem:[%s869 + $0x84] sm:$0xf] %vm393, %v806
      %904 = vst.msk [vmem:[%s869 + $0x88] sm:$0xf] %vm393, %v807
      %905 = vst.msk [vmem:[%s869 + $0x8c] sm:$0x1] %vm396, %v808
      %906 = vst.msk [vmem:[%s869 + $0x90] sm:$0xf] %vm393, %v809
      %907 = vst.msk [vmem:[%s869 + $0x94] sm:$0xf] %vm393, %v810
      %908 = vst.msk [vmem:[%s869 + $0x98] sm:$0x1] %vm396, %v811
      %909 = vst.msk [vmem:[%s869 + $0x9c] sm:$0xf] %vm393, %v812
      %910 = vst.msk [vmem:[%s869 + $0xa0] sm:$0xf] %vm393, %v813
      %911 = vst.msk [vmem:[%s869 + $0xa4] sm:$0x1] %vm396, %v814
      %912 = vst.msk [vmem:[%s869 + $0xa8] sm:$0xf] %vm393, %v815
      %913 = vst.msk [vmem:[%s869 + $0xac] sm:$0xf] %vm393, %v816
      %914 = vst.msk [vmem:[%s869 + $0xb0] sm:$0x1] %vm396, %v817
      %915 = vst.msk [vmem:[%s869 + $0xb4] sm:$0xf] %vm393, %v818
      %916 = vst.msk [vmem:[%s869 + $0xb8] sm:$0xf] %vm393, %v819
      %917 = vst.msk [vmem:[%s869 + $0xbc] sm:$0x1] %vm396, %v820
      %v918 = vld [vmem:[#allocation2] sm:$0xf]
      %v919 = vld [vmem:[#allocation2 + $0x4] sm:$0xf]
      %v920 = vld [vmem:[#allocation2 + $0x8] sm:$0x1]
      %v921 = vld [vmem:[#allocation2 + $0xc] sm:$0xf]
      %v922 = vld [vmem:[#allocation2 + $0x10] sm:$0xf]
      %v923 = vld [vmem:[#allocation2 + $0x14] sm:$0x1]
      %v924 = vld [vmem:[#allocation2 + $0x18] sm:$0xf]
      %v925 = vld [vmem:[#allocation2 + $0x1c] sm:$0xf]
      %v926 = vld [vmem:[#allocation2 + $0x20] sm:$0x1]
      %v927 = vld [vmem:[#allocation2 + $0x24] sm:$0xf]
      %v928 = vld [vmem:[#allocation2 + $0x28] sm:$0xf]
      %v929 = vld [vmem:[#allocation2 + $0x2c] sm:$0x1]
      %v930 = vld [vmem:[#allocation2 + $0x30] sm:$0xf]
      %v931 = vld [vmem:[#allocation2 + $0x34] sm:$0xf]
      %v932 = vld [vmem:[#allocation2 + $0x38] sm:$0x1]
      %v933 = vld [vmem:[#allocation2 + $0x3c] sm:$0xf]
      %v934 = vld [vmem:[#allocation2 + $0x40] sm:$0xf]
      %v935 = vld [vmem:[#allocation2 + $0x44] sm:$0x1]
      %v936 = vld [vmem:[#allocation2 + $0x48] sm:$0xf]
      %v937 = vld [vmem:[#allocation2 + $0x4c] sm:$0xf]
      %v938 = vld [vmem:[#allocation2 + $0x50] sm:$0x1]
      %v939 = vld [vmem:[#allocation2 + $0x54] sm:$0xf]
      %v940 = vld [vmem:[#allocation2 + $0x58] sm:$0xf]
      %v941 = vld [vmem:[#allocation2 + $0x5c] sm:$0x1]
      %v942 = vld [vmem:[#allocation2 + $0x60] sm:$0xf]
      %v943 = vld [vmem:[#allocation2 + $0x64] sm:$0xf]
      %v944 = vld [vmem:[#allocation2 + $0x68] sm:$0x1]
      %v945 = vld [vmem:[#allocation2 + $0x6c] sm:$0xf]
      %v946 = vld [vmem:[#allocation2 + $0x70] sm:$0xf]
      %v947 = vld [vmem:[#allocation2 + $0x74] sm:$0x1]
      %v948 = vld [vmem:[#allocation2 + $0x78] sm:$0xf]
      %v949 = vld [vmem:[#allocation2 + $0x7c] sm:$0xf]
      %v950 = vld [vmem:[#allocation2 + $0x80] sm:$0x1]
      %v951 = vld [vmem:[#allocation2 + $0x84] sm:$0xf]
      %v952 = vld [vmem:[#allocation2 + $0x88] sm:$0xf]
      %v953 = vld [vmem:[#allocation2 + $0x8c] sm:$0x1]
      %v954 = vld [vmem:[#allocation2 + $0x90] sm:$0xf]
      %v955 = vld [vmem:[#allocation2 + $0x94] sm:$0xf]
      %v956 = vld [vmem:[#allocation2 + $0x98] sm:$0x1]
      %v957 = vld [vmem:[#allocation2 + $0x9c] sm:$0xf]
      %v958 = vld [vmem:[#allocation2 + $0xa0] sm:$0xf]
      %v959 = vld [vmem:[#allocation2 + $0xa4] sm:$0x1]
      %v960 = vld [vmem:[#allocation2 + $0xa8] sm:$0xf]
      %v961 = vld [vmem:[#allocation2 + $0xac] sm:$0xf]
      %v962 = vld [vmem:[#allocation2 + $0xb0] sm:$0x1]
      %v963 = vld [vmem:[#allocation2 + $0xb4] sm:$0xf]
      %v964 = vld [vmem:[#allocation2 + $0xb8] sm:$0xf]
      %v965 = vld [vmem:[#allocation2 + $0xbc] sm:$0x1]
      %v966 = vld [vmem:[#allocation2 + $0xc0] sm:$0xf]
      %v967 = vld [vmem:[#allocation2 + $0xc4] sm:$0xf]
      %v968 = vld [vmem:[#allocation2 + $0xc8] sm:$0x1]
      %v969 = vld [vmem:[#allocation2 + $0xcc] sm:$0xf]
      %v970 = vld [vmem:[#allocation2 + $0xd0] sm:$0xf]
      %v971 = vld [vmem:[#allocation2 + $0xd4] sm:$0x1]
      %vm972 = vsmask.f32 3328
      %vm973 = vsmask.f32 7440
      %vm974 = vmor %vm972, %vm973
      %v976 = vshrl.u32 %v918, 16
      %v978 = vrot.slane %v976, 4
      %v979 = vshll.u32 %v918, 16
      %v981 = vrot.slane %v979, 5
      %v982 = vor.u32 %v978, %v981
      %v983 = vrot.slane %v982, 4
      %v985 = vshll.u32 %v919, 16
      %v987 = vrot.slane %v985, 5
      %v988 = vsel %vm974, %v983, %v987
      %v989 = vshrl.u32 %v919, 16
      %v991 = vrot.slane %v989, 4
      %v992 = vor.u32 %v991, %v987
      %v993 = vrot.slane %v992, 4
      %v995 = vshll.u32 %v920, 16
      %v997 = vrot.slane %v995, 5
      %v998 = vsel %vm974, %v993, %v997
      %v1000 = vshrl.u32 %v921, 16
      %v1002 = vrot.slane %v1000, 4
      %v1003 = vshll.u32 %v921, 16
      %v1005 = vrot.slane %v1003, 5
      %v1006 = vor.u32 %v1002, %v1005
      %v1007 = vrot.slane %v1006, 4
      %v1009 = vshll.u32 %v922, 16
      %v1011 = vrot.slane %v1009, 5
      %v1012 = vsel %vm974, %v1007, %v1011
      %v1013 = vshrl.u32 %v922, 16
      %v1015 = vrot.slane %v1013, 4
      %v1016 = vor.u32 %v1015, %v1011
      %v1017 = vrot.slane %v1016, 4
      %v1019 = vshll.u32 %v923, 16
      %v1021 = vrot.slane %v1019, 5
      %v1022 = vsel %vm974, %v1017, %v1021
      %v1024 = vshrl.u32 %v924, 16
      %v1026 = vrot.slane %v1024, 4
      %v1027 = vshll.u32 %v924, 16
      %v1029 = vrot.slane %v1027, 5
      %v1030 = vor.u32 %v1026, %v1029
      %v1031 = vrot.slane %v1030, 4
      %v1033 = vshll.u32 %v925, 16
      %v1035 = vrot.slane %v1033, 5
      %v1036 = vsel %vm974, %v1031, %v1035
      %v1037 = vshrl.u32 %v925, 16
      %v1039 = vrot.slane %v1037, 4
      %v1040 = vor.u32 %v1039, %v1035
      %v1041 = vrot.slane %v1040, 4
      %v1043 = vshll.u32 %v926, 16
      %v1045 = vrot.slane %v1043, 5
      %v1046 = vsel %vm974, %v1041, %v1045
      %v1048 = vshrl.u32 %v927, 16
      %v1050 = vrot.slane %v1048, 4
      %v1051 = vshll.u32 %v927, 16
      %v1053 = vrot.slane %v1051, 5
      %v1054 = vor.u32 %v1050, %v1053
      %v1055 = vrot.slane %v1054, 4
      %v1057 = vshll.u32 %v928, 16
      %v1059 = vrot.slane %v1057, 5
      %v1060 = vsel %vm974, %v1055, %v1059
      %v1061 = vshrl.u32 %v928, 16
      %v1063 = vrot.slane %v1061, 4
      %v1064 = vor.u32 %v1063, %v1059
      %v1065 = vrot.slane %v1064, 4
      %v1067 = vshll.u32 %v929, 16
      %v1069 = vrot.slane %v1067, 5
      %v1070 = vsel %vm974, %v1065, %v1069
      %v1072 = vshrl.u32 %v930, 16
      %v1074 = vrot.slane %v1072, 4
      %v1075 = vshll.u32 %v930, 16
      %v1077 = vrot.slane %v1075, 5
      %v1078 = vor.u32 %v1074, %v1077
      %v1079 = vrot.slane %v1078, 4
      %v1081 = vshll.u32 %v931, 16
      %v1083 = vrot.slane %v1081, 5
      %v1084 = vsel %vm974, %v1079, %v1083
      %v1085 = vshrl.u32 %v931, 16
      %v1087 = vrot.slane %v1085, 4
      %v1088 = vor.u32 %v1087, %v1083
      %v1089 = vrot.slane %v1088, 4
      %v1091 = vshll.u32 %v932, 16
      %v1093 = vrot.slane %v1091, 5
      %v1094 = vsel %vm974, %v1089, %v1093
      %v1096 = vshrl.u32 %v933, 16
      %v1098 = vrot.slane %v1096, 4
      %v1099 = vshll.u32 %v933, 16
      %v1101 = vrot.slane %v1099, 5
      %v1102 = vor.u32 %v1098, %v1101
      %v1103 = vrot.slane %v1102, 4
      %v1105 = vshll.u32 %v934, 16
      %v1107 = vrot.slane %v1105, 5
      %v1108 = vsel %vm974, %v1103, %v1107
      %v1109 = vshrl.u32 %v934, 16
      %v1111 = vrot.slane %v1109, 4
      %v1112 = vor.u32 %v1111, %v1107
      %v1113 = vrot.slane %v1112, 4
      %v1115 = vshll.u32 %v935, 16
      %v1117 = vrot.slane %v1115, 5
      %v1118 = vsel %vm974, %v1113, %v1117
      %v1120 = vshrl.u32 %v936, 16
      %v1122 = vrot.slane %v1120, 4
      %v1123 = vshll.u32 %v936, 16
      %v1125 = vrot.slane %v1123, 5
      %v1126 = vor.u32 %v1122, %v1125
      %v1127 = vrot.slane %v1126, 4
      %v1129 = vshll.u32 %v937, 16
      %v1131 = vrot.slane %v1129, 5
      %v1132 = vsel %vm974, %v1127, %v1131
      %v1133 = vshrl.u32 %v937, 16
      %v1135 = vrot.slane %v1133, 4
      %v1136 = vor.u32 %v1135, %v1131
      %v1137 = vrot.slane %v1136, 4
      %v1139 = vshll.u32 %v938, 16
      %v1141 = vrot.slane %v1139, 5
      %v1142 = vsel %vm974, %v1137, %v1141
      %v1144 = vshrl.u32 %v939, 16
      %v1146 = vrot.slane %v1144, 4
      %v1147 = vshll.u32 %v939, 16
      %v1149 = vrot.slane %v1147, 5
      %v1150 = vor.u32 %v1146, %v1149
      %v1151 = vrot.slane %v1150, 4
      %v1153 = vshll.u32 %v940, 16
      %v1155 = vrot.slane %v1153, 5
      %v1156 = vsel %vm974, %v1151, %v1155
      %v1157 = vshrl.u32 %v940, 16
      %v1159 = vrot.slane %v1157, 4
      %v1160 = vor.u32 %v1159, %v1155
      %v1161 = vrot.slane %v1160, 4
      %v1163 = vshll.u32 %v941, 16
      %v1165 = vrot.slane %v1163, 5
      %v1166 = vsel %vm974, %v1161, %v1165
      %v1168 = vshrl.u32 %v942, 16
      %v1170 = vrot.slane %v1168, 4
      %v1171 = vshll.u32 %v942, 16
      %v1173 = vrot.slane %v1171, 5
      %v1174 = vor.u32 %v1170, %v1173
      %v1175 = vrot.slane %v1174, 4
      %v1177 = vshll.u32 %v943, 16
      %v1179 = vrot.slane %v1177, 5
      %v1180 = vsel %vm974, %v1175, %v1179
      %v1181 = vshrl.u32 %v943, 16
      %v1183 = vrot.slane %v1181, 4
      %v1184 = vor.u32 %v1183, %v1179
      %v1185 = vrot.slane %v1184, 4
      %v1187 = vshll.u32 %v944, 16
      %v1189 = vrot.slane %v1187, 5
      %v1190 = vsel %vm974, %v1185, %v1189
      %v1192 = vshrl.u32 %v945, 16
      %v1194 = vrot.slane %v1192, 4
      %v1195 = vshll.u32 %v945, 16
      %v1197 = vrot.slane %v1195, 5
      %v1198 = vor.u32 %v1194, %v1197
      %v1199 = vrot.slane %v1198, 4
      %v1201 = vshll.u32 %v946, 16
      %v1203 = vrot.slane %v1201, 5
      %v1204 = vsel %vm974, %v1199, %v1203
      %v1205 = vshrl.u32 %v946, 16
      %v1207 = vrot.slane %v1205, 4
      %v1208 = vor.u32 %v1207, %v1203
      %v1209 = vrot.slane %v1208, 4
      %v1211 = vshll.u32 %v947, 16
      %v1213 = vrot.slane %v1211, 5
      %v1214 = vsel %vm974, %v1209, %v1213
      %v1216 = vshrl.u32 %v948, 16
      %v1218 = vrot.slane %v1216, 4
      %v1219 = vshll.u32 %v948, 16
      %v1221 = vrot.slane %v1219, 5
      %v1222 = vor.u32 %v1218, %v1221
      %v1223 = vrot.slane %v1222, 4
      %v1225 = vshll.u32 %v949, 16
      %v1227 = vrot.slane %v1225, 5
      %v1228 = vsel %vm974, %v1223, %v1227
      %v1229 = vshrl.u32 %v949, 16
      %v1231 = vrot.slane %v1229, 4
      %v1232 = vor.u32 %v1231, %v1227
      %v1233 = vrot.slane %v1232, 4
      %v1235 = vshll.u32 %v950, 16
      %v1237 = vrot.slane %v1235, 5
      %v1238 = vsel %vm974, %v1233, %v1237
      %v1240 = vshrl.u32 %v951, 16
      %v1242 = vrot.slane %v1240, 4
      %v1243 = vshll.u32 %v951, 16
      %v1245 = vrot.slane %v1243, 5
      %v1246 = vor.u32 %v1242, %v1245
      %v1247 = vrot.slane %v1246, 4
      %v1249 = vshll.u32 %v952, 16
      %v1251 = vrot.slane %v1249, 5
      %v1252 = vsel %vm974, %v1247, %v1251
      %v1253 = vshrl.u32 %v952, 16
      %v1255 = vrot.slane %v1253, 4
      %v1256 = vor.u32 %v1255, %v1251
      %v1257 = vrot.slane %v1256, 4
      %v1259 = vshll.u32 %v953, 16
      %v1261 = vrot.slane %v1259, 5
      %v1262 = vsel %vm974, %v1257, %v1261
      %v1264 = vshrl.u32 %v954, 16
      %v1266 = vrot.slane %v1264, 4
      %v1267 = vshll.u32 %v954, 16
      %v1269 = vrot.slane %v1267, 5
      %v1270 = vor.u32 %v1266, %v1269
      %v1271 = vrot.slane %v1270, 4
      %v1273 = vshll.u32 %v955, 16
      %v1275 = vrot.slane %v1273, 5
      %v1276 = vsel %vm974, %v1271, %v1275
      %v1277 = vshrl.u32 %v955, 16
      %v1279 = vrot.slane %v1277, 4
      %v1280 = vor.u32 %v1279, %v1275
      %v1281 = vrot.slane %v1280, 4
      %v1283 = vshll.u32 %v956, 16
      %v1285 = vrot.slane %v1283, 5
      %v1286 = vsel %vm974, %v1281, %v1285
      %v1288 = vshrl.u32 %v957, 16
      %v1290 = vrot.slane %v1288, 4
      %v1291 = vshll.u32 %v957, 16
      %v1293 = vrot.slane %v1291, 5
      %v1294 = vor.u32 %v1290, %v1293
      %v1295 = vrot.slane %v1294, 4
      %v1297 = vshll.u32 %v958, 16
      %v1299 = vrot.slane %v1297, 5
      %v1300 = vsel %vm974, %v1295, %v1299
      %v1301 = vshrl.u32 %v958, 16
      %v1303 = vrot.slane %v1301, 4
      %v1304 = vor.u32 %v1303, %v1299
      %v1305 = vrot.slane %v1304, 4
      %v1307 = vshll.u32 %v959, 16
      %v1309 = vrot.slane %v1307, 5
      %v1310 = vsel %vm974, %v1305, %v1309
      %v1312 = vshrl.u32 %v960, 16
      %v1314 = vrot.slane %v1312, 4
      %v1315 = vshll.u32 %v960, 16
      %v1317 = vrot.slane %v1315, 5
      %v1318 = vor.u32 %v1314, %v1317
      %v1319 = vrot.slane %v1318, 4
      %v1321 = vshll.u32 %v961, 16
      %v1323 = vrot.slane %v1321, 5
      %v1324 = vsel %vm974, %v1319, %v1323
      %v1325 = vshrl.u32 %v961, 16
      %v1327 = vrot.slane %v1325, 4
      %v1328 = vor.u32 %v1327, %v1323
      %v1329 = vrot.slane %v1328, 4
      %v1331 = vshll.u32 %v962, 16
      %v1333 = vrot.slane %v1331, 5
      %v1334 = vsel %vm974, %v1329, %v1333
      %v1336 = vshrl.u32 %v963, 16
      %v1338 = vrot.slane %v1336, 4
      %v1339 = vshll.u32 %v963, 16
      %v1341 = vrot.slane %v1339, 5
      %v1342 = vor.u32 %v1338, %v1341
      %v1343 = vrot.slane %v1342, 4
      %v1345 = vshll.u32 %v964, 16
      %v1347 = vrot.slane %v1345, 5
      %v1348 = vsel %vm974, %v1343, %v1347
      %v1349 = vshrl.u32 %v964, 16
      %v1351 = vrot.slane %v1349, 4
      %v1352 = vor.u32 %v1351, %v1347
      %v1353 = vrot.slane %v1352, 4
      %v1355 = vshll.u32 %v965, 16
      %v1357 = vrot.slane %v1355, 5
      %v1358 = vsel %vm974, %v1353, %v1357
      %vm1407 = vcmask 1042432
      %vm1408 = vcmask 1046532
      %vm1409 = vmor %vm1407, %vm1408
      %v1410 = vrot.slane %v918, 5
      %v1411 = vrot.slane %v1410, 4
      %v1412 = vrot.slane %v919, 5
      %v1413 = vsel %vm1409, %v1411, %v1412
      %v1414 = vrot.slane %v1412, 4
      %v1415 = vrot.slane %v920, 5
      %v1416 = vsel %vm1409, %v1414, %v1415
      %v1417 = vrot.slane %v921, 5
      %v1418 = vrot.slane %v1417, 4
      %v1419 = vrot.slane %v922, 5
      %v1420 = vsel %vm1409, %v1418, %v1419
      %v1421 = vrot.slane %v1419, 4
      %v1422 = vrot.slane %v923, 5
      %v1423 = vsel %vm1409, %v1421, %v1422
      %v1424 = vrot.slane %v924, 5
      %v1425 = vrot.slane %v1424, 4
      %v1426 = vrot.slane %v925, 5
      %v1427 = vsel %vm1409, %v1425, %v1426
      %v1428 = vrot.slane %v1426, 4
      %v1429 = vrot.slane %v926, 5
      %v1430 = vsel %vm1409, %v1428, %v1429
      %v1431 = vrot.slane %v927, 5
      %v1432 = vrot.slane %v1431, 4
      %v1433 = vrot.slane %v928, 5
      %v1434 = vsel %vm1409, %v1432, %v1433
      %v1435 = vrot.slane %v1433, 4
      %v1436 = vrot.slane %v929, 5
      %v1437 = vsel %vm1409, %v1435, %v1436
      %v1438 = vrot.slane %v930, 5
      %v1439 = vrot.slane %v1438, 4
      %v1440 = vrot.slane %v931, 5
      %v1441 = vsel %vm1409, %v1439, %v1440
      %v1442 = vrot.slane %v1440, 4
      %v1443 = vrot.slane %v932, 5
      %v1444 = vsel %vm1409, %v1442, %v1443
      %v1445 = vrot.slane %v933, 5
      %v1446 = vrot.slane %v1445, 4
      %v1447 = vrot.slane %v934, 5
      %v1448 = vsel %vm1409, %v1446, %v1447
      %v1449 = vrot.slane %v1447, 4
      %v1450 = vrot.slane %v935, 5
      %v1451 = vsel %vm1409, %v1449, %v1450
      %v1452 = vrot.slane %v936, 5
      %v1453 = vrot.slane %v1452, 4
      %v1454 = vrot.slane %v937, 5
      %v1455 = vsel %vm1409, %v1453, %v1454
      %v1456 = vrot.slane %v1454, 4
      %v1457 = vrot.slane %v938, 5
      %v1458 = vsel %vm1409, %v1456, %v1457
      %v1459 = vrot.slane %v939, 5
      %v1460 = vrot.slane %v1459, 4
      %v1461 = vrot.slane %v940, 5
      %v1462 = vsel %vm1409, %v1460, %v1461
      %v1463 = vrot.slane %v1461, 4
      %v1464 = vrot.slane %v941, 5
      %v1465 = vsel %vm1409, %v1463, %v1464
      %v1466 = vrot.slane %v942, 5
      %v1467 = vrot.slane %v1466, 4
      %v1468 = vrot.slane %v943, 5
      %v1469 = vsel %vm1409, %v1467, %v1468
      %v1470 = vrot.slane %v1468, 4
      %v1471 = vrot.slane %v944, 5
      %v1472 = vsel %vm1409, %v1470, %v1471
      %v1473 = vrot.slane %v945, 5
      %v1474 = vrot.slane %v1473, 4
      %v1475 = vrot.slane %v946, 5
      %v1476 = vsel %vm1409, %v1474, %v1475
      %v1477 = vrot.slane %v1475, 4
      %v1478 = vrot.slane %v947, 5
      %v1479 = vsel %vm1409, %v1477, %v1478
      %v1480 = vrot.slane %v948, 5
      %v1481 = vrot.slane %v1480, 4
      %v1482 = vrot.slane %v949, 5
      %v1483 = vsel %vm1409, %v1481, %v1482
      %v1484 = vrot.slane %v1482, 4
      %v1485 = vrot.slane %v950, 5
      %v1486 = vsel %vm1409, %v1484, %v1485
      %v1487 = vrot.slane %v951, 5
      %v1488 = vrot.slane %v1487, 4
      %v1489 = vrot.slane %v952, 5
      %v1490 = vsel %vm1409, %v1488, %v1489
      %v1491 = vrot.slane %v1489, 4
      %v1492 = vrot.slane %v953, 5
      %v1493 = vsel %vm1409, %v1491, %v1492
      %v1494 = vrot.slane %v954, 5
      %v1495 = vrot.slane %v1494, 4
      %v1496 = vrot.slane %v955, 5
      %v1497 = vsel %vm1409, %v1495, %v1496
      %v1498 = vrot.slane %v1496, 4
      %v1499 = vrot.slane %v956, 5
      %v1500 = vsel %vm1409, %v1498, %v1499
      %v1501 = vrot.slane %v957, 5
      %v1502 = vrot.slane %v1501, 4
      %v1503 = vrot.slane %v958, 5
      %v1504 = vsel %vm1409, %v1502, %v1503
      %v1505 = vrot.slane %v1503, 4
      %v1506 = vrot.slane %v959, 5
      %v1507 = vsel %vm1409, %v1505, %v1506
      %v1508 = vrot.slane %v960, 5
      %v1509 = vrot.slane %v1508, 4
      %v1510 = vrot.slane %v961, 5
      %v1511 = vsel %vm1409, %v1509, %v1510
      %v1512 = vrot.slane %v1510, 4
      %v1513 = vrot.slane %v962, 5
      %v1514 = vsel %vm1409, %v1512, %v1513
      %v1515 = vrot.slane %v963, 5
      %v1516 = vrot.slane %v1515, 4
      %v1517 = vrot.slane %v964, 5
      %v1518 = vsel %vm1409, %v1516, %v1517
      %v1519 = vrot.slane %v1517, 4
      %v1520 = vrot.slane %v965, 5
      %v1521 = vsel %vm1409, %v1519, %v1520
      %v1523 = vshrl.u32 %v966, 16
      %v1525 = vrot.slane %v1523, 4
      %v1526 = vshll.u32 %v966, 16
      %v1528 = vrot.slane %v1526, 5
      %v1529 = vor.u32 %v1525, %v1528
      %v1530 = vrot.slane %v1529, 4
      %v1532 = vshll.u32 %v967, 16
      %v1534 = vrot.slane %v1532, 5
      %v1535 = vsel %vm974, %v1530, %v1534
      %v1536 = vshrl.u32 %v967, 16
      %v1538 = vrot.slane %v1536, 4
      %v1539 = vor.u32 %v1538, %v1534
      %v1540 = vrot.slane %v1539, 4
      %v1542 = vshll.u32 %v968, 16
      %v1544 = vrot.slane %v1542, 5
      %v1545 = vsel %vm974, %v1540, %v1544
      %v1549 = vrot.slane %v966, 5
      %v1550 = vrot.slane %v1549, 4
      %v1551 = vrot.slane %v967, 5
      %v1552 = vsel %vm1409, %v1550, %v1551
      %v1553 = vrot.slane %v1551, 4
      %v1554 = vrot.slane %v968, 5
      %v1555 = vsel %vm1409, %v1553, %v1554
      %v1557 = vshrl.u32 %v969, 16
      %v1559 = vrot.slane %v1557, 4
      %v1560 = vshll.u32 %v969, 16
      %v1562 = vrot.slane %v1560, 5
      %v1563 = vor.u32 %v1559, %v1562
      %v1564 = vrot.slane %v1563, 4
      %v1566 = vshll.u32 %v970, 16
      %v1568 = vrot.slane %v1566, 5
      %v1569 = vsel %vm974, %v1564, %v1568
      %v1570 = vshrl.u32 %v970, 16
      %v1572 = vrot.slane %v1570, 4
      %v1573 = vor.u32 %v1572, %v1568
      %v1574 = vrot.slane %v1573, 4
      %v1576 = vshll.u32 %v971, 16
      %v1578 = vrot.slane %v1576, 5
      %v1579 = vsel %vm974, %v1574, %v1578
      %v1583 = vrot.slane %v969, 5
      %v1584 = vrot.slane %v1583, 4
      %v1585 = vrot.slane %v970, 5
      %v1586 = vsel %vm1409, %v1584, %v1585
      %v1587 = vrot.slane %v1585, 4
      %v1588 = vrot.slane %v971, 5
      %v1589 = vsel %vm1409, %v1587, %v1588
      %1590 = vst.msk [vmem:[#allocation4] sm:$0xf] %vm393, %v918
      %1591 = vst.msk [vmem:[#allocation4 + $0x4] sm:$0xf] %vm393, %v919
      %1592 = vst.msk [vmem:[#allocation4 + $0x8] sm:$0xf] %vm393, %v921
      %1593 = vst.msk [vmem:[#allocation4 + $0xc] sm:$0xf] %vm393, %v922
      %1594 = vst.msk [vmem:[#allocation4 + $0x10] sm:$0xf] %vm393, %v924
      %1595 = vst.msk [vmem:[#allocation4 + $0x14] sm:$0xf] %vm393, %v925
      %1596 = vst.msk [vmem:[#allocation4 + $0x18] sm:$0xf] %vm393, %v927
      %1597 = vst.msk [vmem:[#allocation4 + $0x1c] sm:$0xf] %vm393, %v928
      %1598 = vst.msk [vmem:[#allocation4 + $0x20] sm:$0xf] %vm393, %v930
      %1599 = vst.msk [vmem:[#allocation4 + $0x24] sm:$0xf] %vm393, %v931
      %1600 = vst.msk [vmem:[#allocation4 + $0x28] sm:$0xf] %vm393, %v933
      %1601 = vst.msk [vmem:[#allocation4 + $0x2c] sm:$0xf] %vm393, %v934
      %1602 = vst.msk [vmem:[#allocation4 + $0x30] sm:$0xf] %vm393, %v936
      %1603 = vst.msk [vmem:[#allocation4 + $0x34] sm:$0xf] %vm393, %v937
      %1604 = vst.msk [vmem:[#allocation4 + $0x38] sm:$0xf] %vm393, %v939
      %1605 = vst.msk [vmem:[#allocation4 + $0x3c] sm:$0xf] %vm393, %v940
      %1606 = vst.msk [vmem:[#allocation4 + $0x40] sm:$0xf] %vm393, %v942
      %1607 = vst.msk [vmem:[#allocation4 + $0x44] sm:$0xf] %vm393, %v943
      %1608 = vst.msk [vmem:[#allocation4 + $0x48] sm:$0xf] %vm393, %v945
      %1609 = vst.msk [vmem:[#allocation4 + $0x4c] sm:$0xf] %vm393, %v946
      %1610 = vst.msk [vmem:[#allocation4 + $0x50] sm:$0xf] %vm393, %v948
      %1611 = vst.msk [vmem:[#allocation4 + $0x54] sm:$0xf] %vm393, %v949
      %1612 = vst.msk [vmem:[#allocation4 + $0x58] sm:$0xf] %vm393, %v951
      %1613 = vst.msk [vmem:[#allocation4 + $0x5c] sm:$0xf] %vm393, %v952
      %1614 = vst.msk [vmem:[#allocation4 + $0x60] sm:$0xf] %vm393, %v954
      %1615 = vst.msk [vmem:[#allocation4 + $0x64] sm:$0xf] %vm393, %v955
      %1616 = vst.msk [vmem:[#allocation4 + $0x68] sm:$0xf] %vm393, %v957
      %1617 = vst.msk [vmem:[#allocation4 + $0x6c] sm:$0xf] %vm393, %v958
      %1618 = vst.msk [vmem:[#allocation4 + $0x70] sm:$0xf] %vm393, %v960
      %1619 = vst.msk [vmem:[#allocation4 + $0x74] sm:$0xf] %vm393, %v961
      %1620 = vst.msk [vmem:[#allocation4 + $0x78] sm:$0xf] %vm393, %v963
      %1621 = vst.msk [vmem:[#allocation4 + $0x7c] sm:$0xf] %vm393, %v964
      %1622 = vrot.lane.b32.xlu0 %v988, 4
      %v1623 = vpop.permute.xlu0 %1622
      %1624 = vrot.lane.b32.xlu0 %v998, 4
      %v1625 = vpop.permute.xlu0 %1624
      %1626 = vrot.lane.b32.xlu0 %v1012, 4
      %v1627 = vpop.permute.xlu0 %1626
      %1628 = vrot.lane.b32.xlu0 %v1022, 4
      %v1629 = vpop.permute.xlu0 %1628
      %1630 = vrot.lane.b32.xlu0 %v1036, 4
      %v1631 = vpop.permute.xlu0 %1630
      %1632 = vrot.lane.b32.xlu0 %v1046, 4
      %v1633 = vpop.permute.xlu0 %1632
      %1634 = vrot.lane.b32.xlu0 %v1060, 4
      %v1635 = vpop.permute.xlu0 %1634
      %1636 = vrot.lane.b32.xlu0 %v1070, 4
      %v1637 = vpop.permute.xlu0 %1636
      %1638 = vrot.lane.b32.xlu0 %v1084, 4
      %v1639 = vpop.permute.xlu0 %1638
      %1640 = vrot.lane.b32.xlu0 %v1094, 4
      %v1641 = vpop.permute.xlu0 %1640
      %1642 = vrot.lane.b32.xlu0 %v1108, 4
      %v1643 = vpop.permute.xlu0 %1642
      %1644 = vrot.lane.b32.xlu0 %v1118, 4
      %v1645 = vpop.permute.xlu0 %1644
      %1646 = vrot.lane.b32.xlu0 %v1132, 4
      %v1647 = vpop.permute.xlu0 %1646
      %1648 = vrot.lane.b32.xlu0 %v1142, 4
      %v1649 = vpop.permute.xlu0 %1648
      %1650 = vrot.lane.b32.xlu0 %v1156, 4
      %v1651 = vpop.permute.xlu0 %1650
      %1652 = vrot.lane.b32.xlu0 %v1166, 4
      %v1653 = vpop.permute.xlu0 %1652
      %1654 = vrot.lane.b32.xlu0 %v1180, 4
      %v1655 = vpop.permute.xlu0 %1654
      %1656 = vrot.lane.b32.xlu0 %v1190, 4
      %v1657 = vpop.permute.xlu0 %1656
      %1658 = vrot.lane.b32.xlu0 %v1204, 4
      %v1659 = vpop.permute.xlu0 %1658
      %1660 = vrot.lane.b32.xlu0 %v1214, 4
      %v1661 = vpop.permute.xlu0 %1660
      %1662 = vrot.lane.b32.xlu0 %v1228, 4
      %v1663 = vpop.permute.xlu0 %1662
      %1664 = vrot.lane.b32.xlu0 %v1238, 4
      %v1665 = vpop.permute.xlu0 %1664
      %1666 = vrot.lane.b32.xlu0 %v1252, 4
      %v1667 = vpop.permute.xlu0 %1666
      %1668 = vrot.lane.b32.xlu0 %v1262, 4
      %v1669 = vpop.permute.xlu0 %1668
      %1670 = vrot.lane.b32.xlu0 %v1276, 4
      %v1671 = vpop.permute.xlu0 %1670
      %1672 = vrot.lane.b32.xlu0 %v1286, 4
      %v1673 = vpop.permute.xlu0 %1672
      %1674 = vrot.lane.b32.xlu0 %v1300, 4
      %v1675 = vpop.permute.xlu0 %1674
      %1676 = vrot.lane.b32.xlu0 %v1310, 4
      %v1677 = vpop.permute.xlu0 %1676
      %1678 = vrot.lane.b32.xlu0 %v1324, 4
      %v1679 = vpop.permute.xlu0 %1678
      %1680 = vrot.lane.b32.xlu0 %v1334, 4
      %v1681 = vpop.permute.xlu0 %1680
      %1682 = vrot.lane.b32.xlu0 %v1348, 4
      %v1683 = vpop.permute.xlu0 %1682
      %1684 = vrot.lane.b32.xlu0 %v1358, 4
      %v1685 = vpop.permute.xlu0 %1684
      %vm1718 = vcmask 60448
      %1719 = vst.msk [vmem:[#allocation4] sm:$0xf] %vm1718, %v1623
      %1720 = vst.msk [vmem:[#allocation4 + $0x4] sm:$0xf] %vm1718, %v1625
      %1721 = vst.msk [vmem:[#allocation4 + $0x8] sm:$0xf] %vm1718, %v1627
      %1722 = vst.msk [vmem:[#allocation4 + $0xc] sm:$0xf] %vm1718, %v1629
      %1723 = vst.msk [vmem:[#allocation4 + $0x10] sm:$0xf] %vm1718, %v1631
      %1724 = vst.msk [vmem:[#allocation4 + $0x14] sm:$0xf] %vm1718, %v1633
      %1725 = vst.msk [vmem:[#allocation4 + $0x18] sm:$0xf] %vm1718, %v1635
      %1726 = vst.msk [vmem:[#allocation4 + $0x1c] sm:$0xf] %vm1718, %v1637
      %1727 = vst.msk [vmem:[#allocation4 + $0x20] sm:$0xf] %vm1718, %v1639
      %1728 = vst.msk [vmem:[#allocation4 + $0x24] sm:$0xf] %vm1718, %v1641
      %1729 = vst.msk [vmem:[#allocation4 + $0x28] sm:$0xf] %vm1718, %v1643
      %1730 = vst.msk [vmem:[#allocation4 + $0x2c] sm:$0xf] %vm1718, %v1645
      %1731 = vst.msk [vmem:[#allocation4 + $0x30] sm:$0xf] %vm1718, %v1647
      %1732 = vst.msk [vmem:[#allocation4 + $0x34] sm:$0xf] %vm1718, %v1649
      %1733 = vst.msk [vmem:[#allocation4 + $0x38] sm:$0xf] %vm1718, %v1651
      %1734 = vst.msk [vmem:[#allocation4 + $0x3c] sm:$0xf] %vm1718, %v1653
      %1735 = vst.msk [vmem:[#allocation4 + $0x40] sm:$0xf] %vm1718, %v1655
      %1736 = vst.msk [vmem:[#allocation4 + $0x44] sm:$0xf] %vm1718, %v1657
      %1737 = vst.msk [vmem:[#allocation4 + $0x48] sm:$0xf] %vm1718, %v1659
      %1738 = vst.msk [vmem:[#allocation4 + $0x4c] sm:$0xf] %vm1718, %v1661
      %1739 = vst.msk [vmem:[#allocation4 + $0x50] sm:$0xf] %vm1718, %v1663
      %1740 = vst.msk [vmem:[#allocation4 + $0x54] sm:$0xf] %vm1718, %v1665
      %1741 = vst.msk [vmem:[#allocation4 + $0x58] sm:$0xf] %vm1718, %v1667
      %1742 = vst.msk [vmem:[#allocation4 + $0x5c] sm:$0xf] %vm1718, %v1669
      %1743 = vst.msk [vmem:[#allocation4 + $0x60] sm:$0xf] %vm1718, %v1671
      %1744 = vst.msk [vmem:[#allocation4 + $0x64] sm:$0xf] %vm1718, %v1673
      %1745 = vst.msk [vmem:[#allocation4 + $0x68] sm:$0xf] %vm1718, %v1675
      %1746 = vst.msk [vmem:[#allocation4 + $0x6c] sm:$0xf] %vm1718, %v1677
      %1747 = vst.msk [vmem:[#allocation4 + $0x70] sm:$0xf] %vm1718, %v1679
      %1748 = vst.msk [vmem:[#allocation4 + $0x74] sm:$0xf] %vm1718, %v1681
      %1749 = vst.msk [vmem:[#allocation4 + $0x78] sm:$0xf] %vm1718, %v1683
      %1750 = vst.msk [vmem:[#allocation4 + $0x7c] sm:$0xf] %vm1718, %v1685
      %1751 = vrot.lane.b32.xlu0 %v1413, 8
      %v1752 = vpop.permute.xlu0 %1751
      %1753 = vrot.lane.b32.xlu0 %v1416, 8
      %v1754 = vpop.permute.xlu0 %1753
      %1755 = vrot.lane.b32.xlu0 %v1420, 8
      %v1756 = vpop.permute.xlu0 %1755
      %1757 = vrot.lane.b32.xlu0 %v1423, 8
      %v1758 = vpop.permute.xlu0 %1757
      %1759 = vrot.lane.b32.xlu0 %v1427, 8
      %v1760 = vpop.permute.xlu0 %1759
      %1761 = vrot.lane.b32.xlu0 %v1430, 8
      %v1762 = vpop.permute.xlu0 %1761
      %1763 = vrot.lane.b32.xlu0 %v1434, 8
      %v1764 = vpop.permute.xlu0 %1763
      %1765 = vrot.lane.b32.xlu0 %v1437, 8
      %v1766 = vpop.permute.xlu0 %1765
      %1767 = vrot.lane.b32.xlu0 %v1441, 8
      %v1768 = vpop.permute.xlu0 %1767
      %1769 = vrot.lane.b32.xlu0 %v1444, 8
      %v1770 = vpop.permute.xlu0 %1769
      %1771 = vrot.lane.b32.xlu0 %v1448, 8
      %v1772 = vpop.permute.xlu0 %1771
      %1773 = vrot.lane.b32.xlu0 %v1451, 8
      %v1774 = vpop.permute.xlu0 %1773
      %1775 = vrot.lane.b32.xlu0 %v1455, 8
      %v1776 = vpop.permute.xlu0 %1775
      %1777 = vrot.lane.b32.xlu0 %v1458, 8
      %v1778 = vpop.permute.xlu0 %1777
      %1779 = vrot.lane.b32.xlu0 %v1462, 8
      %v1780 = vpop.permute.xlu0 %1779
      %1781 = vrot.lane.b32.xlu0 %v1465, 8
      %v1782 = vpop.permute.xlu0 %1781
      %1783 = vrot.lane.b32.xlu0 %v1469, 8
      %v1784 = vpop.permute.xlu0 %1783
      %1785 = vrot.lane.b32.xlu0 %v1472, 8
      %v1786 = vpop.permute.xlu0 %1785
      %1787 = vrot.lane.b32.xlu0 %v1476, 8
      %v1788 = vpop.permute.xlu0 %1787
      %1789 = vrot.lane.b32.xlu0 %v1479, 8
      %v1790 = vpop.permute.xlu0 %1789
      %1791 = vrot.lane.b32.xlu0 %v1483, 8
      %v1792 = vpop.permute.xlu0 %1791
      %1793 = vrot.lane.b32.xlu0 %v1486, 8
      %v1794 = vpop.permute.xlu0 %1793
      %1795 = vrot.lane.b32.xlu0 %v1490, 8
      %v1796 = vpop.permute.xlu0 %1795
      %1797 = vrot.lane.b32.xlu0 %v1493, 8
      %v1798 = vpop.permute.xlu0 %1797
      %1799 = vrot.lane.b32.xlu0 %v1497, 8
      %v1800 = vpop.permute.xlu0 %1799
      %1801 = vrot.lane.b32.xlu0 %v1500, 8
      %v1802 = vpop.permute.xlu0 %1801
      %1803 = vrot.lane.b32.xlu0 %v1504, 8
      %v1804 = vpop.permute.xlu0 %1803
      %1805 = vrot.lane.b32.xlu0 %v1507, 8
      %v1806 = vpop.permute.xlu0 %1805
      %1807 = vrot.lane.b32.xlu0 %v1511, 8
      %v1808 = vpop.permute.xlu0 %1807
      %1809 = vrot.lane.b32.xlu0 %v1514, 8
      %v1810 = vpop.permute.xlu0 %1809
      %1811 = vrot.lane.b32.xlu0 %v1518, 8
      %v1812 = vpop.permute.xlu0 %1811
      %1813 = vrot.lane.b32.xlu0 %v1521, 8
      %v1814 = vpop.permute.xlu0 %1813
      %vm1847 = vcmask 93248
      %1848 = vst.msk [vmem:[#allocation4] sm:$0xf] %vm1847, %v1752
      %1849 = vst.msk [vmem:[#allocation4 + $0x4] sm:$0xf] %vm1847, %v1754
      %1850 = vst.msk [vmem:[#allocation4 + $0x8] sm:$0xf] %vm1847, %v1756
      %1851 = vst.msk [vmem:[#allocation4 + $0xc] sm:$0xf] %vm1847, %v1758
      %1852 = vst.msk [vmem:[#allocation4 + $0x10] sm:$0xf] %vm1847, %v1760
      %1853 = vst.msk [vmem:[#allocation4 + $0x14] sm:$0xf] %vm1847, %v1762
      %1854 = vst.msk [vmem:[#allocation4 + $0x18] sm:$0xf] %vm1847, %v1764
      %1855 = vst.msk [vmem:[#allocation4 + $0x1c] sm:$0xf] %vm1847, %v1766
      %1856 = vst.msk [vmem:[#allocation4 + $0x20] sm:$0xf] %vm1847, %v1768
      %1857 = vst.msk [vmem:[#allocation4 + $0x24] sm:$0xf] %vm1847, %v1770
      %1858 = vst.msk [vmem:[#allocation4 + $0x28] sm:$0xf] %vm1847, %v1772
      %1859 = vst.msk [vmem:[#allocation4 + $0x2c] sm:$0xf] %vm1847, %v1774
      %1860 = vst.msk [vmem:[#allocation4 + $0x30] sm:$0xf] %vm1847, %v1776
      %1861 = vst.msk [vmem:[#allocation4 + $0x34] sm:$0xf] %vm1847, %v1778
      %1862 = vst.msk [vmem:[#allocation4 + $0x38] sm:$0xf] %vm1847, %v1780
      %1863 = vst.msk [vmem:[#allocation4 + $0x3c] sm:$0xf] %vm1847, %v1782
      %1864 = vst.msk [vmem:[#allocation4 + $0x40] sm:$0xf] %vm1847, %v1784
      %1865 = vst.msk [vmem:[#allocation4 + $0x44] sm:$0xf] %vm1847, %v1786
      %1866 = vst.msk [vmem:[#allocation4 + $0x48] sm:$0xf] %vm1847, %v1788
      %1867 = vst.msk [vmem:[#allocation4 + $0x4c] sm:$0xf] %vm1847, %v1790
      %1868 = vst.msk [vmem:[#allocation4 + $0x50] sm:$0xf] %vm1847, %v1792
      %1869 = vst.msk [vmem:[#allocation4 + $0x54] sm:$0xf] %vm1847, %v1794
      %1870 = vst.msk [vmem:[#allocation4 + $0x58] sm:$0xf] %vm1847, %v1796
      %1871 = vst.msk [vmem:[#allocation4 + $0x5c] sm:$0xf] %vm1847, %v1798
      %1872 = vst.msk [vmem:[#allocation4 + $0x60] sm:$0xf] %vm1847, %v1800
      %1873 = vst.msk [vmem:[#allocation4 + $0x64] sm:$0xf] %vm1847, %v1802
      %1874 = vst.msk [vmem:[#allocation4 + $0x68] sm:$0xf] %vm1847, %v1804
      %1875 = vst.msk [vmem:[#allocation4 + $0x6c] sm:$0xf] %vm1847, %v1806
      %1876 = vst.msk [vmem:[#allocation4 + $0x70] sm:$0xf] %vm1847, %v1808
      %1877 = vst.msk [vmem:[#allocation4 + $0x74] sm:$0xf] %vm1847, %v1810
      %1878 = vst.msk [vmem:[#allocation4 + $0x78] sm:$0xf] %vm1847, %v1812
      %1879 = vst.msk [vmem:[#allocation4 + $0x7c] sm:$0xf] %vm1847, %v1814
      %1880 = vrot.lane.b32.xlu0 %v921, 12
      %v1881 = vpop.permute.xlu0 %1880
      %1882 = vrot.lane.b32.xlu0 %v922, 12
      %v1883 = vpop.permute.xlu0 %1882
      %1884 = vrot.lane.b32.xlu0 %v924, 12
      %v1885 = vpop.permute.xlu0 %1884
      %1886 = vrot.lane.b32.xlu0 %v925, 12
      %v1887 = vpop.permute.xlu0 %1886
      %1888 = vrot.lane.b32.xlu0 %v927, 12
      %v1889 = vpop.permute.xlu0 %1888
      %1890 = vrot.lane.b32.xlu0 %v928, 12
      %v1891 = vpop.permute.xlu0 %1890
      %1892 = vrot.lane.b32.xlu0 %v930, 12
      %v1893 = vpop.permute.xlu0 %1892
      %1894 = vrot.lane.b32.xlu0 %v931, 12
      %v1895 = vpop.permute.xlu0 %1894
      %1896 = vrot.lane.b32.xlu0 %v933, 12
      %v1897 = vpop.permute.xlu0 %1896
      %1898 = vrot.lane.b32.xlu0 %v934, 12
      %v1899 = vpop.permute.xlu0 %1898
      %1900 = vrot.lane.b32.xlu0 %v936, 12
      %v1901 = vpop.permute.xlu0 %1900
      %1902 = vrot.lane.b32.xlu0 %v937, 12
      %v1903 = vpop.permute.xlu0 %1902
      %1904 = vrot.lane.b32.xlu0 %v939, 12
      %v1905 = vpop.permute.xlu0 %1904
      %1906 = vrot.lane.b32.xlu0 %v940, 12
      %v1907 = vpop.permute.xlu0 %1906
      %1908 = vrot.lane.b32.xlu0 %v942, 12
      %v1909 = vpop.permute.xlu0 %1908
      %1910 = vrot.lane.b32.xlu0 %v943, 12
      %v1911 = vpop.permute.xlu0 %1910
      %1912 = vrot.lane.b32.xlu0 %v945, 12
      %v1913 = vpop.permute.xlu0 %1912
      %1914 = vrot.lane.b32.xlu0 %v946, 12
      %v1915 = vpop.permute.xlu0 %1914
      %1916 = vrot.lane.b32.xlu0 %v948, 12
      %v1917 = vpop.permute.xlu0 %1916
      %1918 = vrot.lane.b32.xlu0 %v949, 12
      %v1919 = vpop.permute.xlu0 %1918
      %1920 = vrot.lane.b32.xlu0 %v951, 12
      %v1921 = vpop.permute.xlu0 %1920
      %1922 = vrot.lane.b32.xlu0 %v952, 12
      %v1923 = vpop.permute.xlu0 %1922
      %1924 = vrot.lane.b32.xlu0 %v954, 12
      %v1925 = vpop.permute.xlu0 %1924
      %1926 = vrot.lane.b32.xlu0 %v955, 12
      %v1927 = vpop.permute.xlu0 %1926
      %1928 = vrot.lane.b32.xlu0 %v957, 12
      %v1929 = vpop.permute.xlu0 %1928
      %1930 = vrot.lane.b32.xlu0 %v958, 12
      %v1931 = vpop.permute.xlu0 %1930
      %1932 = vrot.lane.b32.xlu0 %v960, 12
      %v1933 = vpop.permute.xlu0 %1932
      %1934 = vrot.lane.b32.xlu0 %v961, 12
      %v1935 = vpop.permute.xlu0 %1934
      %1936 = vrot.lane.b32.xlu0 %v963, 12
      %v1937 = vpop.permute.xlu0 %1936
      %1938 = vrot.lane.b32.xlu0 %v964, 12
      %v1939 = vpop.permute.xlu0 %1938
      %1940 = vrot.lane.b32.xlu0 %v966, 12
      %v1941 = vpop.permute.xlu0 %1940
      %1942 = vrot.lane.b32.xlu0 %v967, 12
      %v1943 = vpop.permute.xlu0 %1942
      %vm1976 = vcmask 126048
      %1977 = vst.msk [vmem:[#allocation4] sm:$0xf] %vm1976, %v1881
      %1978 = vst.msk [vmem:[#allocation4 + $0x4] sm:$0xf] %vm1976, %v1883
      %1979 = vst.msk [vmem:[#allocation4 + $0x8] sm:$0xf] %vm1976, %v1885
      %1980 = vst.msk [vmem:[#allocation4 + $0xc] sm:$0xf] %vm1976, %v1887
      %1981 = vst.msk [vmem:[#allocation4 + $0x10] sm:$0xf] %vm1976, %v1889
      %1982 = vst.msk [vmem:[#allocation4 + $0x14] sm:$0xf] %vm1976, %v1891
      %1983 = vst.msk [vmem:[#allocation4 + $0x18] sm:$0xf] %vm1976, %v1893
      %1984 = vst.msk [vmem:[#allocation4 + $0x1c] sm:$0xf] %vm1976, %v1895
      %1985 = vst.msk [vmem:[#allocation4 + $0x20] sm:$0xf] %vm1976, %v1897
      %1986 = vst.msk [vmem:[#allocation4 + $0x24] sm:$0xf] %vm1976, %v1899
      %1987 = vst.msk [vmem:[#allocation4 + $0x28] sm:$0xf] %vm1976, %v1901
      %1988 = vst.msk [vmem:[#allocation4 + $0x2c] sm:$0xf] %vm1976, %v1903
      %1989 = vst.msk [vmem:[#allocation4 + $0x30] sm:$0xf] %vm1976, %v1905
      %1990 = vst.msk [vmem:[#allocation4 + $0x34] sm:$0xf] %vm1976, %v1907
      %1991 = vst.msk [vmem:[#allocation4 + $0x38] sm:$0xf] %vm1976, %v1909
      %1992 = vst.msk [vmem:[#allocation4 + $0x3c] sm:$0xf] %vm1976, %v1911
      %1993 = vst.msk [vmem:[#allocation4 + $0x40] sm:$0xf] %vm1976, %v1913
      %1994 = vst.msk [vmem:[#allocation4 + $0x44] sm:$0xf] %vm1976, %v1915
      %1995 = vst.msk [vmem:[#allocation4 + $0x48] sm:$0xf] %vm1976, %v1917
      %1996 = vst.msk [vmem:[#allocation4 + $0x4c] sm:$0xf] %vm1976, %v1919
      %1997 = vst.msk [vmem:[#allocation4 + $0x50] sm:$0xf] %vm1976, %v1921
      %1998 = vst.msk [vmem:[#allocation4 + $0x54] sm:$0xf] %vm1976, %v1923
      %1999 = vst.msk [vmem:[#allocation4 + $0x58] sm:$0xf] %vm1976, %v1925
      %2000 = vst.msk [vmem:[#allocation4 + $0x5c] sm:$0xf] %vm1976, %v1927
      %2001 = vst.msk [vmem:[#allocation4 + $0x60] sm:$0xf] %vm1976, %v1929
      %2002 = vst.msk [vmem:[#allocation4 + $0x64] sm:$0xf] %vm1976, %v1931
      %2003 = vst.msk [vmem:[#allocation4 + $0x68] sm:$0xf] %vm1976, %v1933
      %2004 = vst.msk [vmem:[#allocation4 + $0x6c] sm:$0xf] %vm1976, %v1935
      %2005 = vst.msk [vmem:[#allocation4 + $0x70] sm:$0xf] %vm1976, %v1937
      %2006 = vst.msk [vmem:[#allocation4 + $0x74] sm:$0xf] %vm1976, %v1939
      %2007 = vst.msk [vmem:[#allocation4 + $0x78] sm:$0xf] %vm1976, %v1941
      %2008 = vst.msk [vmem:[#allocation4 + $0x7c] sm:$0xf] %vm1976, %v1943
      %2009 = vrot.lane.b32.xlu0 %v1012, 16
      %v2010 = vpop.permute.xlu0 %2009
      %2011 = vrot.lane.b32.xlu0 %v1022, 16
      %v2012 = vpop.permute.xlu0 %2011
      %2013 = vrot.lane.b32.xlu0 %v1036, 16
      %v2014 = vpop.permute.xlu0 %2013
      %2015 = vrot.lane.b32.xlu0 %v1046, 16
      %v2016 = vpop.permute.xlu0 %2015
      %2017 = vrot.lane.b32.xlu0 %v1060, 16
      %v2018 = vpop.permute.xlu0 %2017
      %2019 = vrot.lane.b32.xlu0 %v1070, 16
      %v2020 = vpop.permute.xlu0 %2019
      %2021 = vrot.lane.b32.xlu0 %v1084, 16
      %v2022 = vpop.permute.xlu0 %2021
      %2023 = vrot.lane.b32.xlu0 %v1094, 16
      %v2024 = vpop.permute.xlu0 %2023
      %2025 = vrot.lane.b32.xlu0 %v1108, 16
      %v2026 = vpop.permute.xlu0 %2025
      %2027 = vrot.lane.b32.xlu0 %v1118, 16
      %v2028 = vpop.permute.xlu0 %2027
      %2029 = vrot.lane.b32.xlu0 %v1132, 16
      %v2030 = vpop.permute.xlu0 %2029
      %2031 = vrot.lane.b32.xlu0 %v1142, 16
      %v2032 = vpop.permute.xlu0 %2031
      %2033 = vrot.lane.b32.xlu0 %v1156, 16
      %v2034 = vpop.permute.xlu0 %2033
      %2035 = vrot.lane.b32.xlu0 %v1166, 16
      %v2036 = vpop.permute.xlu0 %2035
      %2037 = vrot.lane.b32.xlu0 %v1180, 16
      %v2038 = vpop.permute.xlu0 %2037
      %2039 = vrot.lane.b32.xlu0 %v1190, 16
      %v2040 = vpop.permute.xlu0 %2039
      %2041 = vrot.lane.b32.xlu0 %v1204, 16
      %v2042 = vpop.permute.xlu0 %2041
      %2043 = vrot.lane.b32.xlu0 %v1214, 16
      %v2044 = vpop.permute.xlu0 %2043
      %2045 = vrot.lane.b32.xlu0 %v1228, 16
      %v2046 = vpop.permute.xlu0 %2045
      %2047 = vrot.lane.b32.xlu0 %v1238, 16
      %v2048 = vpop.permute.xlu0 %2047
      %2049 = vrot.lane.b32.xlu0 %v1252, 16
      %v2050 = vpop.permute.xlu0 %2049
      %2051 = vrot.lane.b32.xlu0 %v1262, 16
      %v2052 = vpop.permute.xlu0 %2051
      %2053 = vrot.lane.b32.xlu0 %v1276, 16
      %v2054 = vpop.permute.xlu0 %2053
      %2055 = vrot.lane.b32.xlu0 %v1286, 16
      %v2056 = vpop.permute.xlu0 %2055
      %2057 = vrot.lane.b32.xlu0 %v1300, 16
      %v2058 = vpop.permute.xlu0 %2057
      %2059 = vrot.lane.b32.xlu0 %v1310, 16
      %v2060 = vpop.permute.xlu0 %2059
      %2061 = vrot.lane.b32.xlu0 %v1324, 16
      %v2062 = vpop.permute.xlu0 %2061
      %2063 = vrot.lane.b32.xlu0 %v1334, 16
      %v2064 = vpop.permute.xlu0 %2063
      %2065 = vrot.lane.b32.xlu0 %v1348, 16
      %v2066 = vpop.permute.xlu0 %2065
      %2067 = vrot.lane.b32.xlu0 %v1358, 16
      %v2068 = vpop.permute.xlu0 %2067
      %2069 = vrot.lane.b32.xlu0 %v1535, 16
      %v2070 = vpop.permute.xlu0 %2069
      %2071 = vrot.lane.b32.xlu0 %v1545, 16
      %v2072 = vpop.permute.xlu0 %2071
      %vm2105 = vcmask 158848
      %2106 = vst.msk [vmem:[#allocation4] sm:$0xf] %vm2105, %v2010
      %2107 = vst.msk [vmem:[#allocation4 + $0x4] sm:$0xf] %vm2105, %v2012
      %2108 = vst.msk [vmem:[#allocation4 + $0x8] sm:$0xf] %vm2105, %v2014
      %2109 = vst.msk [vmem:[#allocation4 + $0xc] sm:$0xf] %vm2105, %v2016
      %2110 = vst.msk [vmem:[#allocation4 + $0x10] sm:$0xf] %vm2105, %v2018
      %2111 = vst.msk [vmem:[#allocation4 + $0x14] sm:$0xf] %vm2105, %v2020
      %2112 = vst.msk [vmem:[#allocation4 + $0x18] sm:$0xf] %vm2105, %v2022
      %2113 = vst.msk [vmem:[#allocation4 + $0x1c] sm:$0xf] %vm2105, %v2024
      %2114 = vst.msk [vmem:[#allocation4 + $0x20] sm:$0xf] %vm2105, %v2026
      %2115 = vst.msk [vmem:[#allocation4 + $0x24] sm:$0xf] %vm2105, %v2028
      %2116 = vst.msk [vmem:[#allocation4 + $0x28] sm:$0xf] %vm2105, %v2030
      %2117 = vst.msk [vmem:[#allocation4 + $0x2c] sm:$0xf] %vm2105, %v2032
      %2118 = vst.msk [vmem:[#allocation4 + $0x30] sm:$0xf] %vm2105, %v2034
      %2119 = vst.msk [vmem:[#allocation4 + $0x34] sm:$0xf] %vm2105, %v2036
      %2120 = vst.msk [vmem:[#allocation4 + $0x38] sm:$0xf] %vm2105, %v2038
      %2121 = vst.msk [vmem:[#allocation4 + $0x3c] sm:$0xf] %vm2105, %v2040
      %2122 = vst.msk [vmem:[#allocation4 + $0x40] sm:$0xf] %vm2105, %v2042
      %2123 = vst.msk [vmem:[#allocation4 + $0x44] sm:$0xf] %vm2105, %v2044
      %2124 = vst.msk [vmem:[#allocation4 + $0x48] sm:$0xf] %vm2105, %v2046
      %2125 = vst.msk [vmem:[#allocation4 + $0x4c] sm:$0xf] %vm2105, %v2048
      %2126 = vst.msk [vmem:[#allocation4 + $0x50] sm:$0xf] %vm2105, %v2050
      %2127 = vst.msk [vmem:[#allocation4 + $0x54] sm:$0xf] %vm2105, %v2052
      %2128 = vst.msk [vmem:[#allocation4 + $0x58] sm:$0xf] %vm2105, %v2054
      %2129 = vst.msk [vmem:[#allocation4 + $0x5c] sm:$0xf] %vm2105, %v2056
      %2130 = vst.msk [vmem:[#allocation4 + $0x60] sm:$0xf] %vm2105, %v2058
      %2131 = vst.msk [vmem:[#allocation4 + $0x64] sm:$0xf] %vm2105, %v2060
      %2132 = vst.msk [vmem:[#allocation4 + $0x68] sm:$0xf] %vm2105, %v2062
      %2133 = vst.msk [vmem:[#allocation4 + $0x6c] sm:$0xf] %vm2105, %v2064
      %2134 = vst.msk [vmem:[#allocation4 + $0x70] sm:$0xf] %vm2105, %v2066
      %2135 = vst.msk [vmem:[#allocation4 + $0x74] sm:$0xf] %vm2105, %v2068
      %2136 = vst.msk [vmem:[#allocation4 + $0x78] sm:$0xf] %vm2105, %v2070
      %2137 = vst.msk [vmem:[#allocation4 + $0x7c] sm:$0xf] %vm2105, %v2072
      %2138 = vrot.lane.b32.xlu0 %v1420, 20
      %v2139 = vpop.permute.xlu0 %2138
      %2140 = vrot.lane.b32.xlu0 %v1423, 20
      %v2141 = vpop.permute.xlu0 %2140
      %2142 = vrot.lane.b32.xlu0 %v1427, 20
      %v2143 = vpop.permute.xlu0 %2142
      %2144 = vrot.lane.b32.xlu0 %v1430, 20
      %v2145 = vpop.permute.xlu0 %2144
      %2146 = vrot.lane.b32.xlu0 %v1434, 20
      %v2147 = vpop.permute.xlu0 %2146
      %2148 = vrot.lane.b32.xlu0 %v1437, 20
      %v2149 = vpop.permute.xlu0 %2148
      %2150 = vrot.lane.b32.xlu0 %v1441, 20
      %v2151 = vpop.permute.xlu0 %2150
      %2152 = vrot.lane.b32.xlu0 %v1444, 20
      %v2153 = vpop.permute.xlu0 %2152
      %2154 = vrot.lane.b32.xlu0 %v1448, 20
      %v2155 = vpop.permute.xlu0 %2154
      %2156 = vrot.lane.b32.xlu0 %v1451, 20
      %v2157 = vpop.permute.xlu0 %2156
      %2158 = vrot.lane.b32.xlu0 %v1455, 20
      %v2159 = vpop.permute.xlu0 %2158
      %2160 = vrot.lane.b32.xlu0 %v1458, 20
      %v2161 = vpop.permute.xlu0 %2160
      %2162 = vrot.lane.b32.xlu0 %v1462, 20
      %v2163 = vpop.permute.xlu0 %2162
      %2164 = vrot.lane.b32.xlu0 %v1465, 20
      %v2165 = vpop.permute.xlu0 %2164
      %2166 = vrot.lane.b32.xlu0 %v1469, 20
      %v2167 = vpop.permute.xlu0 %2166
      %2168 = vrot.lane.b32.xlu0 %v1472, 20
      %v2169 = vpop.permute.xlu0 %2168
      %2170 = vrot.lane.b32.xlu0 %v1476, 20
      %v2171 = vpop.permute.xlu0 %2170
      %2172 = vrot.lane.b32.xlu0 %v1479, 20
      %v2173 = vpop.permute.xlu0 %2172
      %2174 = vrot.lane.b32.xlu0 %v1483, 20
      %v2175 = vpop.permute.xlu0 %2174
      %2176 = vrot.lane.b32.xlu0 %v1486, 20
      %v2177 = vpop.permute.xlu0 %2176
      %2178 = vrot.lane.b32.xlu0 %v1490, 20
      %v2179 = vpop.permute.xlu0 %2178
      %2180 = vrot.lane.b32.xlu0 %v1493, 20
      %v2181 = vpop.permute.xlu0 %2180
      %2182 = vrot.lane.b32.xlu0 %v1497, 20
      %v2183 = vpop.permute.xlu0 %2182
      %2184 = vrot.lane.b32.xlu0 %v1500, 20
      %v2185 = vpop.permute.xlu0 %2184
      %2186 = vrot.lane.b32.xlu0 %v1504, 20
      %v2187 = vpop.permute.xlu0 %2186
      %2188 = vrot.lane.b32.xlu0 %v1507, 20
      %v2189 = vpop.permute.xlu0 %2188
      %2190 = vrot.lane.b32.xlu0 %v1511, 20
      %v2191 = vpop.permute.xlu0 %2190
      %2192 = vrot.lane.b32.xlu0 %v1514, 20
      %v2193 = vpop.permute.xlu0 %2192
      %2194 = vrot.lane.b32.xlu0 %v1518, 20
      %v2195 = vpop.permute.xlu0 %2194
      %2196 = vrot.lane.b32.xlu0 %v1521, 20
      %v2197 = vpop.permute.xlu0 %2196
      %2198 = vrot.lane.b32.xlu0 %v1552, 20
      %v2199 = vpop.permute.xlu0 %2198
      %2200 = vrot.lane.b32.xlu0 %v1555, 20
      %v2201 = vpop.permute.xlu0 %2200
      %vm2234 = vcmask 191648
      %2235 = vst.msk [vmem:[#allocation4] sm:$0xf] %vm2234, %v2139
      %2236 = vst.msk [vmem:[#allocation4 + $0x4] sm:$0xf] %vm2234, %v2141
      %2237 = vst.msk [vmem:[#allocation4 + $0x8] sm:$0xf] %vm2234, %v2143
      %2238 = vst.msk [vmem:[#allocation4 + $0xc] sm:$0xf] %vm2234, %v2145
      %2239 = vst.msk [vmem:[#allocation4 + $0x10] sm:$0xf] %vm2234, %v2147
      %2240 = vst.msk [vmem:[#allocation4 + $0x14] sm:$0xf] %vm2234, %v2149
      %2241 = vst.msk [vmem:[#allocation4 + $0x18] sm:$0xf] %vm2234, %v2151
      %2242 = vst.msk [vmem:[#allocation4 + $0x1c] sm:$0xf] %vm2234, %v2153
      %2243 = vst.msk [vmem:[#allocation4 + $0x20] sm:$0xf] %vm2234, %v2155
      %2244 = vst.msk [vmem:[#allocation4 + $0x24] sm:$0xf] %vm2234, %v2157
      %2245 = vst.msk [vmem:[#allocation4 + $0x28] sm:$0xf] %vm2234, %v2159
      %2246 = vst.msk [vmem:[#allocation4 + $0x2c] sm:$0xf] %vm2234, %v2161
      %2247 = vst.msk [vmem:[#allocation4 + $0x30] sm:$0xf] %vm2234, %v2163
      %2248 = vst.msk [vmem:[#allocation4 + $0x34] sm:$0xf] %vm2234, %v2165
      %2249 = vst.msk [vmem:[#allocation4 + $0x38] sm:$0xf] %vm2234, %v2167
      %2250 = vst.msk [vmem:[#allocation4 + $0x3c] sm:$0xf] %vm2234, %v2169
      %2251 = vst.msk [vmem:[#allocation4 + $0x40] sm:$0xf] %vm2234, %v2171
      %2252 = vst.msk [vmem:[#allocation4 + $0x44] sm:$0xf] %vm2234, %v2173
      %2253 = vst.msk [vmem:[#allocation4 + $0x48] sm:$0xf] %vm2234, %v2175
      %2254 = vst.msk [vmem:[#allocation4 + $0x4c] sm:$0xf] %vm2234, %v2177
      %2255 = vst.msk [vmem:[#allocation4 + $0x50] sm:$0xf] %vm2234, %v2179
      %2256 = vst.msk [vmem:[#allocation4 + $0x54] sm:$0xf] %vm2234, %v2181
      %2257 = vst.msk [vmem:[#allocation4 + $0x58] sm:$0xf] %vm2234, %v2183
      %2258 = vst.msk [vmem:[#allocation4 + $0x5c] sm:$0xf] %vm2234, %v2185
      %2259 = vst.msk [vmem:[#allocation4 + $0x60] sm:$0xf] %vm2234, %v2187
      %2260 = vst.msk [vmem:[#allocation4 + $0x64] sm:$0xf] %vm2234, %v2189
      %2261 = vst.msk [vmem:[#allocation4 + $0x68] sm:$0xf] %vm2234, %v2191
      %2262 = vst.msk [vmem:[#allocation4 + $0x6c] sm:$0xf] %vm2234, %v2193
      %2263 = vst.msk [vmem:[#allocation4 + $0x70] sm:$0xf] %vm2234, %v2195
      %2264 = vst.msk [vmem:[#allocation4 + $0x74] sm:$0xf] %vm2234, %v2197
      %2265 = vst.msk [vmem:[#allocation4 + $0x78] sm:$0xf] %vm2234, %v2199
      %2266 = vst.msk [vmem:[#allocation4 + $0x7c] sm:$0xf] %vm2234, %v2201
      %2267 = vrot.lane.b32.xlu0 %v924, 24
      %v2268 = vpop.permute.xlu0 %2267
      %2269 = vrot.lane.b32.xlu0 %v925, 24
      %v2270 = vpop.permute.xlu0 %2269
      %2271 = vrot.lane.b32.xlu0 %v927, 24
      %v2272 = vpop.permute.xlu0 %2271
      %2273 = vrot.lane.b32.xlu0 %v928, 24
      %v2274 = vpop.permute.xlu0 %2273
      %2275 = vrot.lane.b32.xlu0 %v930, 24
      %v2276 = vpop.permute.xlu0 %2275
      %2277 = vrot.lane.b32.xlu0 %v931, 24
      %v2278 = vpop.permute.xlu0 %2277
      %2279 = vrot.lane.b32.xlu0 %v933, 24
      %v2280 = vpop.permute.xlu0 %2279
      %2281 = vrot.lane.b32.xlu0 %v934, 24
      %v2282 = vpop.permute.xlu0 %2281
      %2283 = vrot.lane.b32.xlu0 %v936, 24
      %v2284 = vpop.permute.xlu0 %2283
      %2285 = vrot.lane.b32.xlu0 %v937, 24
      %v2286 = vpop.permute.xlu0 %2285
      %2287 = vrot.lane.b32.xlu0 %v939, 24
      %v2288 = vpop.permute.xlu0 %2287
      %2289 = vrot.lane.b32.xlu0 %v940, 24
      %v2290 = vpop.permute.xlu0 %2289
      %2291 = vrot.lane.b32.xlu0 %v942, 24
      %v2292 = vpop.permute.xlu0 %2291
      %2293 = vrot.lane.b32.xlu0 %v943, 24
      %v2294 = vpop.permute.xlu0 %2293
      %2295 = vrot.lane.b32.xlu0 %v945, 24
      %v2296 = vpop.permute.xlu0 %2295
      %2297 = vrot.lane.b32.xlu0 %v946, 24
      %v2298 = vpop.permute.xlu0 %2297
      %2299 = vrot.lane.b32.xlu0 %v948, 24
      %v2300 = vpop.permute.xlu0 %2299
      %2301 = vrot.lane.b32.xlu0 %v949, 24
      %v2302 = vpop.permute.xlu0 %2301
      %2303 = vrot.lane.b32.xlu0 %v951, 24
      %v2304 = vpop.permute.xlu0 %2303
      %2305 = vrot.lane.b32.xlu0 %v952, 24
      %v2306 = vpop.permute.xlu0 %2305
      %2307 = vrot.lane.b32.xlu0 %v954, 24
      %v2308 = vpop.permute.xlu0 %2307
      %2309 = vrot.lane.b32.xlu0 %v955, 24
      %v2310 = vpop.permute.xlu0 %2309
      %2311 = vrot.lane.b32.xlu0 %v957, 24
      %v2312 = vpop.permute.xlu0 %2311
      %2313 = vrot.lane.b32.xlu0 %v958, 24
      %v2314 = vpop.permute.xlu0 %2313
      %2315 = vrot.lane.b32.xlu0 %v960, 24
      %v2316 = vpop.permute.xlu0 %2315
      %2317 = vrot.lane.b32.xlu0 %v961, 24
      %v2318 = vpop.permute.xlu0 %2317
      %2319 = vrot.lane.b32.xlu0 %v963, 24
      %v2320 = vpop.permute.xlu0 %2319
      %2321 = vrot.lane.b32.xlu0 %v964, 24
      %v2322 = vpop.permute.xlu0 %2321
      %2323 = vrot.lane.b32.xlu0 %v966, 24
      %v2324 = vpop.permute.xlu0 %2323
      %2325 = vrot.lane.b32.xlu0 %v967, 24
      %v2326 = vpop.permute.xlu0 %2325
      %2327 = vrot.lane.b32.xlu0 %v969, 24
      %v2328 = vpop.permute.xlu0 %2327
      %2329 = vrot.lane.b32.xlu0 %v970, 24
      %v2330 = vpop.permute.xlu0 %2329
      %vm2363 = vcmask 224448
      %2364 = vst.msk [vmem:[#allocation4] sm:$0xf] %vm2363, %v2268
      %2365 = vst.msk [vmem:[#allocation4 + $0x4] sm:$0xf] %vm2363, %v2270
      %2366 = vst.msk [vmem:[#allocation4 + $0x8] sm:$0xf] %vm2363, %v2272
      %2367 = vst.msk [vmem:[#allocation4 + $0xc] sm:$0xf] %vm2363, %v2274
      %2368 = vst.msk [vmem:[#allocation4 + $0x10] sm:$0xf] %vm2363, %v2276
      %2369 = vst.msk [vmem:[#allocation4 + $0x14] sm:$0xf] %vm2363, %v2278
      %2370 = vst.msk [vmem:[#allocation4 + $0x18] sm:$0xf] %vm2363, %v2280
      %2371 = vst.msk [vmem:[#allocation4 + $0x1c] sm:$0xf] %vm2363, %v2282
      %2372 = vst.msk [vmem:[#allocation4 + $0x20] sm:$0xf] %vm2363, %v2284
      %2373 = vst.msk [vmem:[#allocation4 + $0x24] sm:$0xf] %vm2363, %v2286
      %2374 = vst.msk [vmem:[#allocation4 + $0x28] sm:$0xf] %vm2363, %v2288
      %2375 = vst.msk [vmem:[#allocation4 + $0x2c] sm:$0xf] %vm2363, %v2290
      %2376 = vst.msk [vmem:[#allocation4 + $0x30] sm:$0xf] %vm2363, %v2292
      %2377 = vst.msk [vmem:[#allocation4 + $0x34] sm:$0xf] %vm2363, %v2294
      %2378 = vst.msk [vmem:[#allocation4 + $0x38] sm:$0xf] %vm2363, %v2296
      %2379 = vst.msk [vmem:[#allocation4 + $0x3c] sm:$0xf] %vm2363, %v2298
      %2380 = vst.msk [vmem:[#allocation4 + $0x40] sm:$0xf] %vm2363, %v2300
      %2381 = vst.msk [vmem:[#allocation4 + $0x44] sm:$0xf] %vm2363, %v2302
      %2382 = vst.msk [vmem:[#allocation4 + $0x48] sm:$0xf] %vm2363, %v2304
      %2383 = vst.msk [vmem:[#allocation4 + $0x4c] sm:$0xf] %vm2363, %v2306
      %2384 = vst.msk [vmem:[#allocation4 + $0x50] sm:$0xf] %vm2363, %v2308
      %2385 = vst.msk [vmem:[#allocation4 + $0x54] sm:$0xf] %vm2363, %v2310
      %2386 = vst.msk [vmem:[#allocation4 + $0x58] sm:$0xf] %vm2363, %v2312
      %2387 = vst.msk [vmem:[#allocation4 + $0x5c] sm:$0xf] %vm2363, %v2314
      %2388 = vst.msk [vmem:[#allocation4 + $0x60] sm:$0xf] %vm2363, %v2316
      %2389 = vst.msk [vmem:[#allocation4 + $0x64] sm:$0xf] %vm2363, %v2318
      %2390 = vst.msk [vmem:[#allocation4 + $0x68] sm:$0xf] %vm2363, %v2320
      %2391 = vst.msk [vmem:[#allocation4 + $0x6c] sm:$0xf] %vm2363, %v2322
      %2392 = vst.msk [vmem:[#allocation4 + $0x70] sm:$0xf] %vm2363, %v2324
      %2393 = vst.msk [vmem:[#allocation4 + $0x74] sm:$0xf] %vm2363, %v2326
      %2394 = vst.msk [vmem:[#allocation4 + $0x78] sm:$0xf] %vm2363, %v2328
      %2395 = vst.msk [vmem:[#allocation4 + $0x7c] sm:$0xf] %vm2363, %v2330
      %2396 = vrot.lane.b32.xlu0 %v1036, 28
      %v2397 = vpop.permute.xlu0 %2396
      %2398 = vrot.lane.b32.xlu0 %v1046, 28
      %v2399 = vpop.permute.xlu0 %2398
      %2400 = vrot.lane.b32.xlu0 %v1060, 28
      %v2401 = vpop.permute.xlu0 %2400
      %2402 = vrot.lane.b32.xlu0 %v1070, 28
      %v2403 = vpop.permute.xlu0 %2402
      %2404 = vrot.lane.b32.xlu0 %v1084, 28
      %v2405 = vpop.permute.xlu0 %2404
      %2406 = vrot.lane.b32.xlu0 %v1094, 28
      %v2407 = vpop.permute.xlu0 %2406
      %2408 = vrot.lane.b32.xlu0 %v1108, 28
      %v2409 = vpop.permute.xlu0 %2408
      %2410 = vrot.lane.b32.xlu0 %v1118, 28
      %v2411 = vpop.permute.xlu0 %2410
      %2412 = vrot.lane.b32.xlu0 %v1132, 28
      %v2413 = vpop.permute.xlu0 %2412
      %2414 = vrot.lane.b32.xlu0 %v1142, 28
      %v2415 = vpop.permute.xlu0 %2414
      %2416 = vrot.lane.b32.xlu0 %v1156, 28
      %v2417 = vpop.permute.xlu0 %2416
      %2418 = vrot.lane.b32.xlu0 %v1166, 28
      %v2419 = vpop.permute.xlu0 %2418
      %2420 = vrot.lane.b32.xlu0 %v1180, 28
      %v2421 = vpop.permute.xlu0 %2420
      %2422 = vrot.lane.b32.xlu0 %v1190, 28
      %v2423 = vpop.permute.xlu0 %2422
      %2424 = vrot.lane.b32.xlu0 %v1204, 28
      %v2425 = vpop.permute.xlu0 %2424
      %2426 = vrot.lane.b32.xlu0 %v1214, 28
      %v2427 = vpop.permute.xlu0 %2426
      %2428 = vrot.lane.b32.xlu0 %v1228, 28
      %v2429 = vpop.permute.xlu0 %2428
      %2430 = vrot.lane.b32.xlu0 %v1238, 28
      %v2431 = vpop.permute.xlu0 %2430
      %2432 = vrot.lane.b32.xlu0 %v1252, 28
      %v2433 = vpop.permute.xlu0 %2432
      %2434 = vrot.lane.b32.xlu0 %v1262, 28
      %v2435 = vpop.permute.xlu0 %2434
      %2436 = vrot.lane.b32.xlu0 %v1276, 28
      %v2437 = vpop.permute.xlu0 %2436
      %2438 = vrot.lane.b32.xlu0 %v1286, 28
      %v2439 = vpop.permute.xlu0 %2438
      %2440 = vrot.lane.b32.xlu0 %v1300, 28
      %v2441 = vpop.permute.xlu0 %2440
      %2442 = vrot.lane.b32.xlu0 %v1310, 28
      %v2443 = vpop.permute.xlu0 %2442
      %2444 = vrot.lane.b32.xlu0 %v1324, 28
      %v2445 = vpop.permute.xlu0 %2444
      %2446 = vrot.lane.b32.xlu0 %v1334, 28
      %v2447 = vpop.permute.xlu0 %2446
      %2448 = vrot.lane.b32.xlu0 %v1348, 28
      %v2449 = vpop.permute.xlu0 %2448
      %2450 = vrot.lane.b32.xlu0 %v1358, 28
      %v2451 = vpop.permute.xlu0 %2450
      %2452 = vrot.lane.b32.xlu0 %v1535, 28
      %v2453 = vpop.permute.xlu0 %2452
      %2454 = vrot.lane.b32.xlu0 %v1545, 28
      %v2455 = vpop.permute.xlu0 %2454
      %2456 = vrot.lane.b32.xlu0 %v1569, 28
      %v2457 = vpop.permute.xlu0 %2456
      %2458 = vrot.lane.b32.xlu0 %v1579, 28
      %v2459 = vpop.permute.xlu0 %2458
      %vm2492 = vcmask 257248
      %2493 = vst.msk [vmem:[#allocation4] sm:$0xf] %vm2492, %v2397
      %2494 = vst.msk [vmem:[#allocation4 + $0x4] sm:$0xf] %vm2492, %v2399
      %2495 = vst.msk [vmem:[#allocation4 + $0x8] sm:$0xf] %vm2492, %v2401
      %2496 = vst.msk [vmem:[#allocation4 + $0xc] sm:$0xf] %vm2492, %v2403
      %2497 = vst.msk [vmem:[#allocation4 + $0x10] sm:$0xf] %vm2492, %v2405
      %2498 = vst.msk [vmem:[#allocation4 + $0x14] sm:$0xf] %vm2492, %v2407
      %2499 = vst.msk [vmem:[#allocation4 + $0x18] sm:$0xf] %vm2492, %v2409
      %2500 = vst.msk [vmem:[#allocation4 + $0x1c] sm:$0xf] %vm2492, %v2411
      %2501 = vst.msk [vmem:[#allocation4 + $0x20] sm:$0xf] %vm2492, %v2413
      %2502 = vst.msk [vmem:[#allocation4 + $0x24] sm:$0xf] %vm2492, %v2415
      %2503 = vst.msk [vmem:[#allocation4 + $0x28] sm:$0xf] %vm2492, %v2417
      %2504 = vst.msk [vmem:[#allocation4 + $0x2c] sm:$0xf] %vm2492, %v2419
      %2505 = vst.msk [vmem:[#allocation4 + $0x30] sm:$0xf] %vm2492, %v2421
      %2506 = vst.msk [vmem:[#allocation4 + $0x34] sm:$0xf] %vm2492, %v2423
      %2507 = vst.msk [vmem:[#allocation4 + $0x38] sm:$0xf] %vm2492, %v2425
      %2508 = vst.msk [vmem:[#allocation4 + $0x3c] sm:$0xf] %vm2492, %v2427
      %2509 = vst.msk [vmem:[#allocation4 + $0x40] sm:$0xf] %vm2492, %v2429
      %2510 = vst.msk [vmem:[#allocation4 + $0x44] sm:$0xf] %vm2492, %v2431
      %2511 = vst.msk [vmem:[#allocation4 + $0x48] sm:$0xf] %vm2492, %v2433
      %2512 = vst.msk [vmem:[#allocation4 + $0x4c] sm:$0xf] %vm2492, %v2435
      %2513 = vst.msk [vmem:[#allocation4 + $0x50] sm:$0xf] %vm2492, %v2437
      %2514 = vst.msk [vmem:[#allocation4 + $0x54] sm:$0xf] %vm2492, %v2439
      %2515 = vst.msk [vmem:[#allocation4 + $0x58] sm:$0xf] %vm2492, %v2441
      %2516 = vst.msk [vmem:[#allocation4 + $0x5c] sm:$0xf] %vm2492, %v2443
      %2517 = vst.msk [vmem:[#allocation4 + $0x60] sm:$0xf] %vm2492, %v2445
      %2518 = vst.msk [vmem:[#allocation4 + $0x64] sm:$0xf] %vm2492, %v2447
      %2519 = vst.msk [vmem:[#allocation4 + $0x68] sm:$0xf] %vm2492, %v2449
      %2520 = vst.msk [vmem:[#allocation4 + $0x6c] sm:$0xf] %vm2492, %v2451
      %2521 = vst.msk [vmem:[#allocation4 + $0x70] sm:$0xf] %vm2492, %v2453
      %2522 = vst.msk [vmem:[#allocation4 + $0x74] sm:$0xf] %vm2492, %v2455
      %2523 = vst.msk [vmem:[#allocation4 + $0x78] sm:$0xf] %vm2492, %v2457
      %2524 = vst.msk [vmem:[#allocation4 + $0x7c] sm:$0xf] %vm2492, %v2459
      %2525 = vrot.lane.b32.xlu0 %v1427, 32
      %v2526 = vpop.permute.xlu0 %2525
      %2527 = vrot.lane.b32.xlu0 %v1430, 32
      %v2528 = vpop.permute.xlu0 %2527
      %2529 = vrot.lane.b32.xlu0 %v1434, 32
      %v2530 = vpop.permute.xlu0 %2529
      %2531 = vrot.lane.b32.xlu0 %v1437, 32
      %v2532 = vpop.permute.xlu0 %2531
      %2533 = vrot.lane.b32.xlu0 %v1441, 32
      %v2534 = vpop.permute.xlu0 %2533
      %2535 = vrot.lane.b32.xlu0 %v1444, 32
      %v2536 = vpop.permute.xlu0 %2535
      %2537 = vrot.lane.b32.xlu0 %v1448, 32
      %v2538 = vpop.permute.xlu0 %2537
      %2539 = vrot.lane.b32.xlu0 %v1451, 32
      %v2540 = vpop.permute.xlu0 %2539
      %2541 = vrot.lane.b32.xlu0 %v1455, 32
      %v2542 = vpop.permute.xlu0 %2541
      %2543 = vrot.lane.b32.xlu0 %v1458, 32
      %v2544 = vpop.permute.xlu0 %2543
      %2545 = vrot.lane.b32.xlu0 %v1462, 32
      %v2546 = vpop.permute.xlu0 %2545
      %2547 = vrot.lane.b32.xlu0 %v1465, 32
      %v2548 = vpop.permute.xlu0 %2547
      %2549 = vrot.lane.b32.xlu0 %v1469, 32
      %v2550 = vpop.permute.xlu0 %2549
      %2551 = vrot.lane.b32.xlu0 %v1472, 32
      %v2552 = vpop.permute.xlu0 %2551
      %2553 = vrot.lane.b32.xlu0 %v1476, 32
      %v2554 = vpop.permute.xlu0 %2553
      %2555 = vrot.lane.b32.xlu0 %v1479, 32
      %v2556 = vpop.permute.xlu0 %2555
      %2557 = vrot.lane.b32.xlu0 %v1483, 32
      %v2558 = vpop.permute.xlu0 %2557
      %2559 = vrot.lane.b32.xlu0 %v1486, 32
      %v2560 = vpop.permute.xlu0 %2559
      %2561 = vrot.lane.b32.xlu0 %v1490, 32
      %v2562 = vpop.permute.xlu0 %2561
      %2563 = vrot.lane.b32.xlu0 %v1493, 32
      %v2564 = vpop.permute.xlu0 %2563
      %2565 = vrot.lane.b32.xlu0 %v1497, 32
      %v2566 = vpop.permute.xlu0 %2565
      %2567 = vrot.lane.b32.xlu0 %v1500, 32
      %v2568 = vpop.permute.xlu0 %2567
      %2569 = vrot.lane.b32.xlu0 %v1504, 32
      %v2570 = vpop.permute.xlu0 %2569
      %2571 = vrot.lane.b32.xlu0 %v1507, 32
      %v2572 = vpop.permute.xlu0 %2571
      %2573 = vrot.lane.b32.xlu0 %v1511, 32
      %v2574 = vpop.permute.xlu0 %2573
      %2575 = vrot.lane.b32.xlu0 %v1514, 32
      %v2576 = vpop.permute.xlu0 %2575
      %2577 = vrot.lane.b32.xlu0 %v1518, 32
      %v2578 = vpop.permute.xlu0 %2577
      %2579 = vrot.lane.b32.xlu0 %v1521, 32
      %v2580 = vpop.permute.xlu0 %2579
      %2581 = vrot.lane.b32.xlu0 %v1552, 32
      %v2582 = vpop.permute.xlu0 %2581
      %2583 = vrot.lane.b32.xlu0 %v1555, 32
      %v2584 = vpop.permute.xlu0 %2583
      %2585 = vrot.lane.b32.xlu0 %v1586, 32
      %v2586 = vpop.permute.xlu0 %2585
      %2587 = vrot.lane.b32.xlu0 %v1589, 32
      %v2588 = vpop.permute.xlu0 %2587
      %vm2621 = vcmask 290048
      %2622 = vst.msk [vmem:[#allocation4] sm:$0xf] %vm2621, %v2526
      %2623 = vst.msk [vmem:[#allocation4 + $0x4] sm:$0xf] %vm2621, %v2528
      %2624 = vst.msk [vmem:[#allocation4 + $0x8] sm:$0xf] %vm2621, %v2530
      %2625 = vst.msk [vmem:[#allocation4 + $0xc] sm:$0xf] %vm2621, %v2532
      %2626 = vst.msk [vmem:[#allocation4 + $0x10] sm:$0xf] %vm2621, %v2534
      %2627 = vst.msk [vmem:[#allocation4 + $0x14] sm:$0xf] %vm2621, %v2536
      %2628 = vst.msk [vmem:[#allocation4 + $0x18] sm:$0xf] %vm2621, %v2538
      %2629 = vst.msk [vmem:[#allocation4 + $0x1c] sm:$0xf] %vm2621, %v2540
      %2630 = vst.msk [vmem:[#allocation4 + $0x20] sm:$0xf] %vm2621, %v2542
      %2631 = vst.msk [vmem:[#allocation4 + $0x24] sm:$0xf] %vm2621, %v2544
      %2632 = vst.msk [vmem:[#allocation4 + $0x28] sm:$0xf] %vm2621, %v2546
      %2633 = vst.msk [vmem:[#allocation4 + $0x2c] sm:$0xf] %vm2621, %v2548
      %2634 = vst.msk [vmem:[#allocation4 + $0x30] sm:$0xf] %vm2621, %v2550
      %2635 = vst.msk [vmem:[#allocation4 + $0x34] sm:$0xf] %vm2621, %v2552
      %2636 = vst.msk [vmem:[#allocation4 + $0x38] sm:$0xf] %vm2621, %v2554
      %2637 = vst.msk [vmem:[#allocation4 + $0x3c] sm:$0xf] %vm2621, %v2556
      %2638 = vst.msk [vmem:[#allocation4 + $0x40] sm:$0xf] %vm2621, %v2558
      %2639 = vst.msk [vmem:[#allocation4 + $0x44] sm:$0xf] %vm2621, %v2560
      %2640 = vst.msk [vmem:[#allocation4 + $0x48] sm:$0xf] %vm2621, %v2562
      %2641 = vst.msk [vmem:[#allocation4 + $0x4c] sm:$0xf] %vm2621, %v2564
      %2642 = vst.msk [vmem:[#allocation4 + $0x50] sm:$0xf] %vm2621, %v2566
      %2643 = vst.msk [vmem:[#allocation4 + $0x54] sm:$0xf] %vm2621, %v2568
      %2644 = vst.msk [vmem:[#allocation4 + $0x58] sm:$0xf] %vm2621, %v2570
      %2645 = vst.msk [vmem:[#allocation4 + $0x5c] sm:$0xf] %vm2621, %v2572
      %2646 = vst.msk [vmem:[#allocation4 + $0x60] sm:$0xf] %vm2621, %v2574
      %2647 = vst.msk [vmem:[#allocation4 + $0x64] sm:$0xf] %vm2621, %v2576
      %2648 = vst.msk [vmem:[#allocation4 + $0x68] sm:$0xf] %vm2621, %v2578
      %2649 = vst.msk [vmem:[#allocation4 + $0x6c] sm:$0xf] %vm2621, %v2580
      %2650 = vst.msk [vmem:[#allocation4 + $0x70] sm:$0xf] %vm2621, %v2582
      %2651 = vst.msk [vmem:[#allocation4 + $0x74] sm:$0xf] %vm2621, %v2584
      %2652 = vst.msk [vmem:[#allocation4 + $0x78] sm:$0xf] %vm2621, %v2586
      %2653 = vst.msk [vmem:[#allocation4 + $0x7c] sm:$0xf] %vm2621, %v2588
      %v2654 = vld [vmem:[#allocation4] sm:$0xf]
      %v2655 = vld [vmem:[#allocation4 + $0x4] sm:$0xf]
      %v2656 = vld [vmem:[#allocation4 + $0x8] sm:$0xf]
      %v2657 = vld [vmem:[#allocation4 + $0xc] sm:$0xf]
      %v2658 = vld [vmem:[#allocation4 + $0x10] sm:$0xf]
      %v2659 = vld [vmem:[#allocation4 + $0x14] sm:$0xf]
      %v2660 = vld [vmem:[#allocation4 + $0x18] sm:$0xf]
      %v2661 = vld [vmem:[#allocation4 + $0x1c] sm:$0xf]
      %v2662 = vld [vmem:[#allocation4 + $0x20] sm:$0xf]
      %v2663 = vld [vmem:[#allocation4 + $0x24] sm:$0xf]
      %v2664 = vld [vmem:[#allocation4 + $0x28] sm:$0xf]
      %v2665 = vld [vmem:[#allocation4 + $0x2c] sm:$0xf]
      %v2666 = vld [vmem:[#allocation4 + $0x30] sm:$0xf]
      %v2667 = vld [vmem:[#allocation4 + $0x34] sm:$0xf]
      %v2668 = vld [vmem:[#allocation4 + $0x38] sm:$0xf]
      %v2669 = vld [vmem:[#allocation4 + $0x3c] sm:$0xf]
      %v2670 = vld [vmem:[#allocation4 + $0x40] sm:$0xf]
      %v2671 = vld [vmem:[#allocation4 + $0x44] sm:$0xf]
      %v2672 = vld [vmem:[#allocation4 + $0x48] sm:$0xf]
      %v2673 = vld [vmem:[#allocation4 + $0x4c] sm:$0xf]
      %v2674 = vld [vmem:[#allocation4 + $0x50] sm:$0xf]
      %v2675 = vld [vmem:[#allocation4 + $0x54] sm:$0xf]
      %v2676 = vld [vmem:[#allocation4 + $0x58] sm:$0xf]
      %v2677 = vld [vmem:[#allocation4 + $0x5c] sm:$0xf]
      %v2678 = vld [vmem:[#allocation4 + $0x60] sm:$0xf]
      %v2679 = vld [vmem:[#allocation4 + $0x64] sm:$0xf]
      %v2680 = vld [vmem:[#allocation4 + $0x68] sm:$0xf]
      %v2681 = vld [vmem:[#allocation4 + $0x6c] sm:$0xf]
      %v2682 = vld [vmem:[#allocation4 + $0x70] sm:$0xf]
      %v2683 = vld [vmem:[#allocation4 + $0x74] sm:$0xf]
      %v2684 = vld [vmem:[#allocation4 + $0x78] sm:$0xf]
      %v2685 = vld [vmem:[#allocation4 + $0x7c] sm:$0xf]
      %v2686 = vld [vmem:[%s1] sm:$0xf]
      %v2687 = vld [vmem:[%s1 + $0x4] sm:$0xf]
      %v2688 = vld [vmem:[%s1 + $0x8] sm:$0xf]
      %v2689 = vld [vmem:[%s1 + $0xc] sm:$0xf]
      %v2690 = vld [vmem:[%s1 + $0x10] sm:$0x3]
      %v2723 = vunpack.c.l.b16 %v2654
      %v2724 = vunpack.c.l.b16 %v2655
      %v2725 = vunpack.c.l.b16 %v2656
      %v2726 = vunpack.c.l.b16 %v2657
      %v2727 = vunpack.c.l.b16 %v2658
      %v2728 = vunpack.c.l.b16 %v2659
      %v2729 = vunpack.c.l.b16 %v2660
      %v2730 = vunpack.c.l.b16 %v2661
      %v2731 = vunpack.c.l.b16 %v2662
      %v2732 = vunpack.c.l.b16 %v2663
      %v2733 = vunpack.c.l.b16 %v2664
      %v2734 = vunpack.c.l.b16 %v2665
      %v2735 = vunpack.c.l.b16 %v2666
      %v2736 = vunpack.c.l.b16 %v2667
      %v2737 = vunpack.c.l.b16 %v2668
      %v2738 = vunpack.c.l.b16 %v2669
      %v2739 = vunpack.c.l.b16 %v2670
      %v2740 = vunpack.c.l.b16 %v2671
      %v2741 = vunpack.c.l.b16 %v2672
      %v2742 = vunpack.c.l.b16 %v2673
      %v2743 = vunpack.c.l.b16 %v2674
      %v2744 = vunpack.c.l.b16 %v2675
      %v2745 = vunpack.c.l.b16 %v2676
      %v2746 = vunpack.c.l.b16 %v2677
      %v2747 = vunpack.c.l.b16 %v2678
      %v2748 = vunpack.c.l.b16 %v2679
      %v2749 = vunpack.c.l.b16 %v2680
      %v2750 = vunpack.c.l.b16 %v2681
      %v2751 = vunpack.c.l.b16 %v2682
      %v2752 = vunpack.c.l.b16 %v2683
      %v2753 = vunpack.c.l.b16 %v2684
      %v2754 = vunpack.c.l.b16 %v2685
      %v2755 = vpack.c.b16 %v2724, %v2723
      %v2756 = vpack.c.b16 %v2726, %v2725
      %v2757 = vpack.c.b16 %v2728, %v2727
      %v2758 = vpack.c.b16 %v2730, %v2729
      %v2759 = vpack.c.b16 %v2732, %v2731
      %v2760 = vpack.c.b16 %v2734, %v2733
      %v2761 = vpack.c.b16 %v2736, %v2735
      %v2762 = vpack.c.b16 %v2738, %v2737
      %v2763 = vpack.c.b16 %v2740, %v2739
      %v2764 = vpack.c.b16 %v2742, %v2741
      %v2765 = vpack.c.b16 %v2744, %v2743
      %v2766 = vpack.c.b16 %v2746, %v2745
      %v2767 = vpack.c.b16 %v2748, %v2747
      %v2768 = vpack.c.b16 %v2750, %v2749
      %v2769 = vpack.c.b16 %v2752, %v2751
      %v2770 = vpack.c.b16 %v2754, %v2753
      %v2776 = vunpack.c.l.b16 %v2686
      %v2777 = vunpack.c.l.b16 %v2687
      %v2778 = vunpack.c.l.b16 %v2688
      %v2779 = vunpack.c.l.b16 %v2689
      %v2780 = vunpack.c.l.b16 %v2690
      %v2781 = vpack.c.b16 %v2777, %v2776
      %v2782 = vpack.c.b16 %v2779, %v2778
      %v2783 = vpack.c.b16 %v2780, %v2780
      %vm2786 = vcmask 293888
      %v2788 = vsel %vm2786, %v2755, 0
      %v2791 = vsel %vm2786, %v2756, 0
      %v2794 = vsel %vm2786, %v2757, 0
      %v2797 = vsel %vm2786, %v2758, 0
      %v2800 = vsel %vm2786, %v2759, 0
      %v2803 = vsel %vm2786, %v2760, 0
      %v2806 = vsel %vm2786, %v2761, 0
      %v2809 = vsel %vm2786, %v2762, 0
      %v2812 = vsel %vm2786, %v2763, 0
      %v2815 = vsel %vm2786, %v2764, 0
      %v2818 = vsel %vm2786, %v2765, 0
      %v2821 = vsel %vm2786, %v2766, 0
      %v2824 = vsel %vm2786, %v2767, 0
      %v2827 = vsel %vm2786, %v2768, 0
      %v2830 = vsel %vm2786, %v2769, 0
      %v2833 = vsel %vm2786, %v2770, 0
      %vm2835 = vcmask 1041408
      %v2837 = vsel %vm2835, %v2783, 0
      %2839 = vmatpush.bf16.msra.mxu0 0
      %2840 = vmatpush.bf16.msra.mxu0 0
      %2841 = vmatpush.bf16.msra.mxu0 0
      %2842 = vmatpush.bf16.msra.mxu0 0
      %2843 = vmatpush.bf16.msra.mxu0 0
      %2844 = vmatpush.bf16.msra.mxu0 %v2837
      %2845 = vmatpush.bf16.msra.mxu0 %v2782
      %2846 = vmatpush.bf16.msra.mxu0 %v2781
      %2847 = vmatmul.bf16.gmra.mxu0 %v2788
      %v2848 = vpop.f32.mrf.mxu0
      %v2849 = vadd.f32 0.0, %v2848
      %v2850 = vpop.f32.mrf.mxu0
      %v2851 = vadd.f32 0.0, %v2850
      %2852 = vmatmul.bf16.gmra.mxu0 %v2791
      %v2853 = vpop.f32.mrf.mxu0
      %v2854 = vadd.f32 0.0, %v2853
      %v2855 = vpop.f32.mrf.mxu0
      %v2856 = vadd.f32 0.0, %v2855
      %2857 = vmatmul.bf16.gmra.mxu0 %v2794
      %v2858 = vpop.f32.mrf.mxu0
      %v2859 = vadd.f32 0.0, %v2858
      %v2860 = vpop.f32.mrf.mxu0
      %v2861 = vadd.f32 0.0, %v2860
      %2862 = vmatmul.bf16.gmra.mxu0 %v2797
      %v2863 = vpop.f32.mrf.mxu0
      %v2864 = vadd.f32 0.0, %v2863
      %v2865 = vpop.f32.mrf.mxu0
      %v2866 = vadd.f32 0.0, %v2865
      %2867 = vmatmul.bf16.gmra.mxu0 %v2800
      %v2868 = vpop.f32.mrf.mxu0
      %v2869 = vadd.f32 0.0, %v2868
      %v2870 = vpop.f32.mrf.mxu0
      %v2871 = vadd.f32 0.0, %v2870
      %2872 = vmatmul.bf16.gmra.mxu0 %v2803
      %v2873 = vpop.f32.mrf.mxu0
      %v2874 = vadd.f32 0.0, %v2873
      %v2875 = vpop.f32.mrf.mxu0
      %v2876 = vadd.f32 0.0, %v2875
      %2877 = vmatmul.bf16.gmra.mxu0 %v2806
      %v2878 = vpop.f32.mrf.mxu0
      %v2879 = vadd.f32 0.0, %v2878
      %v2880 = vpop.f32.mrf.mxu0
      %v2881 = vadd.f32 0.0, %v2880
      %2882 = vmatmul.bf16.gmra.mxu0 %v2809
      %v2883 = vpop.f32.mrf.mxu0
      %v2884 = vadd.f32 0.0, %v2883
      %v2885 = vpop.f32.mrf.mxu0
      %v2886 = vadd.f32 0.0, %v2885
      %2887 = vmatmul.bf16.gmra.mxu0 %v2812
      %v2888 = vpop.f32.mrf.mxu0
      %v2889 = vadd.f32 0.0, %v2888
      %v2890 = vpop.f32.mrf.mxu0
      %v2891 = vadd.f32 0.0, %v2890
      %2892 = vmatmul.bf16.gmra.mxu0 %v2815
      %v2893 = vpop.f32.mrf.mxu0
      %v2894 = vadd.f32 0.0, %v2893
      %v2895 = vpop.f32.mrf.mxu0
      %v2896 = vadd.f32 0.0, %v2895
      %2897 = vmatmul.bf16.gmra.mxu0 %v2818
      %v2898 = vpop.f32.mrf.mxu0
      %v2899 = vadd.f32 0.0, %v2898
      %v2900 = vpop.f32.mrf.mxu0
      %v2901 = vadd.f32 0.0, %v2900
      %2902 = vmatmul.bf16.gmra.mxu0 %v2821
      %v2903 = vpop.f32.mrf.mxu0
      %v2904 = vadd.f32 0.0, %v2903
      %v2905 = vpop.f32.mrf.mxu0
      %v2906 = vadd.f32 0.0, %v2905
      %2907 = vmatmul.bf16.gmra.mxu0 %v2824
      %v2908 = vpop.f32.mrf.mxu0
      %v2909 = vadd.f32 0.0, %v2908
      %v2910 = vpop.f32.mrf.mxu0
      %v2911 = vadd.f32 0.0, %v2910
      %2912 = vmatmul.bf16.gmra.mxu0 %v2827
      %v2913 = vpop.f32.mrf.mxu0
      %v2914 = vadd.f32 0.0, %v2913
      %v2915 = vpop.f32.mrf.mxu0
      %v2916 = vadd.f32 0.0, %v2915
      %2917 = vmatmul.bf16.gmra.mxu0 %v2830
      %v2918 = vpop.f32.mrf.mxu0
      %v2919 = vadd.f32 0.0, %v2918
      %v2920 = vpop.f32.mrf.mxu0
      %v2921 = vadd.f32 0.0, %v2920
      %2922 = vmatmul.bf16.gmra.mxu0 %v2833
      %v2923 = vpop.f32.mrf.mxu0
      %v2924 = vadd.f32 0.0, %v2923
      %v2925 = vpop.f32.mrf.mxu0
      %v2926 = vadd.f32 0.0, %v2925
      %2927 = vdwg.mxu0
      %v2928 = vld [vmem:[%s2] sm:$0x1]
      %v2930 = vperm.slane %v2928, 0
      %v2932 = vmul.f32 %v2849, %v2930
      %v2933 = vmul.f32 %v2851, %v2930
      %v2934 = vmul.f32 %v2854, %v2930
      %v2935 = vmul.f32 %v2856, %v2930
      %v2936 = vmul.f32 %v2859, %v2930
      %v2937 = vmul.f32 %v2861, %v2930
      %v2938 = vmul.f32 %v2864, %v2930
      %v2939 = vmul.f32 %v2866, %v2930
      %v2940 = vmul.f32 %v2869, %v2930
      %v2941 = vmul.f32 %v2871, %v2930
      %v2942 = vmul.f32 %v2874, %v2930
      %v2943 = vmul.f32 %v2876, %v2930
      %v2944 = vmul.f32 %v2879, %v2930
      %v2945 = vmul.f32 %v2881, %v2930
      %v2946 = vmul.f32 %v2884, %v2930
      %v2947 = vmul.f32 %v2886, %v2930
      %v2948 = vmul.f32 %v2889, %v2930
      %v2949 = vmul.f32 %v2891, %v2930
      %v2950 = vmul.f32 %v2894, %v2930
      %v2951 = vmul.f32 %v2896, %v2930
      %v2952 = vmul.f32 %v2899, %v2930
      %v2953 = vmul.f32 %v2901, %v2930
      %v2954 = vmul.f32 %v2904, %v2930
      %v2955 = vmul.f32 %v2906, %v2930
      %v2956 = vmul.f32 %v2909, %v2930
      %v2957 = vmul.f32 %v2911, %v2930
      %v2958 = vmul.f32 %v2914, %v2930
      %v2959 = vmul.f32 %v2916, %v2930
      %v2960 = vmul.f32 %v2919, %v2930
      %v2961 = vmul.f32 %v2921, %v2930
      %v2962 = vmul.f32 %v2924, %v2930
      %v2963 = vmul.f32 %v2926, %v2930
      %v2964 = vld [vmem:[%s3] sm:$0x1]
      %v2966 = vperm.slane %v2964, 0
      %v2968 = vadd.f32 %v2932, %v2966
      %v2969 = vadd.f32 %v2933, %v2966
      %v2970 = vadd.f32 %v2934, %v2966
      %v2971 = vadd.f32 %v2935, %v2966
      %v2972 = vadd.f32 %v2936, %v2966
      %v2973 = vadd.f32 %v2937, %v2966
      %v2974 = vadd.f32 %v2938, %v2966
      %v2975 = vadd.f32 %v2939, %v2966
      %v2976 = vadd.f32 %v2940, %v2966
      %v2977 = vadd.f32 %v2941, %v2966
      %v2978 = vadd.f32 %v2942, %v2966
      %v2979 = vadd.f32 %v2943, %v2966
      %v2980 = vadd.f32 %v2944, %v2966
      %v2981 = vadd.f32 %v2945, %v2966
      %v2982 = vadd.f32 %v2946, %v2966
      %v2983 = vadd.f32 %v2947, %v2966
      %v2984 = vadd.f32 %v2948, %v2966
      %v2985 = vadd.f32 %v2949, %v2966
      %v2986 = vadd.f32 %v2950, %v2966
      %v2987 = vadd.f32 %v2951, %v2966
      %v2988 = vadd.f32 %v2952, %v2966
      %v2989 = vadd.f32 %v2953, %v2966
      %v2990 = vadd.f32 %v2954, %v2966
      %v2991 = vadd.f32 %v2955, %v2966
      %v2992 = vadd.f32 %v2956, %v2966
      %v2993 = vadd.f32 %v2957, %v2966
      %v2994 = vadd.f32 %v2958, %v2966
      %v2995 = vadd.f32 %v2959, %v2966
      %v2996 = vadd.f32 %v2960, %v2966
      %v2997 = vadd.f32 %v2961, %v2966
      %v2998 = vadd.f32 %v2962, %v2966
      %v2999 = vadd.f32 %v2963, %v2966
      %v3000 = vmax.f32 %v2968, 0.0
      %v3001 = vmax.f32 %v2969, 0.0
      %v3002 = vmax.f32 %v2970, 0.0
      %v3003 = vmax.f32 %v2971, 0.0
      %v3004 = vmax.f32 %v2972, 0.0
      %v3005 = vmax.f32 %v2973, 0.0
      %v3006 = vmax.f32 %v2974, 0.0
      %v3007 = vmax.f32 %v2975, 0.0
      %v3008 = vmax.f32 %v2976, 0.0
      %v3009 = vmax.f32 %v2977, 0.0
      %v3010 = vmax.f32 %v2978, 0.0
      %v3011 = vmax.f32 %v2979, 0.0
      %v3012 = vmax.f32 %v2980, 0.0
      %v3013 = vmax.f32 %v2981, 0.0
      %v3014 = vmax.f32 %v2982, 0.0
      %v3015 = vmax.f32 %v2983, 0.0
      %v3016 = vmax.f32 %v2984, 0.0
      %v3017 = vmax.f32 %v2985, 0.0
      %v3018 = vmax.f32 %v2986, 0.0
      %v3019 = vmax.f32 %v2987, 0.0
      %v3020 = vmax.f32 %v2988, 0.0
      %v3021 = vmax.f32 %v2989, 0.0
      %v3022 = vmax.f32 %v2990, 0.0
      %v3023 = vmax.f32 %v2991, 0.0
      %v3024 = vmax.f32 %v2992, 0.0
      %v3025 = vmax.f32 %v2993, 0.0
      %v3026 = vmax.f32 %v2994, 0.0
      %v3027 = vmax.f32 %v2995, 0.0
      %v3028 = vmax.f32 %v2996, 0.0
      %v3029 = vmax.f32 %v2997, 0.0
      %v3030 = vmax.f32 %v2998, 0.0
      %v3031 = vmax.f32 %v2999, 0.0
      %vm3032 = vcmask 60416
      %3033 = vst.msk [vmem:[#allocation3] sm:$0xf] %vm3032, 0
      %3034 = vst.msk [vmem:[#allocation3 + $0x4] sm:$0xf] %vm3032, 0
      %vm3035 = vcmask 57344
      %3036 = vst.msk [vmem:[#allocation3 + $0x8] sm:$0x1] %vm3035, 0
      %s3037 = scalar_lea.vmem [#allocation3], 204
      %3038 = vst.msk [vmem:[%s3037] sm:$0xf] %vm3032, 0
      %3039 = vst.msk [vmem:[%s3037 + $0x4] sm:$0xf] %vm3032, 0
      %3040 = vst.msk [vmem:[%s3037 + $0x8] sm:$0x1] %vm3035, 0
      %v3041 = vpack.c.bf16 %v3000, %v3000
      %v3042 = vpack.c.bf16 %v3001, %v3001
      %v3043 = vpack.c.bf16 %v3002, %v3002
      %v3044 = vpack.c.bf16 %v3003, %v3003
      %v3045 = vpack.c.bf16 %v3004, %v3004
      %v3046 = vpack.c.bf16 %v3005, %v3005
      %v3047 = vpack.c.bf16 %v3006, %v3006
      %v3048 = vpack.c.bf16 %v3007, %v3007
      %v3049 = vpack.c.bf16 %v3008, %v3008
      %v3050 = vpack.c.bf16 %v3009, %v3009
      %v3051 = vpack.c.bf16 %v3010, %v3010
      %v3052 = vpack.c.bf16 %v3011, %v3011
      %v3053 = vpack.c.bf16 %v3012, %v3012
      %v3054 = vpack.c.bf16 %v3013, %v3013
      %v3055 = vpack.c.bf16 %v3014, %v3014
      %v3056 = vpack.c.bf16 %v3015, %v3015
      %v3057 = vpack.c.bf16 %v3016, %v3016
      %v3058 = vpack.c.bf16 %v3017, %v3017
      %v3059 = vpack.c.bf16 %v3018, %v3018
      %v3060 = vpack.c.bf16 %v3019, %v3019
      %v3061 = vpack.c.bf16 %v3020, %v3020
      %v3062 = vpack.c.bf16 %v3021, %v3021
      %v3063 = vpack.c.bf16 %v3022, %v3022
      %v3064 = vpack.c.bf16 %v3023, %v3023
      %v3065 = vpack.c.bf16 %v3024, %v3024
      %v3066 = vpack.c.bf16 %v3025, %v3025
      %v3067 = vpack.c.bf16 %v3026, %v3026
      %v3068 = vpack.c.bf16 %v3027, %v3027
      %v3069 = vpack.c.bf16 %v3028, %v3028
      %v3070 = vpack.c.bf16 %v3029, %v3029
      %v3071 = vpack.c.bf16 %v3030, %v3030
      %v3072 = vpack.c.bf16 %v3031, %v3031
      %v3105 = vunpack.c.l.b16 %v3041
      %v3106 = vunpack.c.l.b16 %v3042
      %v3107 = vunpack.c.l.b16 %v3043
      %v3108 = vunpack.c.l.b16 %v3044
      %v3109 = vunpack.c.l.b16 %v3045
      %v3110 = vunpack.c.l.b16 %v3046
      %v3111 = vunpack.c.l.b16 %v3047
      %v3112 = vunpack.c.l.b16 %v3048
      %v3113 = vunpack.c.l.b16 %v3049
      %v3114 = vunpack.c.l.b16 %v3050
      %v3115 = vunpack.c.l.b16 %v3051
      %v3116 = vunpack.c.l.b16 %v3052
      %v3117 = vunpack.c.l.b16 %v3053
      %v3118 = vunpack.c.l.b16 %v3054
      %v3119 = vunpack.c.l.b16 %v3055
      %v3120 = vunpack.c.l.b16 %v3056
      %v3121 = vunpack.c.l.b16 %v3057
      %v3122 = vunpack.c.l.b16 %v3058
      %v3123 = vunpack.c.l.b16 %v3059
      %v3124 = vunpack.c.l.b16 %v3060
      %v3125 = vunpack.c.l.b16 %v3061
      %v3126 = vunpack.c.l.b16 %v3062
      %v3127 = vunpack.c.l.b16 %v3063
      %v3128 = vunpack.c.l.b16 %v3064
      %v3129 = vunpack.c.l.b16 %v3065
      %v3130 = vunpack.c.l.b16 %v3066
      %v3131 = vunpack.c.l.b16 %v3067
      %v3132 = vunpack.c.l.b16 %v3068
      %v3133 = vunpack.c.l.b16 %v3069
      %v3134 = vunpack.c.l.b16 %v3070
      %v3135 = vunpack.c.l.b16 %v3071
      %v3136 = vunpack.c.l.b16 %v3072
      %v3137 = vpack.c.b16 %v3106, %v3105
      %v3138 = vpack.c.b16 %v3108, %v3107
      %v3139 = vpack.c.b16 %v3110, %v3109
      %v3140 = vpack.c.b16 %v3112, %v3111
      %v3141 = vpack.c.b16 %v3114, %v3113
      %v3142 = vpack.c.b16 %v3116, %v3115
      %v3143 = vpack.c.b16 %v3118, %v3117
      %v3144 = vpack.c.b16 %v3120, %v3119
      %v3145 = vpack.c.b16 %v3122, %v3121
      %v3146 = vpack.c.b16 %v3124, %v3123
      %v3147 = vpack.c.b16 %v3126, %v3125
      %v3148 = vpack.c.b16 %v3128, %v3127
      %v3149 = vpack.c.b16 %v3130, %v3129
      %v3150 = vpack.c.b16 %v3132, %v3131
      %v3151 = vpack.c.b16 %v3134, %v3133
      %v3152 = vpack.c.b16 %v3136, %v3135
      %v3154 = vshrl.u32 %v3137, 16
      %v3156 = vrot.slane %v3154, 7
      %v3157 = vshll.u32 %v3137, 16
      %v3159 = vor.u32 %v3156, %v3157
      %v3161 = vshrl.u32 %v3138, 16
      %v3163 = vrot.slane %v3161, 7
      %v3164 = vshll.u32 %v3138, 16
      %v3166 = vor.u32 %v3163, %v3164
      %v3168 = vshrl.u32 %v3139, 16
      %v3170 = vrot.slane %v3168, 7
      %v3171 = vshll.u32 %v3139, 16
      %v3173 = vor.u32 %v3170, %v3171
      %v3175 = vshrl.u32 %v3140, 16
      %v3177 = vrot.slane %v3175, 7
      %v3178 = vshll.u32 %v3140, 16
      %v3180 = vor.u32 %v3177, %v3178
      %v3182 = vshrl.u32 %v3141, 16
      %v3184 = vrot.slane %v3182, 7
      %v3185 = vshll.u32 %v3141, 16
      %v3187 = vor.u32 %v3184, %v3185
      %v3189 = vshrl.u32 %v3142, 16
      %v3191 = vrot.slane %v3189, 7
      %v3192 = vshll.u32 %v3142, 16
      %v3194 = vor.u32 %v3191, %v3192
      %v3196 = vshrl.u32 %v3143, 16
      %v3198 = vrot.slane %v3196, 7
      %v3199 = vshll.u32 %v3143, 16
      %v3201 = vor.u32 %v3198, %v3199
      %v3203 = vshrl.u32 %v3144, 16
      %v3205 = vrot.slane %v3203, 7
      %v3206 = vshll.u32 %v3144, 16
      %v3208 = vor.u32 %v3205, %v3206
      %v3210 = vshrl.u32 %v3145, 16
      %v3212 = vrot.slane %v3210, 7
      %v3213 = vshll.u32 %v3145, 16
      %v3215 = vor.u32 %v3212, %v3213
      %v3217 = vshrl.u32 %v3146, 16
      %v3219 = vrot.slane %v3217, 7
      %v3220 = vshll.u32 %v3146, 16
      %v3222 = vor.u32 %v3219, %v3220
      %v3224 = vshrl.u32 %v3147, 16
      %v3226 = vrot.slane %v3224, 7
      %v3227 = vshll.u32 %v3147, 16
      %v3229 = vor.u32 %v3226, %v3227
      %v3231 = vshrl.u32 %v3148, 16
      %v3233 = vrot.slane %v3231, 7
      %v3234 = vshll.u32 %v3148, 16
      %v3236 = vor.u32 %v3233, %v3234
      %v3238 = vshrl.u32 %v3149, 16
      %v3240 = vrot.slane %v3238, 7
      %v3241 = vshll.u32 %v3149, 16
      %v3243 = vor.u32 %v3240, %v3241
      %v3245 = vshrl.u32 %v3150, 16
      %v3247 = vrot.slane %v3245, 7
      %v3248 = vshll.u32 %v3150, 16
      %v3250 = vor.u32 %v3247, %v3248
      %v3252 = vshrl.u32 %v3151, 16
      %v3254 = vrot.slane %v3252, 7
      %v3255 = vshll.u32 %v3151, 16
      %v3257 = vor.u32 %v3254, %v3255
      %v3259 = vshrl.u32 %v3152, 16
      %v3261 = vrot.slane %v3259, 7
      %v3262 = vshll.u32 %v3152, 16
      %v3264 = vor.u32 %v3261, %v3262
      %v3297 = vsel %vm660, 0, %v3159
      %v3298 = vsel %vm660, 0, %v3166
      %v3299 = vsel %vm660, 0, %v3173
      %v3300 = vsel %vm660, 0, %v3180
      %v3301 = vsel %vm660, 0, %v3187
      %v3302 = vsel %vm660, 0, %v3194
      %v3303 = vsel %vm660, 0, %v3201
      %v3304 = vsel %vm660, 0, %v3208
      %v3305 = vsel %vm660, 0, %v3215
      %v3306 = vsel %vm660, 0, %v3222
      %v3307 = vsel %vm660, 0, %v3229
      %v3308 = vsel %vm660, 0, %v3236
      %v3309 = vsel %vm660, 0, %v3243
      %v3310 = vsel %vm660, 0, %v3250
      %v3311 = vsel %vm660, 0, %v3257
      %v3312 = vsel %vm660, 0, %v3264
      %v3313 = vsel %vm660, %v3156, 0
      %v3314 = vsel %vm660, %v3163, 0
      %v3315 = vsel %vm660, %v3170, 0
      %v3316 = vsel %vm660, %v3177, 0
      %v3317 = vsel %vm660, %v3184, 0
      %v3318 = vsel %vm660, %v3191, 0
      %v3319 = vsel %vm660, %v3198, 0
      %v3320 = vsel %vm660, %v3205, 0
      %v3321 = vsel %vm660, %v3212, 0
      %v3322 = vsel %vm660, %v3219, 0
      %v3323 = vsel %vm660, %v3226, 0
      %v3324 = vsel %vm660, %v3233, 0
      %v3325 = vsel %vm660, %v3240, 0
      %v3326 = vsel %vm660, %v3247, 0
      %v3327 = vsel %vm660, %v3254, 0
      %v3328 = vsel %vm660, %v3261, 0
      %v3361 = vunpack.c.l.b16 %v3297
      %v3362 = vunpack.c.h.b16 %v3297
      %v3363 = vunpack.c.l.b16 %v3313
      %v3364 = vunpack.c.l.b16 %v3298
      %v3365 = vunpack.c.h.b16 %v3298
      %v3366 = vunpack.c.l.b16 %v3314
      %v3367 = vunpack.c.l.b16 %v3299
      %v3368 = vunpack.c.h.b16 %v3299
      %v3369 = vunpack.c.l.b16 %v3315
      %v3370 = vunpack.c.l.b16 %v3300
      %v3371 = vunpack.c.h.b16 %v3300
      %v3372 = vunpack.c.l.b16 %v3316
      %v3373 = vunpack.c.l.b16 %v3301
      %v3374 = vunpack.c.h.b16 %v3301
      %v3375 = vunpack.c.l.b16 %v3317
      %v3376 = vunpack.c.l.b16 %v3302
      %v3377 = vunpack.c.h.b16 %v3302
      %v3378 = vunpack.c.l.b16 %v3318
      %v3379 = vunpack.c.l.b16 %v3303
      %v3380 = vunpack.c.h.b16 %v3303
      %v3381 = vunpack.c.l.b16 %v3319
      %v3382 = vunpack.c.l.b16 %v3304
      %v3383 = vunpack.c.h.b16 %v3304
      %v3384 = vunpack.c.l.b16 %v3320
      %v3385 = vunpack.c.l.b16 %v3305
      %v3386 = vunpack.c.h.b16 %v3305
      %v3387 = vunpack.c.l.b16 %v3321
      %v3388 = vunpack.c.l.b16 %v3306
      %v3389 = vunpack.c.h.b16 %v3306
      %v3390 = vunpack.c.l.b16 %v3322
      %v3391 = vunpack.c.l.b16 %v3307
      %v3392 = vunpack.c.h.b16 %v3307
      %v3393 = vunpack.c.l.b16 %v3323
      %v3394 = vunpack.c.l.b16 %v3308
      %v3395 = vunpack.c.h.b16 %v3308
      %v3396 = vunpack.c.l.b16 %v3324
      %v3397 = vunpack.c.l.b16 %v3309
      %v3398 = vunpack.c.h.b16 %v3309
      %v3399 = vunpack.c.l.b16 %v3325
      %v3400 = vunpack.c.l.b16 %v3310
      %v3401 = vunpack.c.h.b16 %v3310
      %v3402 = vunpack.c.l.b16 %v3326
      %v3403 = vunpack.c.l.b16 %v3311
      %v3404 = vunpack.c.h.b16 %v3311
      %v3405 = vunpack.c.l.b16 %v3327
      %v3406 = vunpack.c.l.b16 %v3312
      %v3407 = vunpack.c.h.b16 %v3312
      %v3408 = vunpack.c.l.b16 %v3328
      %v3409 = vpack.c.b16 %v3361, %v3361
      %v3410 = vpack.c.b16 %v3362, %v3362
      %v3411 = vpack.c.b16 %v3363, %v3363
      %v3412 = vpack.c.b16 %v3364, %v3364
      %v3413 = vpack.c.b16 %v3365, %v3365
      %v3414 = vpack.c.b16 %v3366, %v3366
      %v3415 = vpack.c.b16 %v3367, %v3367
      %v3416 = vpack.c.b16 %v3368, %v3368
      %v3417 = vpack.c.b16 %v3369, %v3369
      %v3418 = vpack.c.b16 %v3370, %v3370
      %v3419 = vpack.c.b16 %v3371, %v3371
      %v3420 = vpack.c.b16 %v3372, %v3372
      %v3421 = vpack.c.b16 %v3373, %v3373
      %v3422 = vpack.c.b16 %v3374, %v3374
      %v3423 = vpack.c.b16 %v3375, %v3375
      %v3424 = vpack.c.b16 %v3376, %v3376
      %v3425 = vpack.c.b16 %v3377, %v3377
      %v3426 = vpack.c.b16 %v3378, %v3378
      %v3427 = vpack.c.b16 %v3379, %v3379
      %v3428 = vpack.c.b16 %v3380, %v3380
      %v3429 = vpack.c.b16 %v3381, %v3381
      %v3430 = vpack.c.b16 %v3382, %v3382
      %v3431 = vpack.c.b16 %v3383, %v3383
      %v3432 = vpack.c.b16 %v3384, %v3384
      %v3433 = vpack.c.b16 %v3385, %v3385
      %v3434 = vpack.c.b16 %v3386, %v3386
      %v3435 = vpack.c.b16 %v3387, %v3387
      %v3436 = vpack.c.b16 %v3388, %v3388
      %v3437 = vpack.c.b16 %v3389, %v3389
      %v3438 = vpack.c.b16 %v3390, %v3390
      %v3439 = vpack.c.b16 %v3391, %v3391
      %v3440 = vpack.c.b16 %v3392, %v3392
      %v3441 = vpack.c.b16 %v3393, %v3393
      %v3442 = vpack.c.b16 %v3394, %v3394
      %v3443 = vpack.c.b16 %v3395, %v3395
      %v3444 = vpack.c.b16 %v3396, %v3396
      %v3445 = vpack.c.b16 %v3397, %v3397
      %v3446 = vpack.c.b16 %v3398, %v3398
      %v3447 = vpack.c.b16 %v3399, %v3399
      %v3448 = vpack.c.b16 %v3400, %v3400
      %v3449 = vpack.c.b16 %v3401, %v3401
      %v3450 = vpack.c.b16 %v3402, %v3402
      %v3451 = vpack.c.b16 %v3403, %v3403
      %v3452 = vpack.c.b16 %v3404, %v3404
      %v3453 = vpack.c.b16 %v3405, %v3405
      %v3454 = vpack.c.b16 %v3406, %v3406
      %v3455 = vpack.c.b16 %v3407, %v3407
      %v3456 = vpack.c.b16 %v3408, %v3408
      %s3505 = scalar_lea.vmem [#allocation3], 12
      %3506 = vst.msk [vmem:[%s3505] sm:$0xf] %vm3032, %v3409
      %3507 = vst.msk [vmem:[%s3505 + $0x4] sm:$0xf] %vm3032, %v3410
      %3508 = vst.msk [vmem:[%s3505 + $0x8] sm:$0x1] %vm3035, %v3411
      %3509 = vst.msk [vmem:[%s3505 + $0xc] sm:$0xf] %vm3032, %v3412
      %3510 = vst.msk [vmem:[%s3505 + $0x10] sm:$0xf] %vm3032, %v3413
      %3511 = vst.msk [vmem:[%s3505 + $0x14] sm:$0x1] %vm3035, %v3414
      %3512 = vst.msk [vmem:[%s3505 + $0x18] sm:$0xf] %vm3032, %v3415
      %3513 = vst.msk [vmem:[%s3505 + $0x1c] sm:$0xf] %vm3032, %v3416
      %3514 = vst.msk [vmem:[%s3505 + $0x20] sm:$0x1] %vm3035, %v3417
      %3515 = vst.msk [vmem:[%s3505 + $0x24] sm:$0xf] %vm3032, %v3418
      %3516 = vst.msk [vmem:[%s3505 + $0x28] sm:$0xf] %vm3032, %v3419
      %3517 = vst.msk [vmem:[%s3505 + $0x2c] sm:$0x1] %vm3035, %v3420
      %3518 = vst.msk [vmem:[%s3505 + $0x30] sm:$0xf] %vm3032, %v3421
      %3519 = vst.msk [vmem:[%s3505 + $0x34] sm:$0xf] %vm3032, %v3422
      %3520 = vst.msk [vmem:[%s3505 + $0x38] sm:$0x1] %vm3035, %v3423
      %3521 = vst.msk [vmem:[%s3505 + $0x3c] sm:$0xf] %vm3032, %v3424
      %3522 = vst.msk [vmem:[%s3505 + $0x40] sm:$0xf] %vm3032, %v3425
      %3523 = vst.msk [vmem:[%s3505 + $0x44] sm:$0x1] %vm3035, %v3426
      %3524 = vst.msk [vmem:[%s3505 + $0x48] sm:$0xf] %vm3032, %v3427
      %3525 = vst.msk [vmem:[%s3505 + $0x4c] sm:$0xf] %vm3032, %v3428
      %3526 = vst.msk [vmem:[%s3505 + $0x50] sm:$0x1] %vm3035, %v3429
      %3527 = vst.msk [vmem:[%s3505 + $0x54] sm:$0xf] %vm3032, %v3430
      %3528 = vst.msk [vmem:[%s3505 + $0x58] sm:$0xf] %vm3032, %v3431
      %3529 = vst.msk [vmem:[%s3505 + $0x5c] sm:$0x1] %vm3035, %v3432
      %3530 = vst.msk [vmem:[%s3505 + $0x60] sm:$0xf] %vm3032, %v3433
      %3531 = vst.msk [vmem:[%s3505 + $0x64] sm:$0xf] %vm3032, %v3434
      %3532 = vst.msk [vmem:[%s3505 + $0x68] sm:$0x1] %vm3035, %v3435
      %3533 = vst.msk [vmem:[%s3505 + $0x6c] sm:$0xf] %vm3032, %v3436
      %3534 = vst.msk [vmem:[%s3505 + $0x70] sm:$0xf] %vm3032, %v3437
      %3535 = vst.msk [vmem:[%s3505 + $0x74] sm:$0x1] %vm3035, %v3438
      %3536 = vst.msk [vmem:[%s3505 + $0x78] sm:$0xf] %vm3032, %v3439
      %3537 = vst.msk [vmem:[%s3505 + $0x7c] sm:$0xf] %vm3032, %v3440
      %3538 = vst.msk [vmem:[%s3505 + $0x80] sm:$0x1] %vm3035, %v3441
      %3539 = vst.msk [vmem:[%s3505 + $0x84] sm:$0xf] %vm3032, %v3442
      %3540 = vst.msk [vmem:[%s3505 + $0x88] sm:$0xf] %vm3032, %v3443
      %3541 = vst.msk [vmem:[%s3505 + $0x8c] sm:$0x1] %vm3035, %v3444
      %3542 = vst.msk [vmem:[%s3505 + $0x90] sm:$0xf] %vm3032, %v3445
      %3543 = vst.msk [vmem:[%s3505 + $0x94] sm:$0xf] %vm3032, %v3446
      %3544 = vst.msk [vmem:[%s3505 + $0x98] sm:$0x1] %vm3035, %v3447
      %3545 = vst.msk [vmem:[%s3505 + $0x9c] sm:$0xf] %vm3032, %v3448
      %3546 = vst.msk [vmem:[%s3505 + $0xa0] sm:$0xf] %vm3032, %v3449
      %3547 = vst.msk [vmem:[%s3505 + $0xa4] sm:$0x1] %vm3035, %v3450
      %3548 = vst.msk [vmem:[%s3505 + $0xa8] sm:$0xf] %vm3032, %v3451
      %3549 = vst.msk [vmem:[%s3505 + $0xac] sm:$0xf] %vm3032, %v3452
      %3550 = vst.msk [vmem:[%s3505 + $0xb0] sm:$0x1] %vm3035, %v3453
      %3551 = vst.msk [vmem:[%s3505 + $0xb4] sm:$0xf] %vm3032, %v3454
      %3552 = vst.msk [vmem:[%s3505 + $0xb8] sm:$0xf] %vm3032, %v3455
      %3553 = vst.msk [vmem:[%s3505 + $0xbc] sm:$0x1] %vm3035, %v3456
      %v3554 = vld [vmem:[#allocation3] sm:$0xf]
      %v3555 = vld [vmem:[#allocation3 + $0x4] sm:$0xf]
      %v3556 = vld [vmem:[#allocation3 + $0x8] sm:$0x1]
      %v3557 = vld [vmem:[#allocation3 + $0xc] sm:$0xf]
      %v3558 = vld [vmem:[#allocation3 + $0x10] sm:$0xf]
      %v3559 = vld [vmem:[#allocation3 + $0x14] sm:$0x1]
      %v3560 = vld [vmem:[#allocation3 + $0x18] sm:$0xf]
      %v3561 = vld [vmem:[#allocation3 + $0x1c] sm:$0xf]
      %v3562 = vld [vmem:[#allocation3 + $0x20] sm:$0x1]
      %v3563 = vld [vmem:[#allocation3 + $0x24] sm:$0xf]
      %v3564 = vld [vmem:[#allocation3 + $0x28] sm:$0xf]
      %v3565 = vld [vmem:[#allocation3 + $0x2c] sm:$0x1]
      %v3566 = vld [vmem:[#allocation3 + $0x30] sm:$0xf]
      %v3567 = vld [vmem:[#allocation3 + $0x34] sm:$0xf]
      %v3568 = vld [vmem:[#allocation3 + $0x38] sm:$0x1]
      %v3569 = vld [vmem:[#allocation3 + $0x3c] sm:$0xf]
      %v3570 = vld [vmem:[#allocation3 + $0x40] sm:$0xf]
      %v3571 = vld [vmem:[#allocation3 + $0x44] sm:$0x1]
      %v3572 = vld [vmem:[#allocation3 + $0x48] sm:$0xf]
      %v3573 = vld [vmem:[#allocation3 + $0x4c] sm:$0xf]
      %v3574 = vld [vmem:[#allocation3 + $0x50] sm:$0x1]
      %v3575 = vld [vmem:[#allocation3 + $0x54] sm:$0xf]
      %v3576 = vld [vmem:[#allocation3 + $0x58] sm:$0xf]
      %v3577 = vld [vmem:[#allocation3 + $0x5c] sm:$0x1]
      %v3578 = vld [vmem:[#allocation3 + $0x60] sm:$0xf]
      %v3579 = vld [vmem:[#allocation3 + $0x64] sm:$0xf]
      %v3580 = vld [vmem:[#allocation3 + $0x68] sm:$0x1]
      %v3581 = vld [vmem:[#allocation3 + $0x6c] sm:$0xf]
      %v3582 = vld [vmem:[#allocation3 + $0x70] sm:$0xf]
      %v3583 = vld [vmem:[#allocation3 + $0x74] sm:$0x1]
      %v3584 = vld [vmem:[#allocation3 + $0x78] sm:$0xf]
      %v3585 = vld [vmem:[#allocation3 + $0x7c] sm:$0xf]
      %v3586 = vld [vmem:[#allocation3 + $0x80] sm:$0x1]
      %v3587 = vld [vmem:[#allocation3 + $0x84] sm:$0xf]
      %v3588 = vld [vmem:[#allocation3 + $0x88] sm:$0xf]
      %v3589 = vld [vmem:[#allocation3 + $0x8c] sm:$0x1]
      %v3590 = vld [vmem:[#allocation3 + $0x90] sm:$0xf]
      %v3591 = vld [vmem:[#allocation3 + $0x94] sm:$0xf]
      %v3592 = vld [vmem:[#allocation3 + $0x98] sm:$0x1]
      %v3593 = vld [vmem:[#allocation3 + $0x9c] sm:$0xf]
      %v3594 = vld [vmem:[#allocation3 + $0xa0] sm:$0xf]
      %v3595 = vld [vmem:[#allocation3 + $0xa4] sm:$0x1]
      %v3596 = vld [vmem:[#allocation3 + $0xa8] sm:$0xf]
      %v3597 = vld [vmem:[#allocation3 + $0xac] sm:$0xf]
      %v3598 = vld [vmem:[#allocation3 + $0xb0] sm:$0x1]
      %v3599 = vld [vmem:[#allocation3 + $0xb4] sm:$0xf]
      %v3600 = vld [vmem:[#allocation3 + $0xb8] sm:$0xf]
      %v3601 = vld [vmem:[#allocation3 + $0xbc] sm:$0x1]
      %v3602 = vld [vmem:[#allocation3 + $0xc0] sm:$0xf]
      %v3603 = vld [vmem:[#allocation3 + $0xc4] sm:$0xf]
      %v3604 = vld [vmem:[#allocation3 + $0xc8] sm:$0x1]
      %v3605 = vld [vmem:[#allocation3 + $0xcc] sm:$0xf]
      %v3606 = vld [vmem:[#allocation3 + $0xd0] sm:$0xf]
      %v3607 = vld [vmem:[#allocation3 + $0xd4] sm:$0x1]
      %v3609 = vshrl.u32 %v3554, 16
      %v3611 = vrot.slane %v3609, 4
      %v3612 = vshll.u32 %v3554, 16
      %v3614 = vrot.slane %v3612, 5
      %v3615 = vor.u32 %v3611, %v3614
      %v3616 = vrot.slane %v3615, 4
      %v3618 = vshll.u32 %v3555, 16
      %v3620 = vrot.slane %v3618, 5
      %v3621 = vsel %vm974, %v3616, %v3620
      %v3622 = vshrl.u32 %v3555, 16
      %v3624 = vrot.slane %v3622, 4
      %v3625 = vor.u32 %v3624, %v3620
      %v3626 = vrot.slane %v3625, 4
      %v3628 = vshll.u32 %v3556, 16
      %v3630 = vrot.slane %v3628, 5
      %v3631 = vsel %vm974, %v3626, %v3630
      %v3633 = vshrl.u32 %v3557, 16
      %v3635 = vrot.slane %v3633, 4
      %v3636 = vshll.u32 %v3557, 16
      %v3638 = vrot.slane %v3636, 5
      %v3639 = vor.u32 %v3635, %v3638
      %v3640 = vrot.slane %v3639, 4
      %v3642 = vshll.u32 %v3558, 16
      %v3644 = vrot.slane %v3642, 5
      %v3645 = vsel %vm974, %v3640, %v3644
      %v3646 = vshrl.u32 %v3558, 16
      %v3648 = vrot.slane %v3646, 4
      %v3649 = vor.u32 %v3648, %v3644
      %v3650 = vrot.slane %v3649, 4
      %v3652 = vshll.u32 %v3559, 16
      %v3654 = vrot.slane %v3652, 5
      %v3655 = vsel %vm974, %v3650, %v3654
      %v3657 = vshrl.u32 %v3560, 16
      %v3659 = vrot.slane %v3657, 4
      %v3660 = vshll.u32 %v3560, 16
      %v3662 = vrot.slane %v3660, 5
      %v3663 = vor.u32 %v3659, %v3662
      %v3664 = vrot.slane %v3663, 4
      %v3666 = vshll.u32 %v3561, 16
      %v3668 = vrot.slane %v3666, 5
      %v3669 = vsel %vm974, %v3664, %v3668
      %v3670 = vshrl.u32 %v3561, 16
      %v3672 = vrot.slane %v3670, 4
      %v3673 = vor.u32 %v3672, %v3668
      %v3674 = vrot.slane %v3673, 4
      %v3676 = vshll.u32 %v3562, 16
      %v3678 = vrot.slane %v3676, 5
      %v3679 = vsel %vm974, %v3674, %v3678
      %v3681 = vshrl.u32 %v3563, 16
      %v3683 = vrot.slane %v3681, 4
      %v3684 = vshll.u32 %v3563, 16
      %v3686 = vrot.slane %v3684, 5
      %v3687 = vor.u32 %v3683, %v3686
      %v3688 = vrot.slane %v3687, 4
      %v3690 = vshll.u32 %v3564, 16
      %v3692 = vrot.slane %v3690, 5
      %v3693 = vsel %vm974, %v3688, %v3692
      %v3694 = vshrl.u32 %v3564, 16
      %v3696 = vrot.slane %v3694, 4
      %v3697 = vor.u32 %v3696, %v3692
      %v3698 = vrot.slane %v3697, 4
      %v3700 = vshll.u32 %v3565, 16
      %v3702 = vrot.slane %v3700, 5
      %v3703 = vsel %vm974, %v3698, %v3702
      %v3705 = vshrl.u32 %v3566, 16
      %v3707 = vrot.slane %v3705, 4
      %v3708 = vshll.u32 %v3566, 16
      %v3710 = vrot.slane %v3708, 5
      %v3711 = vor.u32 %v3707, %v3710
      %v3712 = vrot.slane %v3711, 4
      %v3714 = vshll.u32 %v3567, 16
      %v3716 = vrot.slane %v3714, 5
      %v3717 = vsel %vm974, %v3712, %v3716
      %v3718 = vshrl.u32 %v3567, 16
      %v3720 = vrot.slane %v3718, 4
      %v3721 = vor.u32 %v3720, %v3716
      %v3722 = vrot.slane %v3721, 4
      %v3724 = vshll.u32 %v3568, 16
      %v3726 = vrot.slane %v3724, 5
      %v3727 = vsel %vm974, %v3722, %v3726
      %v3729 = vshrl.u32 %v3569, 16
      %v3731 = vrot.slane %v3729, 4
      %v3732 = vshll.u32 %v3569, 16
      %v3734 = vrot.slane %v3732, 5
      %v3735 = vor.u32 %v3731, %v3734
      %v3736 = vrot.slane %v3735, 4
      %v3738 = vshll.u32 %v3570, 16
      %v3740 = vrot.slane %v3738, 5
      %v3741 = vsel %vm974, %v3736, %v3740
      %v3742 = vshrl.u32 %v3570, 16
      %v3744 = vrot.slane %v3742, 4
      %v3745 = vor.u32 %v3744, %v3740
      %v3746 = vrot.slane %v3745, 4
      %v3748 = vshll.u32 %v3571, 16
      %v3750 = vrot.slane %v3748, 5
      %v3751 = vsel %vm974, %v3746, %v3750
      %v3753 = vshrl.u32 %v3572, 16
      %v3755 = vrot.slane %v3753, 4
      %v3756 = vshll.u32 %v3572, 16
      %v3758 = vrot.slane %v3756, 5
      %v3759 = vor.u32 %v3755, %v3758
      %v3760 = vrot.slane %v3759, 4
      %v3762 = vshll.u32 %v3573, 16
      %v3764 = vrot.slane %v3762, 5
      %v3765 = vsel %vm974, %v3760, %v3764
      %v3766 = vshrl.u32 %v3573, 16
      %v3768 = vrot.slane %v3766, 4
      %v3769 = vor.u32 %v3768, %v3764
      %v3770 = vrot.slane %v3769, 4
      %v3772 = vshll.u32 %v3574, 16
      %v3774 = vrot.slane %v3772, 5
      %v3775 = vsel %vm974, %v3770, %v3774
      %v3777 = vshrl.u32 %v3575, 16
      %v3779 = vrot.slane %v3777, 4
      %v3780 = vshll.u32 %v3575, 16
      %v3782 = vrot.slane %v3780, 5
      %v3783 = vor.u32 %v3779, %v3782
      %v3784 = vrot.slane %v3783, 4
      %v3786 = vshll.u32 %v3576, 16
      %v3788 = vrot.slane %v3786, 5
      %v3789 = vsel %vm974, %v3784, %v3788
      %v3790 = vshrl.u32 %v3576, 16
      %v3792 = vrot.slane %v3790, 4
      %v3793 = vor.u32 %v3792, %v3788
      %v3794 = vrot.slane %v3793, 4
      %v3796 = vshll.u32 %v3577, 16
      %v3798 = vrot.slane %v3796, 5
      %v3799 = vsel %vm974, %v3794, %v3798
      %v3801 = vshrl.u32 %v3578, 16
      %v3803 = vrot.slane %v3801, 4
      %v3804 = vshll.u32 %v3578, 16
      %v3806 = vrot.slane %v3804, 5
      %v3807 = vor.u32 %v3803, %v3806
      %v3808 = vrot.slane %v3807, 4
      %v3810 = vshll.u32 %v3579, 16
      %v3812 = vrot.slane %v3810, 5
      %v3813 = vsel %vm974, %v3808, %v3812
      %v3814 = vshrl.u32 %v3579, 16
      %v3816 = vrot.slane %v3814, 4
      %v3817 = vor.u32 %v3816, %v3812
      %v3818 = vrot.slane %v3817, 4
      %v3820 = vshll.u32 %v3580, 16
      %v3822 = vrot.slane %v3820, 5
      %v3823 = vsel %vm974, %v3818, %v3822
      %v3825 = vshrl.u32 %v3581, 16
      %v3827 = vrot.slane %v3825, 4
      %v3828 = vshll.u32 %v3581, 16
      %v3830 = vrot.slane %v3828, 5
      %v3831 = vor.u32 %v3827, %v3830
      %v3832 = vrot.slane %v3831, 4
      %v3834 = vshll.u32 %v3582, 16
      %v3836 = vrot.slane %v3834, 5
      %v3837 = vsel %vm974, %v3832, %v3836
      %v3838 = vshrl.u32 %v3582, 16
      %v3840 = vrot.slane %v3838, 4
      %v3841 = vor.u32 %v3840, %v3836
      %v3842 = vrot.slane %v3841, 4
      %v3844 = vshll.u32 %v3583, 16
      %v3846 = vrot.slane %v3844, 5
      %v3847 = vsel %vm974, %v3842, %v3846
      %v3849 = vshrl.u32 %v3584, 16
      %v3851 = vrot.slane %v3849, 4
      %v3852 = vshll.u32 %v3584, 16
      %v3854 = vrot.slane %v3852, 5
      %v3855 = vor.u32 %v3851, %v3854
      %v3856 = vrot.slane %v3855, 4
      %v3858 = vshll.u32 %v3585, 16
      %v3860 = vrot.slane %v3858, 5
      %v3861 = vsel %vm974, %v3856, %v3860
      %v3862 = vshrl.u32 %v3585, 16
      %v3864 = vrot.slane %v3862, 4
      %v3865 = vor.u32 %v3864, %v3860
      %v3866 = vrot.slane %v3865, 4
      %v3868 = vshll.u32 %v3586, 16
      %v3870 = vrot.slane %v3868, 5
      %v3871 = vsel %vm974, %v3866, %v3870
      %v3873 = vshrl.u32 %v3587, 16
      %v3875 = vrot.slane %v3873, 4
      %v3876 = vshll.u32 %v3587, 16
      %v3878 = vrot.slane %v3876, 5
      %v3879 = vor.u32 %v3875, %v3878
      %v3880 = vrot.slane %v3879, 4
      %v3882 = vshll.u32 %v3588, 16
      %v3884 = vrot.slane %v3882, 5
      %v3885 = vsel %vm974, %v3880, %v3884
      %v3886 = vshrl.u32 %v3588, 16
      %v3888 = vrot.slane %v3886, 4
      %v3889 = vor.u32 %v3888, %v3884
      %v3890 = vrot.slane %v3889, 4
      %v3892 = vshll.u32 %v3589, 16
      %v3894 = vrot.slane %v3892, 5
      %v3895 = vsel %vm974, %v3890, %v3894
      %v3897 = vshrl.u32 %v3590, 16
      %v3899 = vrot.slane %v3897, 4
      %v3900 = vshll.u32 %v3590, 16
      %v3902 = vrot.slane %v3900, 5
      %v3903 = vor.u32 %v3899, %v3902
      %v3904 = vrot.slane %v3903, 4
      %v3906 = vshll.u32 %v3591, 16
      %v3908 = vrot.slane %v3906, 5
      %v3909 = vsel %vm974, %v3904, %v3908
      %v3910 = vshrl.u32 %v3591, 16
      %v3912 = vrot.slane %v3910, 4
      %v3913 = vor.u32 %v3912, %v3908
      %v3914 = vrot.slane %v3913, 4
      %v3916 = vshll.u32 %v3592, 16
      %v3918 = vrot.slane %v3916, 5
      %v3919 = vsel %vm974, %v3914, %v3918
      %v3921 = vshrl.u32 %v3593, 16
      %v3923 = vrot.slane %v3921, 4
      %v3924 = vshll.u32 %v3593, 16
      %v3926 = vrot.slane %v3924, 5
      %v3927 = vor.u32 %v3923, %v3926
      %v3928 = vrot.slane %v3927, 4
      %v3930 = vshll.u32 %v3594, 16
      %v3932 = vrot.slane %v3930, 5
      %v3933 = vsel %vm974, %v3928, %v3932
      %v3934 = vshrl.u32 %v3594, 16
      %v3936 = vrot.slane %v3934, 4
      %v3937 = vor.u32 %v3936, %v3932
      %v3938 = vrot.slane %v3937, 4
      %v3940 = vshll.u32 %v3595, 16
      %v3942 = vrot.slane %v3940, 5
      %v3943 = vsel %vm974, %v3938, %v3942
      %v3945 = vshrl.u32 %v3596, 16
      %v3947 = vrot.slane %v3945, 4
      %v3948 = vshll.u32 %v3596, 16
      %v3950 = vrot.slane %v3948, 5
      %v3951 = vor.u32 %v3947, %v3950
      %v3952 = vrot.slane %v3951, 4
      %v3954 = vshll.u32 %v3597, 16
      %v3956 = vrot.slane %v3954, 5
      %v3957 = vsel %vm974, %v3952, %v3956
      %v3958 = vshrl.u32 %v3597, 16
      %v3960 = vrot.slane %v3958, 4
      %v3961 = vor.u32 %v3960, %v3956
      %v3962 = vrot.slane %v3961, 4
      %v3964 = vshll.u32 %v3598, 16
      %v3966 = vrot.slane %v3964, 5
      %v3967 = vsel %vm974, %v3962, %v3966
      %v3969 = vshrl.u32 %v3599, 16
      %v3971 = vrot.slane %v3969, 4
      %v3972 = vshll.u32 %v3599, 16
      %v3974 = vrot.slane %v3972, 5
      %v3975 = vor.u32 %v3971, %v3974
      %v3976 = vrot.slane %v3975, 4
      %v3978 = vshll.u32 %v3600, 16
      %v3980 = vrot.slane %v3978, 5
      %v3981 = vsel %vm974, %v3976, %v3980
      %v3982 = vshrl.u32 %v3600, 16
      %v3984 = vrot.slane %v3982, 4
      %v3985 = vor.u32 %v3984, %v3980
      %v3986 = vrot.slane %v3985, 4
      %v3988 = vshll.u32 %v3601, 16
      %v3990 = vrot.slane %v3988, 5
      %v3991 = vsel %vm974, %v3986, %v3990
      %v4040 = vrot.slane %v3554, 5
      %v4041 = vrot.slane %v4040, 4
      %v4042 = vrot.slane %v3555, 5
      %v4043 = vsel %vm1409, %v4041, %v4042
      %v4044 = vrot.slane %v4042, 4
      %v4045 = vrot.slane %v3556, 5
      %v4046 = vsel %vm1409, %v4044, %v4045
      %v4047 = vrot.slane %v3557, 5
      %v4048 = vrot.slane %v4047, 4
      %v4049 = vrot.slane %v3558, 5
      %v4050 = vsel %vm1409, %v4048, %v4049
      %v4051 = vrot.slane %v4049, 4
      %v4052 = vrot.slane %v3559, 5
      %v4053 = vsel %vm1409, %v4051, %v4052
      %v4054 = vrot.slane %v3560, 5
      %v4055 = vrot.slane %v4054, 4
      %v4056 = vrot.slane %v3561, 5
      %v4057 = vsel %vm1409, %v4055, %v4056
      %v4058 = vrot.slane %v4056, 4
      %v4059 = vrot.slane %v3562, 5
      %v4060 = vsel %vm1409, %v4058, %v4059
      %v4061 = vrot.slane %v3563, 5
      %v4062 = vrot.slane %v4061, 4
      %v4063 = vrot.slane %v3564, 5
      %v4064 = vsel %vm1409, %v4062, %v4063
      %v4065 = vrot.slane %v4063, 4
      %v4066 = vrot.slane %v3565, 5
      %v4067 = vsel %vm1409, %v4065, %v4066
      %v4068 = vrot.slane %v3566, 5
      %v4069 = vrot.slane %v4068, 4
      %v4070 = vrot.slane %v3567, 5
      %v4071 = vsel %vm1409, %v4069, %v4070
      %v4072 = vrot.slane %v4070, 4
      %v4073 = vrot.slane %v3568, 5
      %v4074 = vsel %vm1409, %v4072, %v4073
      %v4075 = vrot.slane %v3569, 5
      %v4076 = vrot.slane %v4075, 4
      %v4077 = vrot.slane %v3570, 5
      %v4078 = vsel %vm1409, %v4076, %v4077
      %v4079 = vrot.slane %v4077, 4
      %v4080 = vrot.slane %v3571, 5
      %v4081 = vsel %vm1409, %v4079, %v4080
      %v4082 = vrot.slane %v3572, 5
      %v4083 = vrot.slane %v4082, 4
      %v4084 = vrot.slane %v3573, 5
      %v4085 = vsel %vm1409, %v4083, %v4084
      %v4086 = vrot.slane %v4084, 4
      %v4087 = vrot.slane %v3574, 5
      %v4088 = vsel %vm1409, %v4086, %v4087
      %v4089 = vrot.slane %v3575, 5
      %v4090 = vrot.slane %v4089, 4
      %v4091 = vrot.slane %v3576, 5
      %v4092 = vsel %vm1409, %v4090, %v4091
      %v4093 = vrot.slane %v4091, 4
      %v4094 = vrot.slane %v3577, 5
      %v4095 = vsel %vm1409, %v4093, %v4094
      %v4096 = vrot.slane %v3578, 5
      %v4097 = vrot.slane %v4096, 4
      %v4098 = vrot.slane %v3579, 5
      %v4099 = vsel %vm1409, %v4097, %v4098
      %v4100 = vrot.slane %v4098, 4
      %v4101 = vrot.slane %v3580, 5
      %v4102 = vsel %vm1409, %v4100, %v4101
      %v4103 = vrot.slane %v3581, 5
      %v4104 = vrot.slane %v4103, 4
      %v4105 = vrot.slane %v3582, 5
      %v4106 = vsel %vm1409, %v4104, %v4105
      %v4107 = vrot.slane %v4105, 4
      %v4108 = vrot.slane %v3583, 5
      %v4109 = vsel %vm1409, %v4107, %v4108
      %v4110 = vrot.slane %v3584, 5
      %v4111 = vrot.slane %v4110, 4
      %v4112 = vrot.slane %v3585, 5
      %v4113 = vsel %vm1409, %v4111, %v4112
      %v4114 = vrot.slane %v4112, 4
      %v4115 = vrot.slane %v3586, 5
      %v4116 = vsel %vm1409, %v4114, %v4115
      %v4117 = vrot.slane %v3587, 5
      %v4118 = vrot.slane %v4117, 4
      %v4119 = vrot.slane %v3588, 5
      %v4120 = vsel %vm1409, %v4118, %v4119
      %v4121 = vrot.slane %v4119, 4
      %v4122 = vrot.slane %v3589, 5
      %v4123 = vsel %vm1409, %v4121, %v4122
      %v4124 = vrot.slane %v3590, 5
      %v4125 = vrot.slane %v4124, 4
      %v4126 = vrot.slane %v3591, 5
      %v4127 = vsel %vm1409, %v4125, %v4126
      %v4128 = vrot.slane %v4126, 4
      %v4129 = vrot.slane %v3592, 5
      %v4130 = vsel %vm1409, %v4128, %v4129
      %v4131 = vrot.slane %v3593, 5
      %v4132 = vrot.slane %v4131, 4
      %v4133 = vrot.slane %v3594, 5
      %v4134 = vsel %vm1409, %v4132, %v4133
      %v4135 = vrot.slane %v4133, 4
      %v4136 = vrot.slane %v3595, 5
      %v4137 = vsel %vm1409, %v4135, %v4136
      %v4138 = vrot.slane %v3596, 5
      %v4139 = vrot.slane %v4138, 4
      %v4140 = vrot.slane %v3597, 5
      %v4141 = vsel %vm1409, %v4139, %v4140
      %v4142 = vrot.slane %v4140, 4
      %v4143 = vrot.slane %v3598, 5
      %v4144 = vsel %vm1409, %v4142, %v4143
      %v4145 = vrot.slane %v3599, 5
      %v4146 = vrot.slane %v4145, 4
      %v4147 = vrot.slane %v3600, 5
      %v4148 = vsel %vm1409, %v4146, %v4147
      %v4149 = vrot.slane %v4147, 4
      %v4150 = vrot.slane %v3601, 5
      %v4151 = vsel %vm1409, %v4149, %v4150
      %v4153 = vshrl.u32 %v3602, 16
      %v4155 = vrot.slane %v4153, 4
      %v4156 = vshll.u32 %v3602, 16
      %v4158 = vrot.slane %v4156, 5
      %v4159 = vor.u32 %v4155, %v4158
      %v4160 = vrot.slane %v4159, 4
      %v4162 = vshll.u32 %v3603, 16
      %v4164 = vrot.slane %v4162, 5
      %v4165 = vsel %vm974, %v4160, %v4164
      %v4166 = vshrl.u32 %v3603, 16
      %v4168 = vrot.slane %v4166, 4
      %v4169 = vor.u32 %v4168, %v4164
      %v4170 = vrot.slane %v4169, 4
      %v4172 = vshll.u32 %v3604, 16
      %v4174 = vrot.slane %v4172, 5
      %v4175 = vsel %vm974, %v4170, %v4174
      %v4179 = vrot.slane %v3602, 5
      %v4180 = vrot.slane %v4179, 4
      %v4181 = vrot.slane %v3603, 5
      %v4182 = vsel %vm1409, %v4180, %v4181
      %v4183 = vrot.slane %v4181, 4
      %v4184 = vrot.slane %v3604, 5
      %v4185 = vsel %vm1409, %v4183, %v4184
      %v4187 = vshrl.u32 %v3605, 16
      %v4189 = vrot.slane %v4187, 4
      %v4190 = vshll.u32 %v3605, 16
      %v4192 = vrot.slane %v4190, 5
      %v4193 = vor.u32 %v4189, %v4192
      %v4194 = vrot.slane %v4193, 4
      %v4196 = vshll.u32 %v3606, 16
      %v4198 = vrot.slane %v4196, 5
      %v4199 = vsel %vm974, %v4194, %v4198
      %v4200 = vshrl.u32 %v3606, 16
      %v4202 = vrot.slane %v4200, 4
      %v4203 = vor.u32 %v4202, %v4198
      %v4204 = vrot.slane %v4203, 4
      %v4206 = vshll.u32 %v3607, 16
      %v4208 = vrot.slane %v4206, 5
      %v4209 = vsel %vm974, %v4204, %v4208
      %v4213 = vrot.slane %v3605, 5
      %v4214 = vrot.slane %v4213, 4
      %v4215 = vrot.slane %v3606, 5
      %v4216 = vsel %vm1409, %v4214, %v4215
      %v4217 = vrot.slane %v4215, 4
      %v4218 = vrot.slane %v3607, 5
      %v4219 = vsel %vm1409, %v4217, %v4218
      %4220 = vst.msk [vmem:[#allocation4] sm:$0xf] %vm3032, %v3554
      %4221 = vst.msk [vmem:[#allocation4 + $0x4] sm:$0xf] %vm3032, %v3555
      %4222 = vst.msk [vmem:[#allocation4 + $0x8] sm:$0xf] %vm3032, %v3557
      %4223 = vst.msk [vmem:[#allocation4 + $0xc] sm:$0xf] %vm3032, %v3558
      %4224 = vst.msk [vmem:[#allocation4 + $0x10] sm:$0xf] %vm3032, %v3560
      %4225 = vst.msk [vmem:[#allocation4 + $0x14] sm:$0xf] %vm3032, %v3561
      %4226 = vst.msk [vmem:[#allocation4 + $0x18] sm:$0xf] %vm3032, %v3563
      %4227 = vst.msk [vmem:[#allocation4 + $0x1c] sm:$0xf] %vm3032, %v3564
      %4228 = vst.msk [vmem:[#allocation4 + $0x20] sm:$0xf] %vm3032, %v3566
      %4229 = vst.msk [vmem:[#allocation4 + $0x24] sm:$0xf] %vm3032, %v3567
      %4230 = vst.msk [vmem:[#allocation4 + $0x28] sm:$0xf] %vm3032, %v3569
      %4231 = vst.msk [vmem:[#allocation4 + $0x2c] sm:$0xf] %vm3032, %v3570
      %4232 = vst.msk [vmem:[#allocation4 + $0x30] sm:$0xf] %vm3032, %v3572
      %4233 = vst.msk [vmem:[#allocation4 + $0x34] sm:$0xf] %vm3032, %v3573
      %4234 = vst.msk [vmem:[#allocation4 + $0x38] sm:$0xf] %vm3032, %v3575
      %4235 = vst.msk [vmem:[#allocation4 + $0x3c] sm:$0xf] %vm3032, %v3576
      %4236 = vst.msk [vmem:[#allocation4 + $0x40] sm:$0xf] %vm3032, %v3578
      %4237 = vst.msk [vmem:[#allocation4 + $0x44] sm:$0xf] %vm3032, %v3579
      %4238 = vst.msk [vmem:[#allocation4 + $0x48] sm:$0xf] %vm3032, %v3581
      %4239 = vst.msk [vmem:[#allocation4 + $0x4c] sm:$0xf] %vm3032, %v3582
      %4240 = vst.msk [vmem:[#allocation4 + $0x50] sm:$0xf] %vm3032, %v3584
      %4241 = vst.msk [vmem:[#allocation4 + $0x54] sm:$0xf] %vm3032, %v3585
      %4242 = vst.msk [vmem:[#allocation4 + $0x58] sm:$0xf] %vm3032, %v3587
      %4243 = vst.msk [vmem:[#allocation4 + $0x5c] sm:$0xf] %vm3032, %v3588
      %4244 = vst.msk [vmem:[#allocation4 + $0x60] sm:$0xf] %vm3032, %v3590
      %4245 = vst.msk [vmem:[#allocation4 + $0x64] sm:$0xf] %vm3032, %v3591
      %4246 = vst.msk [vmem:[#allocation4 + $0x68] sm:$0xf] %vm3032, %v3593
      %4247 = vst.msk [vmem:[#allocation4 + $0x6c] sm:$0xf] %vm3032, %v3594
      %4248 = vst.msk [vmem:[#allocation4 + $0x70] sm:$0xf] %vm3032, %v3596
      %4249 = vst.msk [vmem:[#allocation4 + $0x74] sm:$0xf] %vm3032, %v3597
      %4250 = vst.msk [vmem:[#allocation4 + $0x78] sm:$0xf] %vm3032, %v3599
      %4251 = vst.msk [vmem:[#allocation4 + $0x7c] sm:$0xf] %vm3032, %v3600
      %4252 = vrot.lane.b32.xlu0 %v3621, 8
      %v4253 = vpop.permute.xlu0 %4252
      %4254 = vrot.lane.b32.xlu0 %v3631, 8
      %v4255 = vpop.permute.xlu0 %4254
      %4256 = vrot.lane.b32.xlu0 %v3645, 8
      %v4257 = vpop.permute.xlu0 %4256
      %4258 = vrot.lane.b32.xlu0 %v3655, 8
      %v4259 = vpop.permute.xlu0 %4258
      %4260 = vrot.lane.b32.xlu0 %v3669, 8
      %v4261 = vpop.permute.xlu0 %4260
      %4262 = vrot.lane.b32.xlu0 %v3679, 8
      %v4263 = vpop.permute.xlu0 %4262
      %4264 = vrot.lane.b32.xlu0 %v3693, 8
      %v4265 = vpop.permute.xlu0 %4264
      %4266 = vrot.lane.b32.xlu0 %v3703, 8
      %v4267 = vpop.permute.xlu0 %4266
      %4268 = vrot.lane.b32.xlu0 %v3717, 8
      %v4269 = vpop.permute.xlu0 %4268
      %4270 = vrot.lane.b32.xlu0 %v3727, 8
      %v4271 = vpop.permute.xlu0 %4270
      %4272 = vrot.lane.b32.xlu0 %v3741, 8
      %v4273 = vpop.permute.xlu0 %4272
      %4274 = vrot.lane.b32.xlu0 %v3751, 8
      %v4275 = vpop.permute.xlu0 %4274
      %4276 = vrot.lane.b32.xlu0 %v3765, 8
      %v4277 = vpop.permute.xlu0 %4276
      %4278 = vrot.lane.b32.xlu0 %v3775, 8
      %v4279 = vpop.permute.xlu0 %4278
      %4280 = vrot.lane.b32.xlu0 %v3789, 8
      %v4281 = vpop.permute.xlu0 %4280
      %4282 = vrot.lane.b32.xlu0 %v3799, 8
      %v4283 = vpop.permute.xlu0 %4282
      %4284 = vrot.lane.b32.xlu0 %v3813, 8
      %v4285 = vpop.permute.xlu0 %4284
      %4286 = vrot.lane.b32.xlu0 %v3823, 8
      %v4287 = vpop.permute.xlu0 %4286
      %4288 = vrot.lane.b32.xlu0 %v3837, 8
      %v4289 = vpop.permute.xlu0 %4288
      %4290 = vrot.lane.b32.xlu0 %v3847, 8
      %v4291 = vpop.permute.xlu0 %4290
      %4292 = vrot.lane.b32.xlu0 %v3861, 8
      %v4293 = vpop.permute.xlu0 %4292
      %4294 = vrot.lane.b32.xlu0 %v3871, 8
      %v4295 = vpop.permute.xlu0 %4294
      %4296 = vrot.lane.b32.xlu0 %v3885, 8
      %v4297 = vpop.permute.xlu0 %4296
      %4298 = vrot.lane.b32.xlu0 %v3895, 8
      %v4299 = vpop.permute.xlu0 %4298
      %4300 = vrot.lane.b32.xlu0 %v3909, 8
      %v4301 = vpop.permute.xlu0 %4300
      %4302 = vrot.lane.b32.xlu0 %v3919, 8
      %v4303 = vpop.permute.xlu0 %4302
      %4304 = vrot.lane.b32.xlu0 %v3933, 8
      %v4305 = vpop.permute.xlu0 %4304
      %4306 = vrot.lane.b32.xlu0 %v3943, 8
      %v4307 = vpop.permute.xlu0 %4306
      %4308 = vrot.lane.b32.xlu0 %v3957, 8
      %v4309 = vpop.permute.xlu0 %4308
      %4310 = vrot.lane.b32.xlu0 %v3967, 8
      %v4311 = vpop.permute.xlu0 %4310
      %4312 = vrot.lane.b32.xlu0 %v3981, 8
      %v4313 = vpop.permute.xlu0 %4312
      %4314 = vrot.lane.b32.xlu0 %v3991, 8
      %v4315 = vpop.permute.xlu0 %4314
      %vm4348 = vcmask 126016
      %4349 = vst.msk [vmem:[#allocation4] sm:$0xf] %vm4348, %v4253
      %4350 = vst.msk [vmem:[#allocation4 + $0x4] sm:$0xf] %vm4348, %v4255
      %4351 = vst.msk [vmem:[#allocation4 + $0x8] sm:$0xf] %vm4348, %v4257
      %4352 = vst.msk [vmem:[#allocation4 + $0xc] sm:$0xf] %vm4348, %v4259
      %4353 = vst.msk [vmem:[#allocation4 + $0x10] sm:$0xf] %vm4348, %v4261
      %4354 = vst.msk [vmem:[#allocation4 + $0x14] sm:$0xf] %vm4348, %v4263
      %4355 = vst.msk [vmem:[#allocation4 + $0x18] sm:$0xf] %vm4348, %v4265
      %4356 = vst.msk [vmem:[#allocation4 + $0x1c] sm:$0xf] %vm4348, %v4267
      %4357 = vst.msk [vmem:[#allocation4 + $0x20] sm:$0xf] %vm4348, %v4269
      %4358 = vst.msk [vmem:[#allocation4 + $0x24] sm:$0xf] %vm4348, %v4271
      %4359 = vst.msk [vmem:[#allocation4 + $0x28] sm:$0xf] %vm4348, %v4273
      %4360 = vst.msk [vmem:[#allocation4 + $0x2c] sm:$0xf] %vm4348, %v4275
      %4361 = vst.msk [vmem:[#allocation4 + $0x30] sm:$0xf] %vm4348, %v4277
      %4362 = vst.msk [vmem:[#allocation4 + $0x34] sm:$0xf] %vm4348, %v4279
      %4363 = vst.msk [vmem:[#allocation4 + $0x38] sm:$0xf] %vm4348, %v4281
      %4364 = vst.msk [vmem:[#allocation4 + $0x3c] sm:$0xf] %vm4348, %v4283
      %4365 = vst.msk [vmem:[#allocation4 + $0x40] sm:$0xf] %vm4348, %v4285
      %4366 = vst.msk [vmem:[#allocation4 + $0x44] sm:$0xf] %vm4348, %v4287
      %4367 = vst.msk [vmem:[#allocation4 + $0x48] sm:$0xf] %vm4348, %v4289
      %4368 = vst.msk [vmem:[#allocation4 + $0x4c] sm:$0xf] %vm4348, %v4291
      %4369 = vst.msk [vmem:[#allocation4 + $0x50] sm:$0xf] %vm4348, %v4293
      %4370 = vst.msk [vmem:[#allocation4 + $0x54] sm:$0xf] %vm4348, %v4295
      %4371 = vst.msk [vmem:[#allocation4 + $0x58] sm:$0xf] %vm4348, %v4297
      %4372 = vst.msk [vmem:[#allocation4 + $0x5c] sm:$0xf] %vm4348, %v4299
      %4373 = vst.msk [vmem:[#allocation4 + $0x60] sm:$0xf] %vm4348, %v4301
      %4374 = vst.msk [vmem:[#allocation4 + $0x64] sm:$0xf] %vm4348, %v4303
      %4375 = vst.msk [vmem:[#allocation4 + $0x68] sm:$0xf] %vm4348, %v4305
      %4376 = vst.msk [vmem:[#allocation4 + $0x6c] sm:$0xf] %vm4348, %v4307
      %4377 = vst.msk [vmem:[#allocation4 + $0x70] sm:$0xf] %vm4348, %v4309
      %4378 = vst.msk [vmem:[#allocation4 + $0x74] sm:$0xf] %vm4348, %v4311
      %4379 = vst.msk [vmem:[#allocation4 + $0x78] sm:$0xf] %vm4348, %v4313
      %4380 = vst.msk [vmem:[#allocation4 + $0x7c] sm:$0xf] %vm4348, %v4315
      %4381 = vrot.lane.b32.xlu0 %v4043, 16
      %v4382 = vpop.permute.xlu0 %4381
      %4383 = vrot.lane.b32.xlu0 %v4046, 16
      %v4384 = vpop.permute.xlu0 %4383
      %4385 = vrot.lane.b32.xlu0 %v4050, 16
      %v4386 = vpop.permute.xlu0 %4385
      %4387 = vrot.lane.b32.xlu0 %v4053, 16
      %v4388 = vpop.permute.xlu0 %4387
      %4389 = vrot.lane.b32.xlu0 %v4057, 16
      %v4390 = vpop.permute.xlu0 %4389
      %4391 = vrot.lane.b32.xlu0 %v4060, 16
      %v4392 = vpop.permute.xlu0 %4391
      %4393 = vrot.lane.b32.xlu0 %v4064, 16
      %v4394 = vpop.permute.xlu0 %4393
      %4395 = vrot.lane.b32.xlu0 %v4067, 16
      %v4396 = vpop.permute.xlu0 %4395
      %4397 = vrot.lane.b32.xlu0 %v4071, 16
      %v4398 = vpop.permute.xlu0 %4397
      %4399 = vrot.lane.b32.xlu0 %v4074, 16
      %v4400 = vpop.permute.xlu0 %4399
      %4401 = vrot.lane.b32.xlu0 %v4078, 16
      %v4402 = vpop.permute.xlu0 %4401
      %4403 = vrot.lane.b32.xlu0 %v4081, 16
      %v4404 = vpop.permute.xlu0 %4403
      %4405 = vrot.lane.b32.xlu0 %v4085, 16
      %v4406 = vpop.permute.xlu0 %4405
      %4407 = vrot.lane.b32.xlu0 %v4088, 16
      %v4408 = vpop.permute.xlu0 %4407
      %4409 = vrot.lane.b32.xlu0 %v4092, 16
      %v4410 = vpop.permute.xlu0 %4409
      %4411 = vrot.lane.b32.xlu0 %v4095, 16
      %v4412 = vpop.permute.xlu0 %4411
      %4413 = vrot.lane.b32.xlu0 %v4099, 16
      %v4414 = vpop.permute.xlu0 %4413
      %4415 = vrot.lane.b32.xlu0 %v4102, 16
      %v4416 = vpop.permute.xlu0 %4415
      %4417 = vrot.lane.b32.xlu0 %v4106, 16
      %v4418 = vpop.permute.xlu0 %4417
      %4419 = vrot.lane.b32.xlu0 %v4109, 16
      %v4420 = vpop.permute.xlu0 %4419
      %4421 = vrot.lane.b32.xlu0 %v4113, 16
      %v4422 = vpop.permute.xlu0 %4421
      %4423 = vrot.lane.b32.xlu0 %v4116, 16
      %v4424 = vpop.permute.xlu0 %4423
      %4425 = vrot.lane.b32.xlu0 %v4120, 16
      %v4426 = vpop.permute.xlu0 %4425
      %4427 = vrot.lane.b32.xlu0 %v4123, 16
      %v4428 = vpop.permute.xlu0 %4427
      %4429 = vrot.lane.b32.xlu0 %v4127, 16
      %v4430 = vpop.permute.xlu0 %4429
      %4431 = vrot.lane.b32.xlu0 %v4130, 16
      %v4432 = vpop.permute.xlu0 %4431
      %4433 = vrot.lane.b32.xlu0 %v4134, 16
      %v4434 = vpop.permute.xlu0 %4433
      %4435 = vrot.lane.b32.xlu0 %v4137, 16
      %v4436 = vpop.permute.xlu0 %4435
      %4437 = vrot.lane.b32.xlu0 %v4141, 16
      %v4438 = vpop.permute.xlu0 %4437
      %4439 = vrot.lane.b32.xlu0 %v4144, 16
      %v4440 = vpop.permute.xlu0 %4439
      %4441 = vrot.lane.b32.xlu0 %v4148, 16
      %v4442 = vpop.permute.xlu0 %4441
      %4443 = vrot.lane.b32.xlu0 %v4151, 16
      %v4444 = vpop.permute.xlu0 %4443
      %vm4477 = vcmask 191616
      %4478 = vst.msk [vmem:[#allocation4] sm:$0xf] %vm4477, %v4382
      %4479 = vst.msk [vmem:[#allocation4 + $0x4] sm:$0xf] %vm4477, %v4384
      %4480 = vst.msk [vmem:[#allocation4 + $0x8] sm:$0xf] %vm4477, %v4386
      %4481 = vst.msk [vmem:[#allocation4 + $0xc] sm:$0xf] %vm4477, %v4388
      %4482 = vst.msk [vmem:[#allocation4 + $0x10] sm:$0xf] %vm4477, %v4390
      %4483 = vst.msk [vmem:[#allocation4 + $0x14] sm:$0xf] %vm4477, %v4392
      %4484 = vst.msk [vmem:[#allocation4 + $0x18] sm:$0xf] %vm4477, %v4394
      %4485 = vst.msk [vmem:[#allocation4 + $0x1c] sm:$0xf] %vm4477, %v4396
      %4486 = vst.msk [vmem:[#allocation4 + $0x20] sm:$0xf] %vm4477, %v4398
      %4487 = vst.msk [vmem:[#allocation4 + $0x24] sm:$0xf] %vm4477, %v4400
      %4488 = vst.msk [vmem:[#allocation4 + $0x28] sm:$0xf] %vm4477, %v4402
      %4489 = vst.msk [vmem:[#allocation4 + $0x2c] sm:$0xf] %vm4477, %v4404
      %4490 = vst.msk [vmem:[#allocation4 + $0x30] sm:$0xf] %vm4477, %v4406
      %4491 = vst.msk [vmem:[#allocation4 + $0x34] sm:$0xf] %vm4477, %v4408
      %4492 = vst.msk [vmem:[#allocation4 + $0x38] sm:$0xf] %vm4477, %v4410
      %4493 = vst.msk [vmem:[#allocation4 + $0x3c] sm:$0xf] %vm4477, %v4412
      %4494 = vst.msk [vmem:[#allocation4 + $0x40] sm:$0xf] %vm4477, %v4414
      %4495 = vst.msk [vmem:[#allocation4 + $0x44] sm:$0xf] %vm4477, %v4416
      %4496 = vst.msk [vmem:[#allocation4 + $0x48] sm:$0xf] %vm4477, %v4418
      %4497 = vst.msk [vmem:[#allocation4 + $0x4c] sm:$0xf] %vm4477, %v4420
      %4498 = vst.msk [vmem:[#allocation4 + $0x50] sm:$0xf] %vm4477, %v4422
      %4499 = vst.msk [vmem:[#allocation4 + $0x54] sm:$0xf] %vm4477, %v4424
      %4500 = vst.msk [vmem:[#allocation4 + $0x58] sm:$0xf] %vm4477, %v4426
      %4501 = vst.msk [vmem:[#allocation4 + $0x5c] sm:$0xf] %vm4477, %v4428
      %4502 = vst.msk [vmem:[#allocation4 + $0x60] sm:$0xf] %vm4477, %v4430
      %4503 = vst.msk [vmem:[#allocation4 + $0x64] sm:$0xf] %vm4477, %v4432
      %4504 = vst.msk [vmem:[#allocation4 + $0x68] sm:$0xf] %vm4477, %v4434
      %4505 = vst.msk [vmem:[#allocation4 + $0x6c] sm:$0xf] %vm4477, %v4436
      %4506 = vst.msk [vmem:[#allocation4 + $0x70] sm:$0xf] %vm4477, %v4438
      %4507 = vst.msk [vmem:[#allocation4 + $0x74] sm:$0xf] %vm4477, %v4440
      %4508 = vst.msk [vmem:[#allocation4 + $0x78] sm:$0xf] %vm4477, %v4442
      %4509 = vst.msk [vmem:[#allocation4 + $0x7c] sm:$0xf] %vm4477, %v4444
      %4510 = vrot.lane.b32.xlu0 %v3557, 24
      %v4511 = vpop.permute.xlu0 %4510
      %4512 = vrot.lane.b32.xlu0 %v3558, 24
      %v4513 = vpop.permute.xlu0 %4512
      %4514 = vrot.lane.b32.xlu0 %v3560, 24
      %v4515 = vpop.permute.xlu0 %4514
      %4516 = vrot.lane.b32.xlu0 %v3561, 24
      %v4517 = vpop.permute.xlu0 %4516
      %4518 = vrot.lane.b32.xlu0 %v3563, 24
      %v4519 = vpop.permute.xlu0 %4518
      %4520 = vrot.lane.b32.xlu0 %v3564, 24
      %v4521 = vpop.permute.xlu0 %4520
      %4522 = vrot.lane.b32.xlu0 %v3566, 24
      %v4523 = vpop.permute.xlu0 %4522
      %4524 = vrot.lane.b32.xlu0 %v3567, 24
      %v4525 = vpop.permute.xlu0 %4524
      %4526 = vrot.lane.b32.xlu0 %v3569, 24
      %v4527 = vpop.permute.xlu0 %4526
      %4528 = vrot.lane.b32.xlu0 %v3570, 24
      %v4529 = vpop.permute.xlu0 %4528
      %4530 = vrot.lane.b32.xlu0 %v3572, 24
      %v4531 = vpop.permute.xlu0 %4530
      %4532 = vrot.lane.b32.xlu0 %v3573, 24
      %v4533 = vpop.permute.xlu0 %4532
      %4534 = vrot.lane.b32.xlu0 %v3575, 24
      %v4535 = vpop.permute.xlu0 %4534
      %4536 = vrot.lane.b32.xlu0 %v3576, 24
      %v4537 = vpop.permute.xlu0 %4536
      %4538 = vrot.lane.b32.xlu0 %v3578, 24
      %v4539 = vpop.permute.xlu0 %4538
      %4540 = vrot.lane.b32.xlu0 %v3579, 24
      %v4541 = vpop.permute.xlu0 %4540
      %4542 = vrot.lane.b32.xlu0 %v3581, 24
      %v4543 = vpop.permute.xlu0 %4542
      %4544 = vrot.lane.b32.xlu0 %v3582, 24
      %v4545 = vpop.permute.xlu0 %4544
      %4546 = vrot.lane.b32.xlu0 %v3584, 24
      %v4547 = vpop.permute.xlu0 %4546
      %4548 = vrot.lane.b32.xlu0 %v3585, 24
      %v4549 = vpop.permute.xlu0 %4548
      %4550 = vrot.lane.b32.xlu0 %v3587, 24
      %v4551 = vpop.permute.xlu0 %4550
      %4552 = vrot.lane.b32.xlu0 %v3588, 24
      %v4553 = vpop.permute.xlu0 %4552
      %4554 = vrot.lane.b32.xlu0 %v3590, 24
      %v4555 = vpop.permute.xlu0 %4554
      %4556 = vrot.lane.b32.xlu0 %v3591, 24
      %v4557 = vpop.permute.xlu0 %4556
      %4558 = vrot.lane.b32.xlu0 %v3593, 24
      %v4559 = vpop.permute.xlu0 %4558
      %4560 = vrot.lane.b32.xlu0 %v3594, 24
      %v4561 = vpop.permute.xlu0 %4560
      %4562 = vrot.lane.b32.xlu0 %v3596, 24
      %v4563 = vpop.permute.xlu0 %4562
      %4564 = vrot.lane.b32.xlu0 %v3597, 24
      %v4565 = vpop.permute.xlu0 %4564
      %4566 = vrot.lane.b32.xlu0 %v3599, 24
      %v4567 = vpop.permute.xlu0 %4566
      %4568 = vrot.lane.b32.xlu0 %v3600, 24
      %v4569 = vpop.permute.xlu0 %4568
      %4570 = vrot.lane.b32.xlu0 %v3602, 24
      %v4571 = vpop.permute.xlu0 %4570
      %4572 = vrot.lane.b32.xlu0 %v3603, 24
      %v4573 = vpop.permute.xlu0 %4572
      %vm4606 = vcmask 257216
      %4607 = vst.msk [vmem:[#allocation4] sm:$0xf] %vm4606, %v4511
      %4608 = vst.msk [vmem:[#allocation4 + $0x4] sm:$0xf] %vm4606, %v4513
      %4609 = vst.msk [vmem:[#allocation4 + $0x8] sm:$0xf] %vm4606, %v4515
      %4610 = vst.msk [vmem:[#allocation4 + $0xc] sm:$0xf] %vm4606, %v4517
      %4611 = vst.msk [vmem:[#allocation4 + $0x10] sm:$0xf] %vm4606, %v4519
      %4612 = vst.msk [vmem:[#allocation4 + $0x14] sm:$0xf] %vm4606, %v4521
      %4613 = vst.msk [vmem:[#allocation4 + $0x18] sm:$0xf] %vm4606, %v4523
      %4614 = vst.msk [vmem:[#allocation4 + $0x1c] sm:$0xf] %vm4606, %v4525
      %4615 = vst.msk [vmem:[#allocation4 + $0x20] sm:$0xf] %vm4606, %v4527
      %4616 = vst.msk [vmem:[#allocation4 + $0x24] sm:$0xf] %vm4606, %v4529
      %4617 = vst.msk [vmem:[#allocation4 + $0x28] sm:$0xf] %vm4606, %v4531
      %4618 = vst.msk [vmem:[#allocation4 + $0x2c] sm:$0xf] %vm4606, %v4533
      %4619 = vst.msk [vmem:[#allocation4 + $0x30] sm:$0xf] %vm4606, %v4535
      %4620 = vst.msk [vmem:[#allocation4 + $0x34] sm:$0xf] %vm4606, %v4537
      %4621 = vst.msk [vmem:[#allocation4 + $0x38] sm:$0xf] %vm4606, %v4539
      %4622 = vst.msk [vmem:[#allocation4 + $0x3c] sm:$0xf] %vm4606, %v4541
      %4623 = vst.msk [vmem:[#allocation4 + $0x40] sm:$0xf] %vm4606, %v4543
      %4624 = vst.msk [vmem:[#allocation4 + $0x44] sm:$0xf] %vm4606, %v4545
      %4625 = vst.msk [vmem:[#allocation4 + $0x48] sm:$0xf] %vm4606, %v4547
      %4626 = vst.msk [vmem:[#allocation4 + $0x4c] sm:$0xf] %vm4606, %v4549
      %4627 = vst.msk [vmem:[#allocation4 + $0x50] sm:$0xf] %vm4606, %v4551
      %4628 = vst.msk [vmem:[#allocation4 + $0x54] sm:$0xf] %vm4606, %v4553
      %4629 = vst.msk [vmem:[#allocation4 + $0x58] sm:$0xf] %vm4606, %v4555
      %4630 = vst.msk [vmem:[#allocation4 + $0x5c] sm:$0xf] %vm4606, %v4557
      %4631 = vst.msk [vmem:[#allocation4 + $0x60] sm:$0xf] %vm4606, %v4559
      %4632 = vst.msk [vmem:[#allocation4 + $0x64] sm:$0xf] %vm4606, %v4561
      %4633 = vst.msk [vmem:[#allocation4 + $0x68] sm:$0xf] %vm4606, %v4563
      %4634 = vst.msk [vmem:[#allocation4 + $0x6c] sm:$0xf] %vm4606, %v4565
      %4635 = vst.msk [vmem:[#allocation4 + $0x70] sm:$0xf] %vm4606, %v4567
      %4636 = vst.msk [vmem:[#allocation4 + $0x74] sm:$0xf] %vm4606, %v4569
      %4637 = vst.msk [vmem:[#allocation4 + $0x78] sm:$0xf] %vm4606, %v4571
      %4638 = vst.msk [vmem:[#allocation4 + $0x7c] sm:$0xf] %vm4606, %v4573
      %4639 = vrot.lane.b32.xlu0 %v3645, 32
      %v4640 = vpop.permute.xlu0 %4639
      %4641 = vrot.lane.b32.xlu0 %v3655, 32
      %v4642 = vpop.permute.xlu0 %4641
      %4643 = vrot.lane.b32.xlu0 %v3669, 32
      %v4644 = vpop.permute.xlu0 %4643
      %4645 = vrot.lane.b32.xlu0 %v3679, 32
      %v4646 = vpop.permute.xlu0 %4645
      %4647 = vrot.lane.b32.xlu0 %v3693, 32
      %v4648 = vpop.permute.xlu0 %4647
      %4649 = vrot.lane.b32.xlu0 %v3703, 32
      %v4650 = vpop.permute.xlu0 %4649
      %4651 = vrot.lane.b32.xlu0 %v3717, 32
      %v4652 = vpop.permute.xlu0 %4651
      %4653 = vrot.lane.b32.xlu0 %v3727, 32
      %v4654 = vpop.permute.xlu0 %4653
      %4655 = vrot.lane.b32.xlu0 %v3741, 32
      %v4656 = vpop.permute.xlu0 %4655
      %4657 = vrot.lane.b32.xlu0 %v3751, 32
      %v4658 = vpop.permute.xlu0 %4657
      %4659 = vrot.lane.b32.xlu0 %v3765, 32
      %v4660 = vpop.permute.xlu0 %4659
      %4661 = vrot.lane.b32.xlu0 %v3775, 32
      %v4662 = vpop.permute.xlu0 %4661
      %4663 = vrot.lane.b32.xlu0 %v3789, 32
      %v4664 = vpop.permute.xlu0 %4663
      %4665 = vrot.lane.b32.xlu0 %v3799, 32
      %v4666 = vpop.permute.xlu0 %4665
      %4667 = vrot.lane.b32.xlu0 %v3813, 32
      %v4668 = vpop.permute.xlu0 %4667
      %4669 = vrot.lane.b32.xlu0 %v3823, 32
      %v4670 = vpop.permute.xlu0 %4669
      %4671 = vrot.lane.b32.xlu0 %v3837, 32
      %v4672 = vpop.permute.xlu0 %4671
      %4673 = vrot.lane.b32.xlu0 %v3847, 32
      %v4674 = vpop.permute.xlu0 %4673
      %4675 = vrot.lane.b32.xlu0 %v3861, 32
      %v4676 = vpop.permute.xlu0 %4675
      %4677 = vrot.lane.b32.xlu0 %v3871, 32
      %v4678 = vpop.permute.xlu0 %4677
      %4679 = vrot.lane.b32.xlu0 %v3885, 32
      %v4680 = vpop.permute.xlu0 %4679
      %4681 = vrot.lane.b32.xlu0 %v3895, 32
      %v4682 = vpop.permute.xlu0 %4681
      %4683 = vrot.lane.b32.xlu0 %v3909, 32
      %v4684 = vpop.permute.xlu0 %4683
      %4685 = vrot.lane.b32.xlu0 %v3919, 32
      %v4686 = vpop.permute.xlu0 %4685
      %4687 = vrot.lane.b32.xlu0 %v3933, 32
      %v4688 = vpop.permute.xlu0 %4687
      %4689 = vrot.lane.b32.xlu0 %v3943, 32
      %v4690 = vpop.permute.xlu0 %4689
      %4691 = vrot.lane.b32.xlu0 %v3957, 32
      %v4692 = vpop.permute.xlu0 %4691
      %4693 = vrot.lane.b32.xlu0 %v3967, 32
      %v4694 = vpop.permute.xlu0 %4693
      %4695 = vrot.lane.b32.xlu0 %v3981, 32
      %v4696 = vpop.permute.xlu0 %4695
      %4697 = vrot.lane.b32.xlu0 %v3991, 32
      %v4698 = vpop.permute.xlu0 %4697
      %4699 = vrot.lane.b32.xlu0 %v4165, 32
      %v4700 = vpop.permute.xlu0 %4699
      %4701 = vrot.lane.b32.xlu0 %v4175, 32
      %v4702 = vpop.permute.xlu0 %4701
      %vm4735 = vcmask 322816
      %4736 = vst.msk [vmem:[#allocation4] sm:$0xf] %vm4735, %v4640
      %4737 = vst.msk [vmem:[#allocation4 + $0x4] sm:$0xf] %vm4735, %v4642
      %4738 = vst.msk [vmem:[#allocation4 + $0x8] sm:$0xf] %vm4735, %v4644
      %4739 = vst.msk [vmem:[#allocation4 + $0xc] sm:$0xf] %vm4735, %v4646
      %4740 = vst.msk [vmem:[#allocation4 + $0x10] sm:$0xf] %vm4735, %v4648
      %4741 = vst.msk [vmem:[#allocation4 + $0x14] sm:$0xf] %vm4735, %v4650
      %4742 = vst.msk [vmem:[#allocation4 + $0x18] sm:$0xf] %vm4735, %v4652
      %4743 = vst.msk [vmem:[#allocation4 + $0x1c] sm:$0xf] %vm4735, %v4654
      %4744 = vst.msk [vmem:[#allocation4 + $0x20] sm:$0xf] %vm4735, %v4656
      %4745 = vst.msk [vmem:[#allocation4 + $0x24] sm:$0xf] %vm4735, %v4658
      %4746 = vst.msk [vmem:[#allocation4 + $0x28] sm:$0xf] %vm4735, %v4660
      %4747 = vst.msk [vmem:[#allocation4 + $0x2c] sm:$0xf] %vm4735, %v4662
      %4748 = vst.msk [vmem:[#allocation4 + $0x30] sm:$0xf] %vm4735, %v4664
      %4749 = vst.msk [vmem:[#allocation4 + $0x34] sm:$0xf] %vm4735, %v4666
      %4750 = vst.msk [vmem:[#allocation4 + $0x38] sm:$0xf] %vm4735, %v4668
      %4751 = vst.msk [vmem:[#allocation4 + $0x3c] sm:$0xf] %vm4735, %v4670
      %4752 = vst.msk [vmem:[#allocation4 + $0x40] sm:$0xf] %vm4735, %v4672
      %4753 = vst.msk [vmem:[#allocation4 + $0x44] sm:$0xf] %vm4735, %v4674
      %4754 = vst.msk [vmem:[#allocation4 + $0x48] sm:$0xf] %vm4735, %v4676
      %4755 = vst.msk [vmem:[#allocation4 + $0x4c] sm:$0xf] %vm4735, %v4678
      %4756 = vst.msk [vmem:[#allocation4 + $0x50] sm:$0xf] %vm4735, %v4680
      %4757 = vst.msk [vmem:[#allocation4 + $0x54] sm:$0xf] %vm4735, %v4682
      %4758 = vst.msk [vmem:[#allocation4 + $0x58] sm:$0xf] %vm4735, %v4684
      %4759 = vst.msk [vmem:[#allocation4 + $0x5c] sm:$0xf] %vm4735, %v4686
      %4760 = vst.msk [vmem:[#allocation4 + $0x60] sm:$0xf] %vm4735, %v4688
      %4761 = vst.msk [vmem:[#allocation4 + $0x64] sm:$0xf] %vm4735, %v4690
      %4762 = vst.msk [vmem:[#allocation4 + $0x68] sm:$0xf] %vm4735, %v4692
      %4763 = vst.msk [vmem:[#allocation4 + $0x6c] sm:$0xf] %vm4735, %v4694
      %4764 = vst.msk [vmem:[#allocation4 + $0x70] sm:$0xf] %vm4735, %v4696
      %4765 = vst.msk [vmem:[#allocation4 + $0x74] sm:$0xf] %vm4735, %v4698
      %4766 = vst.msk [vmem:[#allocation4 + $0x78] sm:$0xf] %vm4735, %v4700
      %4767 = vst.msk [vmem:[#allocation4 + $0x7c] sm:$0xf] %vm4735, %v4702
      %4768 = vrot.lane.b32.xlu0 %v4050, 40
      %v4769 = vpop.permute.xlu0 %4768
      %4770 = vrot.lane.b32.xlu0 %v4053, 40
      %v4771 = vpop.permute.xlu0 %4770
      %4772 = vrot.lane.b32.xlu0 %v4057, 40
      %v4773 = vpop.permute.xlu0 %4772
      %4774 = vrot.lane.b32.xlu0 %v4060, 40
      %v4775 = vpop.permute.xlu0 %4774
      %4776 = vrot.lane.b32.xlu0 %v4064, 40
      %v4777 = vpop.permute.xlu0 %4776
      %4778 = vrot.lane.b32.xlu0 %v4067, 40
      %v4779 = vpop.permute.xlu0 %4778
      %4780 = vrot.lane.b32.xlu0 %v4071, 40
      %v4781 = vpop.permute.xlu0 %4780
      %4782 = vrot.lane.b32.xlu0 %v4074, 40
      %v4783 = vpop.permute.xlu0 %4782
      %4784 = vrot.lane.b32.xlu0 %v4078, 40
      %v4785 = vpop.permute.xlu0 %4784
      %4786 = vrot.lane.b32.xlu0 %v4081, 40
      %v4787 = vpop.permute.xlu0 %4786
      %4788 = vrot.lane.b32.xlu0 %v4085, 40
      %v4789 = vpop.permute.xlu0 %4788
      %4790 = vrot.lane.b32.xlu0 %v4088, 40
      %v4791 = vpop.permute.xlu0 %4790
      %4792 = vrot.lane.b32.xlu0 %v4092, 40
      %v4793 = vpop.permute.xlu0 %4792
      %4794 = vrot.lane.b32.xlu0 %v4095, 40
      %v4795 = vpop.permute.xlu0 %4794
      %4796 = vrot.lane.b32.xlu0 %v4099, 40
      %v4797 = vpop.permute.xlu0 %4796
      %4798 = vrot.lane.b32.xlu0 %v4102, 40
      %v4799 = vpop.permute.xlu0 %4798
      %4800 = vrot.lane.b32.xlu0 %v4106, 40
      %v4801 = vpop.permute.xlu0 %4800
      %4802 = vrot.lane.b32.xlu0 %v4109, 40
      %v4803 = vpop.permute.xlu0 %4802
      %4804 = vrot.lane.b32.xlu0 %v4113, 40
      %v4805 = vpop.permute.xlu0 %4804
      %4806 = vrot.lane.b32.xlu0 %v4116, 40
      %v4807 = vpop.permute.xlu0 %4806
      %4808 = vrot.lane.b32.xlu0 %v4120, 40
      %v4809 = vpop.permute.xlu0 %4808
      %4810 = vrot.lane.b32.xlu0 %v4123, 40
      %v4811 = vpop.permute.xlu0 %4810
      %4812 = vrot.lane.b32.xlu0 %v4127, 40
      %v4813 = vpop.permute.xlu0 %4812
      %4814 = vrot.lane.b32.xlu0 %v4130, 40
      %v4815 = vpop.permute.xlu0 %4814
      %4816 = vrot.lane.b32.xlu0 %v4134, 40
      %v4817 = vpop.permute.xlu0 %4816
      %4818 = vrot.lane.b32.xlu0 %v4137, 40
      %v4819 = vpop.permute.xlu0 %4818
      %4820 = vrot.lane.b32.xlu0 %v4141, 40
      %v4821 = vpop.permute.xlu0 %4820
      %4822 = vrot.lane.b32.xlu0 %v4144, 40
      %v4823 = vpop.permute.xlu0 %4822
      %4824 = vrot.lane.b32.xlu0 %v4148, 40
      %v4825 = vpop.permute.xlu0 %4824
      %4826 = vrot.lane.b32.xlu0 %v4151, 40
      %v4827 = vpop.permute.xlu0 %4826
      %4828 = vrot.lane.b32.xlu0 %v4182, 40
      %v4829 = vpop.permute.xlu0 %4828
      %4830 = vrot.lane.b32.xlu0 %v4185, 40
      %v4831 = vpop.permute.xlu0 %4830
      %vm4864 = vcmask 388416
      %4865 = vst.msk [vmem:[#allocation4] sm:$0xf] %vm4864, %v4769
      %4866 = vst.msk [vmem:[#allocation4 + $0x4] sm:$0xf] %vm4864, %v4771
      %4867 = vst.msk [vmem:[#allocation4 + $0x8] sm:$0xf] %vm4864, %v4773
      %4868 = vst.msk [vmem:[#allocation4 + $0xc] sm:$0xf] %vm4864, %v4775
      %4869 = vst.msk [vmem:[#allocation4 + $0x10] sm:$0xf] %vm4864, %v4777
      %4870 = vst.msk [vmem:[#allocation4 + $0x14] sm:$0xf] %vm4864, %v4779
      %4871 = vst.msk [vmem:[#allocation4 + $0x18] sm:$0xf] %vm4864, %v4781
      %4872 = vst.msk [vmem:[#allocation4 + $0x1c] sm:$0xf] %vm4864, %v4783
      %4873 = vst.msk [vmem:[#allocation4 + $0x20] sm:$0xf] %vm4864, %v4785
      %4874 = vst.msk [vmem:[#allocation4 + $0x24] sm:$0xf] %vm4864, %v4787
      %4875 = vst.msk [vmem:[#allocation4 + $0x28] sm:$0xf] %vm4864, %v4789
      %4876 = vst.msk [vmem:[#allocation4 + $0x2c] sm:$0xf] %vm4864, %v4791
      %4877 = vst.msk [vmem:[#allocation4 + $0x30] sm:$0xf] %vm4864, %v4793
      %4878 = vst.msk [vmem:[#allocation4 + $0x34] sm:$0xf] %vm4864, %v4795
      %4879 = vst.msk [vmem:[#allocation4 + $0x38] sm:$0xf] %vm4864, %v4797
      %4880 = vst.msk [vmem:[#allocation4 + $0x3c] sm:$0xf] %vm4864, %v4799
      %4881 = vst.msk [vmem:[#allocation4 + $0x40] sm:$0xf] %vm4864, %v4801
      %4882 = vst.msk [vmem:[#allocation4 + $0x44] sm:$0xf] %vm4864, %v4803
      %4883 = vst.msk [vmem:[#allocation4 + $0x48] sm:$0xf] %vm4864, %v4805
      %4884 = vst.msk [vmem:[#allocation4 + $0x4c] sm:$0xf] %vm4864, %v4807
      %4885 = vst.msk [vmem:[#allocation4 + $0x50] sm:$0xf] %vm4864, %v4809
      %4886 = vst.msk [vmem:[#allocation4 + $0x54] sm:$0xf] %vm4864, %v4811
      %4887 = vst.msk [vmem:[#allocation4 + $0x58] sm:$0xf] %vm4864, %v4813
      %4888 = vst.msk [vmem:[#allocation4 + $0x5c] sm:$0xf] %vm4864, %v4815
      %4889 = vst.msk [vmem:[#allocation4 + $0x60] sm:$0xf] %vm4864, %v4817
      %4890 = vst.msk [vmem:[#allocation4 + $0x64] sm:$0xf] %vm4864, %v4819
      %4891 = vst.msk [vmem:[#allocation4 + $0x68] sm:$0xf] %vm4864, %v4821
      %4892 = vst.msk [vmem:[#allocation4 + $0x6c] sm:$0xf] %vm4864, %v4823
      %4893 = vst.msk [vmem:[#allocation4 + $0x70] sm:$0xf] %vm4864, %v4825
      %4894 = vst.msk [vmem:[#allocation4 + $0x74] sm:$0xf] %vm4864, %v4827
      %4895 = vst.msk [vmem:[#allocation4 + $0x78] sm:$0xf] %vm4864, %v4829
      %4896 = vst.msk [vmem:[#allocation4 + $0x7c] sm:$0xf] %vm4864, %v4831
      %4897 = vrot.lane.b32.xlu0 %v3560, 48
      %v4898 = vpop.permute.xlu0 %4897
      %4899 = vrot.lane.b32.xlu0 %v3561, 48
      %v4900 = vpop.permute.xlu0 %4899
      %4901 = vrot.lane.b32.xlu0 %v3563, 48
      %v4902 = vpop.permute.xlu0 %4901
      %4903 = vrot.lane.b32.xlu0 %v3564, 48
      %v4904 = vpop.permute.xlu0 %4903
      %4905 = vrot.lane.b32.xlu0 %v3566, 48
      %v4906 = vpop.permute.xlu0 %4905
      %4907 = vrot.lane.b32.xlu0 %v3567, 48
      %v4908 = vpop.permute.xlu0 %4907
      %4909 = vrot.lane.b32.xlu0 %v3569, 48
      %v4910 = vpop.permute.xlu0 %4909
      %4911 = vrot.lane.b32.xlu0 %v3570, 48
      %v4912 = vpop.permute.xlu0 %4911
      %4913 = vrot.lane.b32.xlu0 %v3572, 48
      %v4914 = vpop.permute.xlu0 %4913
      %4915 = vrot.lane.b32.xlu0 %v3573, 48
      %v4916 = vpop.permute.xlu0 %4915
      %4917 = vrot.lane.b32.xlu0 %v3575, 48
      %v4918 = vpop.permute.xlu0 %4917
      %4919 = vrot.lane.b32.xlu0 %v3576, 48
      %v4920 = vpop.permute.xlu0 %4919
      %4921 = vrot.lane.b32.xlu0 %v3578, 48
      %v4922 = vpop.permute.xlu0 %4921
      %4923 = vrot.lane.b32.xlu0 %v3579, 48
      %v4924 = vpop.permute.xlu0 %4923
      %4925 = vrot.lane.b32.xlu0 %v3581, 48
      %v4926 = vpop.permute.xlu0 %4925
      %4927 = vrot.lane.b32.xlu0 %v3582, 48
      %v4928 = vpop.permute.xlu0 %4927
      %4929 = vrot.lane.b32.xlu0 %v3584, 48
      %v4930 = vpop.permute.xlu0 %4929
      %4931 = vrot.lane.b32.xlu0 %v3585, 48
      %v4932 = vpop.permute.xlu0 %4931
      %4933 = vrot.lane.b32.xlu0 %v3587, 48
      %v4934 = vpop.permute.xlu0 %4933
      %4935 = vrot.lane.b32.xlu0 %v3588, 48
      %v4936 = vpop.permute.xlu0 %4935
      %4937 = vrot.lane.b32.xlu0 %v3590, 48
      %v4938 = vpop.permute.xlu0 %4937
      %4939 = vrot.lane.b32.xlu0 %v3591, 48
      %v4940 = vpop.permute.xlu0 %4939
      %4941 = vrot.lane.b32.xlu0 %v3593, 48
      %v4942 = vpop.permute.xlu0 %4941
      %4943 = vrot.lane.b32.xlu0 %v3594, 48
      %v4944 = vpop.permute.xlu0 %4943
      %4945 = vrot.lane.b32.xlu0 %v3596, 48
      %v4946 = vpop.permute.xlu0 %4945
      %4947 = vrot.lane.b32.xlu0 %v3597, 48
      %v4948 = vpop.permute.xlu0 %4947
      %4949 = vrot.lane.b32.xlu0 %v3599, 48
      %v4950 = vpop.permute.xlu0 %4949
      %4951 = vrot.lane.b32.xlu0 %v3600, 48
      %v4952 = vpop.permute.xlu0 %4951
      %4953 = vrot.lane.b32.xlu0 %v3602, 48
      %v4954 = vpop.permute.xlu0 %4953
      %4955 = vrot.lane.b32.xlu0 %v3603, 48
      %v4956 = vpop.permute.xlu0 %4955
      %4957 = vrot.lane.b32.xlu0 %v3605, 48
      %v4958 = vpop.permute.xlu0 %4957
      %4959 = vrot.lane.b32.xlu0 %v3606, 48
      %v4960 = vpop.permute.xlu0 %4959
      %vm4993 = vcmask 454016
      %4994 = vst.msk [vmem:[#allocation4] sm:$0xf] %vm4993, %v4898
      %4995 = vst.msk [vmem:[#allocation4 + $0x4] sm:$0xf] %vm4993, %v4900
      %4996 = vst.msk [vmem:[#allocation4 + $0x8] sm:$0xf] %vm4993, %v4902
      %4997 = vst.msk [vmem:[#allocation4 + $0xc] sm:$0xf] %vm4993, %v4904
      %4998 = vst.msk [vmem:[#allocation4 + $0x10] sm:$0xf] %vm4993, %v4906
      %4999 = vst.msk [vmem:[#allocation4 + $0x14] sm:$0xf] %vm4993, %v4908
      %5000 = vst.msk [vmem:[#allocation4 + $0x18] sm:$0xf] %vm4993, %v4910
      %5001 = vst.msk [vmem:[#allocation4 + $0x1c] sm:$0xf] %vm4993, %v4912
      %5002 = vst.msk [vmem:[#allocation4 + $0x20] sm:$0xf] %vm4993, %v4914
      %5003 = vst.msk [vmem:[#allocation4 + $0x24] sm:$0xf] %vm4993, %v4916
      %5004 = vst.msk [vmem:[#allocation4 + $0x28] sm:$0xf] %vm4993, %v4918
      %5005 = vst.msk [vmem:[#allocation4 + $0x2c] sm:$0xf] %vm4993, %v4920
      %5006 = vst.msk [vmem:[#allocation4 + $0x30] sm:$0xf] %vm4993, %v4922
      %5007 = vst.msk [vmem:[#allocation4 + $0x34] sm:$0xf] %vm4993, %v4924
      %5008 = vst.msk [vmem:[#allocation4 + $0x38] sm:$0xf] %vm4993, %v4926
      %5009 = vst.msk [vmem:[#allocation4 + $0x3c] sm:$0xf] %vm4993, %v4928
      %5010 = vst.msk [vmem:[#allocation4 + $0x40] sm:$0xf] %vm4993, %v4930
      %5011 = vst.msk [vmem:[#allocation4 + $0x44] sm:$0xf] %vm4993, %v4932
      %5012 = vst.msk [vmem:[#allocation4 + $0x48] sm:$0xf] %vm4993, %v4934
      %5013 = vst.msk [vmem:[#allocation4 + $0x4c] sm:$0xf] %vm4993, %v4936
      %5014 = vst.msk [vmem:[#allocation4 + $0x50] sm:$0xf] %vm4993, %v4938
      %5015 = vst.msk [vmem:[#allocation4 + $0x54] sm:$0xf] %vm4993, %v4940
      %5016 = vst.msk [vmem:[#allocation4 + $0x58] sm:$0xf] %vm4993, %v4942
      %5017 = vst.msk [vmem:[#allocation4 + $0x5c] sm:$0xf] %vm4993, %v4944
      %5018 = vst.msk [vmem:[#allocation4 + $0x60] sm:$0xf] %vm4993, %v4946
      %5019 = vst.msk [vmem:[#allocation4 + $0x64] sm:$0xf] %vm4993, %v4948
      %5020 = vst.msk [vmem:[#allocation4 + $0x68] sm:$0xf] %vm4993, %v4950
      %5021 = vst.msk [vmem:[#allocation4 + $0x6c] sm:$0xf] %vm4993, %v4952
      %5022 = vst.msk [vmem:[#allocation4 + $0x70] sm:$0xf] %vm4993, %v4954
      %5023 = vst.msk [vmem:[#allocation4 + $0x74] sm:$0xf] %vm4993, %v4956
      %5024 = vst.msk [vmem:[#allocation4 + $0x78] sm:$0xf] %vm4993, %v4958
      %5025 = vst.msk [vmem:[#allocation4 + $0x7c] sm:$0xf] %vm4993, %v4960
      %5026 = vrot.lane.b32.xlu0 %v3669, 56
      %v5027 = vpop.permute.xlu0 %5026
      %5028 = vrot.lane.b32.xlu0 %v3679, 56
      %v5029 = vpop.permute.xlu0 %5028
      %5030 = vrot.lane.b32.xlu0 %v3693, 56
      %v5031 = vpop.permute.xlu0 %5030
      %5032 = vrot.lane.b32.xlu0 %v3703, 56
      %v5033 = vpop.permute.xlu0 %5032
      %5034 = vrot.lane.b32.xlu0 %v3717, 56
      %v5035 = vpop.permute.xlu0 %5034
      %5036 = vrot.lane.b32.xlu0 %v3727, 56
      %v5037 = vpop.permute.xlu0 %5036
      %5038 = vrot.lane.b32.xlu0 %v3741, 56
      %v5039 = vpop.permute.xlu0 %5038
      %5040 = vrot.lane.b32.xlu0 %v3751, 56
      %v5041 = vpop.permute.xlu0 %5040
      %5042 = vrot.lane.b32.xlu0 %v3765, 56
      %v5043 = vpop.permute.xlu0 %5042
      %5044 = vrot.lane.b32.xlu0 %v3775, 56
      %v5045 = vpop.permute.xlu0 %5044
      %5046 = vrot.lane.b32.xlu0 %v3789, 56
      %v5047 = vpop.permute.xlu0 %5046
      %5048 = vrot.lane.b32.xlu0 %v3799, 56
      %v5049 = vpop.permute.xlu0 %5048
      %5050 = vrot.lane.b32.xlu0 %v3813, 56
      %v5051 = vpop.permute.xlu0 %5050
      %5052 = vrot.lane.b32.xlu0 %v3823, 56
      %v5053 = vpop.permute.xlu0 %5052
      %5054 = vrot.lane.b32.xlu0 %v3837, 56
      %v5055 = vpop.permute.xlu0 %5054
      %5056 = vrot.lane.b32.xlu0 %v3847, 56
      %v5057 = vpop.permute.xlu0 %5056
      %5058 = vrot.lane.b32.xlu0 %v3861, 56
      %v5059 = vpop.permute.xlu0 %5058
      %5060 = vrot.lane.b32.xlu0 %v3871, 56
      %v5061 = vpop.permute.xlu0 %5060
      %5062 = vrot.lane.b32.xlu0 %v3885, 56
      %v5063 = vpop.permute.xlu0 %5062
      %5064 = vrot.lane.b32.xlu0 %v3895, 56
      %v5065 = vpop.permute.xlu0 %5064
      %5066 = vrot.lane.b32.xlu0 %v3909, 56
      %v5067 = vpop.permute.xlu0 %5066
      %5068 = vrot.lane.b32.xlu0 %v3919, 56
      %v5069 = vpop.permute.xlu0 %5068
      %5070 = vrot.lane.b32.xlu0 %v3933, 56
      %v5071 = vpop.permute.xlu0 %5070
      %5072 = vrot.lane.b32.xlu0 %v3943, 56
      %v5073 = vpop.permute.xlu0 %5072
      %5074 = vrot.lane.b32.xlu0 %v3957, 56
      %v5075 = vpop.permute.xlu0 %5074
      %5076 = vrot.lane.b32.xlu0 %v3967, 56
      %v5077 = vpop.permute.xlu0 %5076
      %5078 = vrot.lane.b32.xlu0 %v3981, 56
      %v5079 = vpop.permute.xlu0 %5078
      %5080 = vrot.lane.b32.xlu0 %v3991, 56
      %v5081 = vpop.permute.xlu0 %5080
      %5082 = vrot.lane.b32.xlu0 %v4165, 56
      %v5083 = vpop.permute.xlu0 %5082
      %5084 = vrot.lane.b32.xlu0 %v4175, 56
      %v5085 = vpop.permute.xlu0 %5084
      %5086 = vrot.lane.b32.xlu0 %v4199, 56
      %v5087 = vpop.permute.xlu0 %5086
      %5088 = vrot.lane.b32.xlu0 %v4209, 56
      %v5089 = vpop.permute.xlu0 %5088
      %vm5122 = vcmask 519616
      %5123 = vst.msk [vmem:[#allocation4] sm:$0xf] %vm5122, %v5027
      %5124 = vst.msk [vmem:[#allocation4 + $0x4] sm:$0xf] %vm5122, %v5029
      %5125 = vst.msk [vmem:[#allocation4 + $0x8] sm:$0xf] %vm5122, %v5031
      %5126 = vst.msk [vmem:[#allocation4 + $0xc] sm:$0xf] %vm5122, %v5033
      %5127 = vst.msk [vmem:[#allocation4 + $0x10] sm:$0xf] %vm5122, %v5035
      %5128 = vst.msk [vmem:[#allocation4 + $0x14] sm:$0xf] %vm5122, %v5037
      %5129 = vst.msk [vmem:[#allocation4 + $0x18] sm:$0xf] %vm5122, %v5039
      %5130 = vst.msk [vmem:[#allocation4 + $0x1c] sm:$0xf] %vm5122, %v5041
      %5131 = vst.msk [vmem:[#allocation4 + $0x20] sm:$0xf] %vm5122, %v5043
      %5132 = vst.msk [vmem:[#allocation4 + $0x24] sm:$0xf] %vm5122, %v5045
      %5133 = vst.msk [vmem:[#allocation4 + $0x28] sm:$0xf] %vm5122, %v5047
      %5134 = vst.msk [vmem:[#allocation4 + $0x2c] sm:$0xf] %vm5122, %v5049
      %5135 = vst.msk [vmem:[#allocation4 + $0x30] sm:$0xf] %vm5122, %v5051
      %5136 = vst.msk [vmem:[#allocation4 + $0x34] sm:$0xf] %vm5122, %v5053
      %5137 = vst.msk [vmem:[#allocation4 + $0x38] sm:$0xf] %vm5122, %v5055
      %5138 = vst.msk [vmem:[#allocation4 + $0x3c] sm:$0xf] %vm5122, %v5057
      %5139 = vst.msk [vmem:[#allocation4 + $0x40] sm:$0xf] %vm5122, %v5059
      %5140 = vst.msk [vmem:[#allocation4 + $0x44] sm:$0xf] %vm5122, %v5061
      %5141 = vst.msk [vmem:[#allocation4 + $0x48] sm:$0xf] %vm5122, %v5063
      %5142 = vst.msk [vmem:[#allocation4 + $0x4c] sm:$0xf] %vm5122, %v5065
      %5143 = vst.msk [vmem:[#allocation4 + $0x50] sm:$0xf] %vm5122, %v5067
      %5144 = vst.msk [vmem:[#allocation4 + $0x54] sm:$0xf] %vm5122, %v5069
      %5145 = vst.msk [vmem:[#allocation4 + $0x58] sm:$0xf] %vm5122, %v5071
      %5146 = vst.msk [vmem:[#allocation4 + $0x5c] sm:$0xf] %vm5122, %v5073
      %5147 = vst.msk [vmem:[#allocation4 + $0x60] sm:$0xf] %vm5122, %v5075
      %5148 = vst.msk [vmem:[#allocation4 + $0x64] sm:$0xf] %vm5122, %v5077
      %5149 = vst.msk [vmem:[#allocation4 + $0x68] sm:$0xf] %vm5122, %v5079
      %5150 = vst.msk [vmem:[#allocation4 + $0x6c] sm:$0xf] %vm5122, %v5081
      %5151 = vst.msk [vmem:[#allocation4 + $0x70] sm:$0xf] %vm5122, %v5083
      %5152 = vst.msk [vmem:[#allocation4 + $0x74] sm:$0xf] %vm5122, %v5085
      %5153 = vst.msk [vmem:[#allocation4 + $0x78] sm:$0xf] %vm5122, %v5087
      %5154 = vst.msk [vmem:[#allocation4 + $0x7c] sm:$0xf] %vm5122, %v5089
      %5155 = vrot.lane.b32.xlu0 %v4057, 64
      %v5156 = vpop.permute.xlu0 %5155
      %5157 = vrot.lane.b32.xlu0 %v4060, 64
      %v5158 = vpop.permute.xlu0 %5157
      %5159 = vrot.lane.b32.xlu0 %v4064, 64
      %v5160 = vpop.permute.xlu0 %5159
      %5161 = vrot.lane.b32.xlu0 %v4067, 64
      %v5162 = vpop.permute.xlu0 %5161
      %5163 = vrot.lane.b32.xlu0 %v4071, 64
      %v5164 = vpop.permute.xlu0 %5163
      %5165 = vrot.lane.b32.xlu0 %v4074, 64
      %v5166 = vpop.permute.xlu0 %5165
      %5167 = vrot.lane.b32.xlu0 %v4078, 64
      %v5168 = vpop.permute.xlu0 %5167
      %5169 = vrot.lane.b32.xlu0 %v4081, 64
      %v5170 = vpop.permute.xlu0 %5169
      %5171 = vrot.lane.b32.xlu0 %v4085, 64
      %v5172 = vpop.permute.xlu0 %5171
      %5173 = vrot.lane.b32.xlu0 %v4088, 64
      %v5174 = vpop.permute.xlu0 %5173
      %5175 = vrot.lane.b32.xlu0 %v4092, 64
      %v5176 = vpop.permute.xlu0 %5175
      %5177 = vrot.lane.b32.xlu0 %v4095, 64
      %v5178 = vpop.permute.xlu0 %5177
      %5179 = vrot.lane.b32.xlu0 %v4099, 64
      %v5180 = vpop.permute.xlu0 %5179
      %5181 = vrot.lane.b32.xlu0 %v4102, 64
      %v5182 = vpop.permute.xlu0 %5181
      %5183 = vrot.lane.b32.xlu0 %v4106, 64
      %v5184 = vpop.permute.xlu0 %5183
      %5185 = vrot.lane.b32.xlu0 %v4109, 64
      %v5186 = vpop.permute.xlu0 %5185
      %5187 = vrot.lane.b32.xlu0 %v4113, 64
      %v5188 = vpop.permute.xlu0 %5187
      %5189 = vrot.lane.b32.xlu0 %v4116, 64
      %v5190 = vpop.permute.xlu0 %5189
      %5191 = vrot.lane.b32.xlu0 %v4120, 64
      %v5192 = vpop.permute.xlu0 %5191
      %5193 = vrot.lane.b32.xlu0 %v4123, 64
      %v5194 = vpop.permute.xlu0 %5193
      %5195 = vrot.lane.b32.xlu0 %v4127, 64
      %v5196 = vpop.permute.xlu0 %5195
      %5197 = vrot.lane.b32.xlu0 %v4130, 64
      %v5198 = vpop.permute.xlu0 %5197
      %5199 = vrot.lane.b32.xlu0 %v4134, 64
      %v5200 = vpop.permute.xlu0 %5199
      %5201 = vrot.lane.b32.xlu0 %v4137, 64
      %v5202 = vpop.permute.xlu0 %5201
      %5203 = vrot.lane.b32.xlu0 %v4141, 64
      %v5204 = vpop.permute.xlu0 %5203
      %5205 = vrot.lane.b32.xlu0 %v4144, 64
      %v5206 = vpop.permute.xlu0 %5205
      %5207 = vrot.lane.b32.xlu0 %v4148, 64
      %v5208 = vpop.permute.xlu0 %5207
      %5209 = vrot.lane.b32.xlu0 %v4151, 64
      %v5210 = vpop.permute.xlu0 %5209
      %5211 = vrot.lane.b32.xlu0 %v4182, 64
      %v5212 = vpop.permute.xlu0 %5211
      %5213 = vrot.lane.b32.xlu0 %v4185, 64
      %v5214 = vpop.permute.xlu0 %5213
      %5215 = vrot.lane.b32.xlu0 %v4216, 64
      %v5216 = vpop.permute.xlu0 %5215
      %5217 = vrot.lane.b32.xlu0 %v4219, 64
      %v5218 = vpop.permute.xlu0 %5217
      %vm5251 = vcmask 585216
      %5252 = vst.msk [vmem:[#allocation4] sm:$0xf] %vm5251, %v5156
      %5253 = vst.msk [vmem:[#allocation4 + $0x4] sm:$0xf] %vm5251, %v5158
      %5254 = vst.msk [vmem:[#allocation4 + $0x8] sm:$0xf] %vm5251, %v5160
      %5255 = vst.msk [vmem:[#allocation4 + $0xc] sm:$0xf] %vm5251, %v5162
      %5256 = vst.msk [vmem:[#allocation4 + $0x10] sm:$0xf] %vm5251, %v5164
      %5257 = vst.msk [vmem:[#allocation4 + $0x14] sm:$0xf] %vm5251, %v5166
      %5258 = vst.msk [vmem:[#allocation4 + $0x18] sm:$0xf] %vm5251, %v5168
      %5259 = vst.msk [vmem:[#allocation4 + $0x1c] sm:$0xf] %vm5251, %v5170
      %5260 = vst.msk [vmem:[#allocation4 + $0x20] sm:$0xf] %vm5251, %v5172
      %5261 = vst.msk [vmem:[#allocation4 + $0x24] sm:$0xf] %vm5251, %v5174
      %5262 = vst.msk [vmem:[#allocation4 + $0x28] sm:$0xf] %vm5251, %v5176
      %5263 = vst.msk [vmem:[#allocation4 + $0x2c] sm:$0xf] %vm5251, %v5178
      %5264 = vst.msk [vmem:[#allocation4 + $0x30] sm:$0xf] %vm5251, %v5180
      %5265 = vst.msk [vmem:[#allocation4 + $0x34] sm:$0xf] %vm5251, %v5182
      %5266 = vst.msk [vmem:[#allocation4 + $0x38] sm:$0xf] %vm5251, %v5184
      %5267 = vst.msk [vmem:[#allocation4 + $0x3c] sm:$0xf] %vm5251, %v5186
      %5268 = vst.msk [vmem:[#allocation4 + $0x40] sm:$0xf] %vm5251, %v5188
      %5269 = vst.msk [vmem:[#allocation4 + $0x44] sm:$0xf] %vm5251, %v5190
      %5270 = vst.msk [vmem:[#allocation4 + $0x48] sm:$0xf] %vm5251, %v5192
      %5271 = vst.msk [vmem:[#allocation4 + $0x4c] sm:$0xf] %vm5251, %v5194
      %5272 = vst.msk [vmem:[#allocation4 + $0x50] sm:$0xf] %vm5251, %v5196
      %5273 = vst.msk [vmem:[#allocation4 + $0x54] sm:$0xf] %vm5251, %v5198
      %5274 = vst.msk [vmem:[#allocation4 + $0x58] sm:$0xf] %vm5251, %v5200
      %5275 = vst.msk [vmem:[#allocation4 + $0x5c] sm:$0xf] %vm5251, %v5202
      %5276 = vst.msk [vmem:[#allocation4 + $0x60] sm:$0xf] %vm5251, %v5204
      %5277 = vst.msk [vmem:[#allocation4 + $0x64] sm:$0xf] %vm5251, %v5206
      %5278 = vst.msk [vmem:[#allocation4 + $0x68] sm:$0xf] %vm5251, %v5208
      %5279 = vst.msk [vmem:[#allocation4 + $0x6c] sm:$0xf] %vm5251, %v5210
      %5280 = vst.msk [vmem:[#allocation4 + $0x70] sm:$0xf] %vm5251, %v5212
      %5281 = vst.msk [vmem:[#allocation4 + $0x74] sm:$0xf] %vm5251, %v5214
      %5282 = vst.msk [vmem:[#allocation4 + $0x78] sm:$0xf] %vm5251, %v5216
      %5283 = vst.msk [vmem:[#allocation4 + $0x7c] sm:$0xf] %vm5251, %v5218
      %v5284 = vld [vmem:[#allocation4] sm:$0xf]
      %v5285 = vld [vmem:[#allocation4 + $0x4] sm:$0xf]
      %v5286 = vld [vmem:[#allocation4 + $0x8] sm:$0xf]
      %v5287 = vld [vmem:[#allocation4 + $0xc] sm:$0xf]
      %v5288 = vld [vmem:[#allocation4 + $0x10] sm:$0xf]
      %v5289 = vld [vmem:[#allocation4 + $0x14] sm:$0xf]
      %v5290 = vld [vmem:[#allocation4 + $0x18] sm:$0xf]
      %v5291 = vld [vmem:[#allocation4 + $0x1c] sm:$0xf]
      %v5292 = vld [vmem:[#allocation4 + $0x20] sm:$0xf]
      %v5293 = vld [vmem:[#allocation4 + $0x24] sm:$0xf]
      %v5294 = vld [vmem:[#allocation4 + $0x28] sm:$0xf]
      %v5295 = vld [vmem:[#allocation4 + $0x2c] sm:$0xf]
      %v5296 = vld [vmem:[#allocation4 + $0x30] sm:$0xf]
      %v5297 = vld [vmem:[#allocation4 + $0x34] sm:$0xf]
      %v5298 = vld [vmem:[#allocation4 + $0x38] sm:$0xf]
      %v5299 = vld [vmem:[#allocation4 + $0x3c] sm:$0xf]
      %v5300 = vld [vmem:[#allocation4 + $0x40] sm:$0xf]
      %v5301 = vld [vmem:[#allocation4 + $0x44] sm:$0xf]
      %v5302 = vld [vmem:[#allocation4 + $0x48] sm:$0xf]
      %v5303 = vld [vmem:[#allocation4 + $0x4c] sm:$0xf]
      %v5304 = vld [vmem:[#allocation4 + $0x50] sm:$0xf]
      %v5305 = vld [vmem:[#allocation4 + $0x54] sm:$0xf]
      %v5306 = vld [vmem:[#allocation4 + $0x58] sm:$0xf]
      %v5307 = vld [vmem:[#allocation4 + $0x5c] sm:$0xf]
      %v5308 = vld [vmem:[#allocation4 + $0x60] sm:$0xf]
      %v5309 = vld [vmem:[#allocation4 + $0x64] sm:$0xf]
      %v5310 = vld [vmem:[#allocation4 + $0x68] sm:$0xf]
      %v5311 = vld [vmem:[#allocation4 + $0x6c] sm:$0xf]
      %v5312 = vld [vmem:[#allocation4 + $0x70] sm:$0xf]
      %v5313 = vld [vmem:[#allocation4 + $0x74] sm:$0xf]
      %v5314 = vld [vmem:[#allocation4 + $0x78] sm:$0xf]
      %v5315 = vld [vmem:[#allocation4 + $0x7c] sm:$0xf]
      %v5316 = vld [vmem:[%s4] sm:$0xf]
      %v5317 = vld [vmem:[%s4 + $0x4] sm:$0xf]
      %v5318 = vld [vmem:[%s4 + $0x8] sm:$0xf]
      %v5319 = vld [vmem:[%s4 + $0xc] sm:$0xf]
      %v5320 = vld [vmem:[%s4 + $0x10] sm:$0xf]
      %v5321 = vld [vmem:[%s4 + $0x14] sm:$0xf]
      %v5322 = vld [vmem:[%s4 + $0x18] sm:$0xf]
      %v5323 = vld [vmem:[%s4 + $0x1c] sm:$0xf]
      %v5324 = vld [vmem:[%s4 + $0x20] sm:$0xf]
      %v5357 = vunpack.c.l.b16 %v5284
      %v5358 = vunpack.c.l.b16 %v5285
      %v5359 = vunpack.c.l.b16 %v5286
      %v5360 = vunpack.c.l.b16 %v5287
      %v5361 = vunpack.c.l.b16 %v5288
      %v5362 = vunpack.c.l.b16 %v5289
      %v5363 = vunpack.c.l.b16 %v5290
      %v5364 = vunpack.c.l.b16 %v5291
      %v5365 = vunpack.c.l.b16 %v5292
      %v5366 = vunpack.c.l.b16 %v5293
      %v5367 = vunpack.c.l.b16 %v5294
      %v5368 = vunpack.c.l.b16 %v5295
      %v5369 = vunpack.c.l.b16 %v5296
      %v5370 = vunpack.c.l.b16 %v5297
      %v5371 = vunpack.c.l.b16 %v5298
      %v5372 = vunpack.c.l.b16 %v5299
      %v5373 = vunpack.c.l.b16 %v5300
      %v5374 = vunpack.c.l.b16 %v5301
      %v5375 = vunpack.c.l.b16 %v5302
      %v5376 = vunpack.c.l.b16 %v5303
      %v5377 = vunpack.c.l.b16 %v5304
      %v5378 = vunpack.c.l.b16 %v5305
      %v5379 = vunpack.c.l.b16 %v5306
      %v5380 = vunpack.c.l.b16 %v5307
      %v5381 = vunpack.c.l.b16 %v5308
      %v5382 = vunpack.c.l.b16 %v5309
      %v5383 = vunpack.c.l.b16 %v5310
      %v5384 = vunpack.c.l.b16 %v5311
      %v5385 = vunpack.c.l.b16 %v5312
      %v5386 = vunpack.c.l.b16 %v5313
      %v5387 = vunpack.c.l.b16 %v5314
      %v5388 = vunpack.c.l.b16 %v5315
      %v5389 = vpack.c.b16 %v5358, %v5357
      %v5390 = vpack.c.b16 %v5360, %v5359
      %v5391 = vpack.c.b16 %v5362, %v5361
      %v5392 = vpack.c.b16 %v5364, %v5363
      %v5393 = vpack.c.b16 %v5366, %v5365
      %v5394 = vpack.c.b16 %v5368, %v5367
      %v5395 = vpack.c.b16 %v5370, %v5369
      %v5396 = vpack.c.b16 %v5372, %v5371
      %v5397 = vpack.c.b16 %v5374, %v5373
      %v5398 = vpack.c.b16 %v5376, %v5375
      %v5399 = vpack.c.b16 %v5378, %v5377
      %v5400 = vpack.c.b16 %v5380, %v5379
      %v5401 = vpack.c.b16 %v5382, %v5381
      %v5402 = vpack.c.b16 %v5384, %v5383
      %v5403 = vpack.c.b16 %v5386, %v5385
      %v5404 = vpack.c.b16 %v5388, %v5387
      %v5414 = vunpack.c.l.b16 %v5316
      %v5415 = vunpack.c.l.b16 %v5317
      %v5416 = vunpack.c.l.b16 %v5318
      %v5417 = vunpack.c.l.b16 %v5319
      %v5418 = vunpack.c.l.b16 %v5320
      %v5419 = vunpack.c.l.b16 %v5321
      %v5420 = vunpack.c.l.b16 %v5322
      %v5421 = vunpack.c.l.b16 %v5323
      %v5422 = vunpack.c.l.b16 %v5324
      %v5423 = vpack.c.b16 %v5415, %v5414
      %v5424 = vpack.c.b16 %v5417, %v5416
      %v5425 = vpack.c.b16 %v5419, %v5418
      %v5426 = vpack.c.b16 %v5421, %v5420
      %v5427 = vpack.c.b16 %v5422, %v5422
      %vm5432 = vcmask 588800
      %v5434 = vsel %vm5432, %v5389, 0
      %v5437 = vsel %vm5432, %v5390, 0
      %v5440 = vsel %vm5432, %v5391, 0
      %v5443 = vsel %vm5432, %v5392, 0
      %v5446 = vsel %vm5432, %v5393, 0
      %v5449 = vsel %vm5432, %v5394, 0
      %v5452 = vsel %vm5432, %v5395, 0
      %v5455 = vsel %vm5432, %v5396, 0
      %v5458 = vsel %vm5432, %v5397, 0
      %v5461 = vsel %vm5432, %v5398, 0
      %v5464 = vsel %vm5432, %v5399, 0
      %v5467 = vsel %vm5432, %v5400, 0
      %v5470 = vsel %vm5432, %v5401, 0
      %v5473 = vsel %vm5432, %v5402, 0
      %v5476 = vsel %vm5432, %v5403, 0
      %v5479 = vsel %vm5432, %v5404, 0
      %vm5481 = vcmask 1043456
      %v5483 = vsel %vm5481, %v5427, 0
      %5485 = vmatpush.bf16.msra.mxu0 0
      %5486 = vmatpush.bf16.msra.mxu0 0
      %5487 = vmatpush.bf16.msra.mxu0 0
      %5488 = vmatpush.bf16.msra.mxu0 %v5483
      %5489 = vmatpush.bf16.msra.mxu0 %v5426
      %5490 = vmatpush.bf16.msra.mxu0 %v5425
      %5491 = vmatpush.bf16.msra.mxu0 %v5424
      %5492 = vmatpush.bf16.msra.mxu0 %v5423
      %5493 = vmatmul.bf16.gmra.mxu0 %v5434
      %v5494 = vpop.f32.mrf.mxu0
      %v5495 = vadd.f32 0.0, %v5494
      %v5496 = vpop.f32.mrf.mxu0
      %v5497 = vadd.f32 0.0, %v5496
      %5498 = vmatmul.bf16.gmra.mxu0 %v5437
      %v5499 = vpop.f32.mrf.mxu0
      %v5500 = vadd.f32 0.0, %v5499
      %v5501 = vpop.f32.mrf.mxu0
      %v5502 = vadd.f32 0.0, %v5501
      %5503 = vmatmul.bf16.gmra.mxu0 %v5440
      %v5504 = vpop.f32.mrf.mxu0
      %v5505 = vadd.f32 0.0, %v5504
      %v5506 = vpop.f32.mrf.mxu0
      %v5507 = vadd.f32 0.0, %v5506
      %5508 = vmatmul.bf16.gmra.mxu0 %v5443
      %v5509 = vpop.f32.mrf.mxu0
      %v5510 = vadd.f32 0.0, %v5509
      %v5511 = vpop.f32.mrf.mxu0
      %v5512 = vadd.f32 0.0, %v5511
      %5513 = vmatmul.bf16.gmra.mxu0 %v5446
      %v5514 = vpop.f32.mrf.mxu0
      %v5515 = vadd.f32 0.0, %v5514
      %v5516 = vpop.f32.mrf.mxu0
      %v5517 = vadd.f32 0.0, %v5516
      %5518 = vmatmul.bf16.gmra.mxu0 %v5449
      %v5519 = vpop.f32.mrf.mxu0
      %v5520 = vadd.f32 0.0, %v5519
      %v5521 = vpop.f32.mrf.mxu0
      %v5522 = vadd.f32 0.0, %v5521
      %5523 = vmatmul.bf16.gmra.mxu0 %v5452
      %v5524 = vpop.f32.mrf.mxu0
      %v5525 = vadd.f32 0.0, %v5524
      %v5526 = vpop.f32.mrf.mxu0
      %v5527 = vadd.f32 0.0, %v5526
      %5528 = vmatmul.bf16.gmra.mxu0 %v5455
      %v5529 = vpop.f32.mrf.mxu0
      %v5530 = vadd.f32 0.0, %v5529
      %v5531 = vpop.f32.mrf.mxu0
      %v5532 = vadd.f32 0.0, %v5531
      %5533 = vmatmul.bf16.gmra.mxu0 %v5458
      %v5534 = vpop.f32.mrf.mxu0
      %v5535 = vadd.f32 0.0, %v5534
      %v5536 = vpop.f32.mrf.mxu0
      %v5537 = vadd.f32 0.0, %v5536
      %5538 = vmatmul.bf16.gmra.mxu0 %v5461
      %v5539 = vpop.f32.mrf.mxu0
      %v5540 = vadd.f32 0.0, %v5539
      %v5541 = vpop.f32.mrf.mxu0
      %v5542 = vadd.f32 0.0, %v5541
      %5543 = vmatmul.bf16.gmra.mxu0 %v5464
      %v5544 = vpop.f32.mrf.mxu0
      %v5545 = vadd.f32 0.0, %v5544
      %v5546 = vpop.f32.mrf.mxu0
      %v5547 = vadd.f32 0.0, %v5546
      %5548 = vmatmul.bf16.gmra.mxu0 %v5467
      %v5549 = vpop.f32.mrf.mxu0
      %v5550 = vadd.f32 0.0, %v5549
      %v5551 = vpop.f32.mrf.mxu0
      %v5552 = vadd.f32 0.0, %v5551
      %5553 = vmatmul.bf16.gmra.mxu0 %v5470
      %v5554 = vpop.f32.mrf.mxu0
      %v5555 = vadd.f32 0.0, %v5554
      %v5556 = vpop.f32.mrf.mxu0
      %v5557 = vadd.f32 0.0, %v5556
      %5558 = vmatmul.bf16.gmra.mxu0 %v5473
      %v5559 = vpop.f32.mrf.mxu0
      %v5560 = vadd.f32 0.0, %v5559
      %v5561 = vpop.f32.mrf.mxu0
      %v5562 = vadd.f32 0.0, %v5561
      %5563 = vmatmul.bf16.gmra.mxu0 %v5476
      %v5564 = vpop.f32.mrf.mxu0
      %v5565 = vadd.f32 0.0, %v5564
      %v5566 = vpop.f32.mrf.mxu0
      %v5567 = vadd.f32 0.0, %v5566
      %5568 = vmatmul.bf16.gmra.mxu0 %v5479
      %v5569 = vpop.f32.mrf.mxu0
      %v5570 = vadd.f32 0.0, %v5569
      %v5571 = vpop.f32.mrf.mxu0
      %v5572 = vadd.f32 0.0, %v5571
      %5573 = vdwg.mxu0
      %v5574 = vld [vmem:[%s5] sm:$0x1]
      %v5576 = vperm.slane %v5574, 0
      %v5578 = vmul.f32 %v5495, %v5576
      %v5579 = vmul.f32 %v5497, %v5576
      %v5580 = vmul.f32 %v5500, %v5576
      %v5581 = vmul.f32 %v5502, %v5576
      %v5582 = vmul.f32 %v5505, %v5576
      %v5583 = vmul.f32 %v5507, %v5576
      %v5584 = vmul.f32 %v5510, %v5576
      %v5585 = vmul.f32 %v5512, %v5576
      %v5586 = vmul.f32 %v5515, %v5576
      %v5587 = vmul.f32 %v5517, %v5576
      %v5588 = vmul.f32 %v5520, %v5576
      %v5589 = vmul.f32 %v5522, %v5576
      %v5590 = vmul.f32 %v5525, %v5576
      %v5591 = vmul.f32 %v5527, %v5576
      %v5592 = vmul.f32 %v5530, %v5576
      %v5593 = vmul.f32 %v5532, %v5576
      %v5594 = vmul.f32 %v5535, %v5576
      %v5595 = vmul.f32 %v5537, %v5576
      %v5596 = vmul.f32 %v5540, %v5576
      %v5597 = vmul.f32 %v5542, %v5576
      %v5598 = vmul.f32 %v5545, %v5576
      %v5599 = vmul.f32 %v5547, %v5576
      %v5600 = vmul.f32 %v5550, %v5576
      %v5601 = vmul.f32 %v5552, %v5576
      %v5602 = vmul.f32 %v5555, %v5576
      %v5603 = vmul.f32 %v5557, %v5576
      %v5604 = vmul.f32 %v5560, %v5576
      %v5605 = vmul.f32 %v5562, %v5576
      %v5606 = vmul.f32 %v5565, %v5576
      %v5607 = vmul.f32 %v5567, %v5576
      %v5608 = vmul.f32 %v5570, %v5576
      %v5609 = vmul.f32 %v5572, %v5576
      %v5610 = vld [vmem:[%s6] sm:$0x1]
      %v5612 = vperm.slane %v5610, 0
      %v5614 = vadd.f32 %v5578, %v5612
      %v5615 = vadd.f32 %v5579, %v5612
      %v5616 = vadd.f32 %v5580, %v5612
      %v5617 = vadd.f32 %v5581, %v5612
      %v5618 = vadd.f32 %v5582, %v5612
      %v5619 = vadd.f32 %v5583, %v5612
      %v5620 = vadd.f32 %v5584, %v5612
      %v5621 = vadd.f32 %v5585, %v5612
      %v5622 = vadd.f32 %v5586, %v5612
      %v5623 = vadd.f32 %v5587, %v5612
      %v5624 = vadd.f32 %v5588, %v5612
      %v5625 = vadd.f32 %v5589, %v5612
      %v5626 = vadd.f32 %v5590, %v5612
      %v5627 = vadd.f32 %v5591, %v5612
      %v5628 = vadd.f32 %v5592, %v5612
      %v5629 = vadd.f32 %v5593, %v5612
      %v5630 = vadd.f32 %v5594, %v5612
      %v5631 = vadd.f32 %v5595, %v5612
      %v5632 = vadd.f32 %v5596, %v5612
      %v5633 = vadd.f32 %v5597, %v5612
      %v5634 = vadd.f32 %v5598, %v5612
      %v5635 = vadd.f32 %v5599, %v5612
      %v5636 = vadd.f32 %v5600, %v5612
      %v5637 = vadd.f32 %v5601, %v5612
      %v5638 = vadd.f32 %v5602, %v5612
      %v5639 = vadd.f32 %v5603, %v5612
      %v5640 = vadd.f32 %v5604, %v5612
      %v5641 = vadd.f32 %v5605, %v5612
      %v5642 = vadd.f32 %v5606, %v5612
      %v5643 = vadd.f32 %v5607, %v5612
      %v5644 = vadd.f32 %v5608, %v5612
      %v5645 = vadd.f32 %v5609, %v5612
      %v5646 = vpack.c.bf16 %v362, %v361
      %v5647 = vpack.c.bf16 %v364, %v363
      %v5648 = vpack.c.bf16 %v366, %v365
      %v5649 = vpack.c.bf16 %v368, %v367
      %v5650 = vpack.c.bf16 %v370, %v369
      %v5651 = vpack.c.bf16 %v372, %v371
      %v5652 = vpack.c.bf16 %v374, %v373
      %v5653 = vpack.c.bf16 %v376, %v375
      %v5654 = vpack.c.bf16 %v378, %v377
      %v5655 = vpack.c.bf16 %v380, %v379
      %v5656 = vpack.c.bf16 %v382, %v381
      %v5657 = vpack.c.bf16 %v384, %v383
      %v5658 = vpack.c.bf16 %v386, %v385
      %v5659 = vpack.c.bf16 %v388, %v387
      %v5660 = vpack.c.bf16 %v390, %v389
      %v5661 = vpack.c.bf16 %v392, %v391
      %v5662 = vld [vmem:[%s7] sm:$0x3]
      %vm5663 = vcmask 31744
      %v5665 = vsel %vm5663, %v5646, 0
      %v5668 = vsel %vm5663, %v5647, 0
      %v5671 = vsel %vm5663, %v5648, 0
      %v5674 = vsel %vm5663, %v5649, 0
      %v5677 = vsel %vm5663, %v5650, 0
      %v5680 = vsel %vm5663, %v5651, 0
      %v5683 = vsel %vm5663, %v5652, 0
      %v5686 = vsel %vm5663, %v5653, 0
      %v5689 = vsel %vm5663, %v5654, 0
      %v5692 = vsel %vm5663, %v5655, 0
      %v5695 = vsel %vm5663, %v5656, 0
      %v5698 = vsel %vm5663, %v5657, 0
      %v5701 = vsel %vm5663, %v5658, 0
      %v5704 = vsel %vm5663, %v5659, 0
      %v5707 = vsel %vm5663, %v5660, 0
      %v5710 = vsel %vm5663, %v5661, 0
      %v5713 = vsel %vm2835, %v5662, 0
      %5715 = vmatpush.bf16.msra.mxu0 0
      %5716 = vmatpush.bf16.msra.mxu0 0
      %5717 = vmatpush.bf16.msra.mxu0 0
      %5718 = vmatpush.bf16.msra.mxu0 0
      %5719 = vmatpush.bf16.msra.mxu0 0
      %5720 = vmatpush.bf16.msra.mxu0 0
      %5721 = vmatpush.bf16.msra.mxu0 0
      %5722 = vmatpush.bf16.msra.mxu0 %v5713
      %5723 = vmatmul.bf16.gmra.mxu0 %v5665
      %v5724 = vpop.f32.mrf.mxu0
      %v5725 = vadd.f32 0.0, %v5724
      %v5726 = vpop.f32.mrf.mxu0
      %v5727 = vadd.f32 0.0, %v5726
      %5728 = vmatmul.bf16.gmra.mxu0 %v5668
      %v5729 = vpop.f32.mrf.mxu0
      %v5730 = vadd.f32 0.0, %v5729
      %v5731 = vpop.f32.mrf.mxu0
      %v5732 = vadd.f32 0.0, %v5731
      %5733 = vmatmul.bf16.gmra.mxu0 %v5671
      %v5734 = vpop.f32.mrf.mxu0
      %v5735 = vadd.f32 0.0, %v5734
      %v5736 = vpop.f32.mrf.mxu0
      %v5737 = vadd.f32 0.0, %v5736
      %5738 = vmatmul.bf16.gmra.mxu0 %v5674
      %v5739 = vpop.f32.mrf.mxu0
      %v5740 = vadd.f32 0.0, %v5739
      %v5741 = vpop.f32.mrf.mxu0
      %v5742 = vadd.f32 0.0, %v5741
      %5743 = vmatmul.bf16.gmra.mxu0 %v5677
      %v5744 = vpop.f32.mrf.mxu0
      %v5745 = vadd.f32 0.0, %v5744
      %v5746 = vpop.f32.mrf.mxu0
      %v5747 = vadd.f32 0.0, %v5746
      %5748 = vmatmul.bf16.gmra.mxu0 %v5680
      %v5749 = vpop.f32.mrf.mxu0
      %v5750 = vadd.f32 0.0, %v5749
      %v5751 = vpop.f32.mrf.mxu0
      %v5752 = vadd.f32 0.0, %v5751
      %5753 = vmatmul.bf16.gmra.mxu0 %v5683
      %v5754 = vpop.f32.mrf.mxu0
      %v5755 = vadd.f32 0.0, %v5754
      %v5756 = vpop.f32.mrf.mxu0
      %v5757 = vadd.f32 0.0, %v5756
      %5758 = vmatmul.bf16.gmra.mxu0 %v5686
      %v5759 = vpop.f32.mrf.mxu0
      %v5760 = vadd.f32 0.0, %v5759
      %v5761 = vpop.f32.mrf.mxu0
      %v5762 = vadd.f32 0.0, %v5761
      %5763 = vmatmul.bf16.gmra.mxu0 %v5689
      %v5764 = vpop.f32.mrf.mxu0
      %v5765 = vadd.f32 0.0, %v5764
      %v5766 = vpop.f32.mrf.mxu0
      %v5767 = vadd.f32 0.0, %v5766
      %5768 = vmatmul.bf16.gmra.mxu0 %v5692
      %v5769 = vpop.f32.mrf.mxu0
      %v5770 = vadd.f32 0.0, %v5769
      %v5771 = vpop.f32.mrf.mxu0
      %v5772 = vadd.f32 0.0, %v5771
      %5773 = vmatmul.bf16.gmra.mxu0 %v5695
      %v5774 = vpop.f32.mrf.mxu0
      %v5775 = vadd.f32 0.0, %v5774
      %v5776 = vpop.f32.mrf.mxu0
      %v5777 = vadd.f32 0.0, %v5776
      %5778 = vmatmul.bf16.gmra.mxu0 %v5698
      %v5779 = vpop.f32.mrf.mxu0
      %v5780 = vadd.f32 0.0, %v5779
      %v5781 = vpop.f32.mrf.mxu0
      %v5782 = vadd.f32 0.0, %v5781
      %5783 = vmatmul.bf16.gmra.mxu0 %v5701
      %v5784 = vpop.f32.mrf.mxu0
      %v5785 = vadd.f32 0.0, %v5784
      %v5786 = vpop.f32.mrf.mxu0
      %v5787 = vadd.f32 0.0, %v5786
      %5788 = vmatmul.bf16.gmra.mxu0 %v5704
      %v5789 = vpop.f32.mrf.mxu0
      %v5790 = vadd.f32 0.0, %v5789
      %v5791 = vpop.f32.mrf.mxu0
      %v5792 = vadd.f32 0.0, %v5791
      %5793 = vmatmul.bf16.gmra.mxu0 %v5707
      %v5794 = vpop.f32.mrf.mxu0
      %v5795 = vadd.f32 0.0, %v5794
      %v5796 = vpop.f32.mrf.mxu0
      %v5797 = vadd.f32 0.0, %v5796
      %5798 = vmatmul.bf16.gmra.mxu0 %v5710
      %v5799 = vpop.f32.mrf.mxu0
      %v5800 = vadd.f32 0.0, %v5799
      %v5801 = vpop.f32.mrf.mxu0
      %v5802 = vadd.f32 0.0, %v5801
      %5803 = vdwg.mxu0
      %v5804 = vld [vmem:[%s8] sm:$0x1]
      %v5806 = vperm.slane %v5804, 0
      %v5808 = vmul.f32 %v5725, %v5806
      %v5809 = vmul.f32 %v5727, %v5806
      %v5810 = vmul.f32 %v5730, %v5806
      %v5811 = vmul.f32 %v5732, %v5806
      %v5812 = vmul.f32 %v5735, %v5806
      %v5813 = vmul.f32 %v5737, %v5806
      %v5814 = vmul.f32 %v5740, %v5806
      %v5815 = vmul.f32 %v5742, %v5806
      %v5816 = vmul.f32 %v5745, %v5806
      %v5817 = vmul.f32 %v5747, %v5806
      %v5818 = vmul.f32 %v5750, %v5806
      %v5819 = vmul.f32 %v5752, %v5806
      %v5820 = vmul.f32 %v5755, %v5806
      %v5821 = vmul.f32 %v5757, %v5806
      %v5822 = vmul.f32 %v5760, %v5806
      %v5823 = vmul.f32 %v5762, %v5806
      %v5824 = vmul.f32 %v5765, %v5806
      %v5825 = vmul.f32 %v5767, %v5806
      %v5826 = vmul.f32 %v5770, %v5806
      %v5827 = vmul.f32 %v5772, %v5806
      %v5828 = vmul.f32 %v5775, %v5806
      %v5829 = vmul.f32 %v5777, %v5806
      %v5830 = vmul.f32 %v5780, %v5806
      %v5831 = vmul.f32 %v5782, %v5806
      %v5832 = vmul.f32 %v5785, %v5806
      %v5833 = vmul.f32 %v5787, %v5806
      %v5834 = vmul.f32 %v5790, %v5806
      %v5835 = vmul.f32 %v5792, %v5806
      %v5836 = vmul.f32 %v5795, %v5806
      %v5837 = vmul.f32 %v5797, %v5806
      %v5838 = vmul.f32 %v5800, %v5806
      %v5839 = vmul.f32 %v5802, %v5806
      %v5840 = vld [vmem:[%s9] sm:$0x1]
      %v5842 = vperm.slane %v5840, 0
      %v5844 = vadd.f32 %v5808, %v5842
      %v5845 = vadd.f32 %v5809, %v5842
      %v5846 = vadd.f32 %v5810, %v5842
      %v5847 = vadd.f32 %v5811, %v5842
      %v5848 = vadd.f32 %v5812, %v5842
      %v5849 = vadd.f32 %v5813, %v5842
      %v5850 = vadd.f32 %v5814, %v5842
      %v5851 = vadd.f32 %v5815, %v5842
      %v5852 = vadd.f32 %v5816, %v5842
      %v5853 = vadd.f32 %v5817, %v5842
      %v5854 = vadd.f32 %v5818, %v5842
      %v5855 = vadd.f32 %v5819, %v5842
      %v5856 = vadd.f32 %v5820, %v5842
      %v5857 = vadd.f32 %v5821, %v5842
      %v5858 = vadd.f32 %v5822, %v5842
      %v5859 = vadd.f32 %v5823, %v5842
      %v5860 = vadd.f32 %v5824, %v5842
      %v5861 = vadd.f32 %v5825, %v5842
      %v5862 = vadd.f32 %v5826, %v5842
      %v5863 = vadd.f32 %v5827, %v5842
      %v5864 = vadd.f32 %v5828, %v5842
      %v5865 = vadd.f32 %v5829, %v5842
      %v5866 = vadd.f32 %v5830, %v5842
      %v5867 = vadd.f32 %v5831, %v5842
      %v5868 = vadd.f32 %v5832, %v5842
      %v5869 = vadd.f32 %v5833, %v5842
      %v5870 = vadd.f32 %v5834, %v5842
      %v5871 = vadd.f32 %v5835, %v5842
      %v5872 = vadd.f32 %v5836, %v5842
      %v5873 = vadd.f32 %v5837, %v5842
      %v5874 = vadd.f32 %v5838, %v5842
      %v5875 = vadd.f32 %v5839, %v5842
      %v5876 = vadd.f32 %v5614, %v5844
      %v5877 = vadd.f32 %v5615, %v5845
      %v5878 = vadd.f32 %v5616, %v5846
      %v5879 = vadd.f32 %v5617, %v5847
      %v5880 = vadd.f32 %v5618, %v5848
      %v5881 = vadd.f32 %v5619, %v5849
      %v5882 = vadd.f32 %v5620, %v5850
      %v5883 = vadd.f32 %v5621, %v5851
      %v5884 = vadd.f32 %v5622, %v5852
      %v5885 = vadd.f32 %v5623, %v5853
      %v5886 = vadd.f32 %v5624, %v5854
      %v5887 = vadd.f32 %v5625, %v5855
      %v5888 = vadd.f32 %v5626, %v5856
      %v5889 = vadd.f32 %v5627, %v5857
      %v5890 = vadd.f32 %v5628, %v5858
      %v5891 = vadd.f32 %v5629, %v5859
      %v5892 = vadd.f32 %v5630, %v5860
      %v5893 = vadd.f32 %v5631, %v5861
      %v5894 = vadd.f32 %v5632, %v5862
      %v5895 = vadd.f32 %v5633, %v5863
      %v5896 = vadd.f32 %v5634, %v5864
      %v5897 = vadd.f32 %v5635, %v5865
      %v5898 = vadd.f32 %v5636, %v5866
      %v5899 = vadd.f32 %v5637, %v5867
      %v5900 = vadd.f32 %v5638, %v5868
      %v5901 = vadd.f32 %v5639, %v5869
      %v5902 = vadd.f32 %v5640, %v5870
      %v5903 = vadd.f32 %v5641, %v5871
      %v5904 = vadd.f32 %v5642, %v5872
      %v5905 = vadd.f32 %v5643, %v5873
      %v5906 = vadd.f32 %v5644, %v5874
      %v5907 = vadd.f32 %v5645, %v5875
      %v5908 = vmax.f32 %v5876, 0.0
      %v5909 = vmax.f32 %v5877, 0.0
      %v5910 = vmax.f32 %v5878, 0.0
      %v5911 = vmax.f32 %v5879, 0.0
      %v5912 = vmax.f32 %v5880, 0.0
      %v5913 = vmax.f32 %v5881, 0.0
      %v5914 = vmax.f32 %v5882, 0.0
      %v5915 = vmax.f32 %v5883, 0.0
      %v5916 = vmax.f32 %v5884, 0.0
      %v5917 = vmax.f32 %v5885, 0.0
      %v5918 = vmax.f32 %v5886, 0.0
      %v5919 = vmax.f32 %v5887, 0.0
      %v5920 = vmax.f32 %v5888, 0.0
      %v5921 = vmax.f32 %v5889, 0.0
      %v5922 = vmax.f32 %v5890, 0.0
      %v5923 = vmax.f32 %v5891, 0.0
      %v5924 = vmax.f32 %v5892, 0.0
      %v5925 = vmax.f32 %v5893, 0.0
      %v5926 = vmax.f32 %v5894, 0.0
      %v5927 = vmax.f32 %v5895, 0.0
      %v5928 = vmax.f32 %v5896, 0.0
      %v5929 = vmax.f32 %v5897, 0.0
      %v5930 = vmax.f32 %v5898, 0.0
      %v5931 = vmax.f32 %v5899, 0.0
      %v5932 = vmax.f32 %v5900, 0.0
      %v5933 = vmax.f32 %v5901, 0.0
      %v5934 = vmax.f32 %v5902, 0.0
      %v5935 = vmax.f32 %v5903, 0.0
      %v5936 = vmax.f32 %v5904, 0.0
      %v5937 = vmax.f32 %v5905, 0.0
      %v5938 = vmax.f32 %v5906, 0.0
      %v5939 = vmax.f32 %v5907, 0.0
      %vm5940 = vcmask 64512
      %5941 = vst.msk [vmem:[%s359] sm:$0xff] %vm5940, %v5908
      %5942 = vst.msk [vmem:[%s359 + $0x8] sm:$0xff] %vm5940, %v5909
      %5943 = vst.msk [vmem:[%s359 + $0x10] sm:$0xff] %vm5940, %v5910
      %5944 = vst.msk [vmem:[%s359 + $0x18] sm:$0xff] %vm5940, %v5911
      %5945 = vst.msk [vmem:[%s359 + $0x20] sm:$0xff] %vm5940, %v5912
      %5946 = vst.msk [vmem:[%s359 + $0x28] sm:$0xff] %vm5940, %v5913
      %5947 = vst.msk [vmem:[%s359 + $0x30] sm:$0xff] %vm5940, %v5914
      %5948 = vst.msk [vmem:[%s359 + $0x38] sm:$0xff] %vm5940, %v5915
      %5949 = vst.msk [vmem:[%s359 + $0x40] sm:$0xff] %vm5940, %v5916
      %5950 = vst.msk [vmem:[%s359 + $0x48] sm:$0xff] %vm5940, %v5917
      %5951 = vst.msk [vmem:[%s359 + $0x50] sm:$0xff] %vm5940, %v5918
      %5952 = vst.msk [vmem:[%s359 + $0x58] sm:$0xff] %vm5940, %v5919
      %5953 = vst.msk [vmem:[%s359 + $0x60] sm:$0xff] %vm5940, %v5920
      %5954 = vst.msk [vmem:[%s359 + $0x68] sm:$0xff] %vm5940, %v5921
      %5955 = vst.msk [vmem:[%s359 + $0x70] sm:$0xff] %vm5940, %v5922
      %5956 = vst.msk [vmem:[%s359 + $0x78] sm:$0xff] %vm5940, %v5923
      %5957 = vst.msk [vmem:[%s359 + $0x80] sm:$0xff] %vm5940, %v5924
      %5958 = vst.msk [vmem:[%s359 + $0x88] sm:$0xff] %vm5940, %v5925
      %5959 = vst.msk [vmem:[%s359 + $0x90] sm:$0xff] %vm5940, %v5926
      %5960 = vst.msk [vmem:[%s359 + $0x98] sm:$0xff] %vm5940, %v5927
      %5961 = vst.msk [vmem:[%s359 + $0xa0] sm:$0xff] %vm5940, %v5928
      %5962 = vst.msk [vmem:[%s359 + $0xa8] sm:$0xff] %vm5940, %v5929
      %5963 = vst.msk [vmem:[%s359 + $0xb0] sm:$0xff] %vm5940, %v5930
      %5964 = vst.msk [vmem:[%s359 + $0xb8] sm:$0xff] %vm5940, %v5931
      %5965 = vst.msk [vmem:[%s359 + $0xc0] sm:$0xff] %vm5940, %v5932
      %5966 = vst.msk [vmem:[%s359 + $0xc8] sm:$0xff] %vm5940, %v5933
      %5967 = vst.msk [vmem:[%s359 + $0xd0] sm:$0xff] %vm5940, %v5934
      %5968 = vst.msk [vmem:[%s359 + $0xd8] sm:$0xff] %vm5940, %v5935
      %5969 = vst.msk [vmem:[%s359 + $0xe0] sm:$0xff] %vm5940, %v5936
      %5970 = vst.msk [vmem:[%s359 + $0xe8] sm:$0xff] %vm5940, %v5937
      %5971 = vst.msk [vmem:[%s359 + $0xf0] sm:$0xff] %vm5940, %v5938
      %5972 = vst.msk [vmem:[%s359 + $0xf8] sm:$0xff] %vm5940, %v5939
      %p5973 = scmp.lt.s32.totalorder %s21, 1
      %s5974 = scalar_select %p5973, %s21, 1
      %s5975 = smul.addr %s5974, 32
      %s5976 = smul.addr %s5975, 8
      %s5977 = scalar_lea.vmem %s10, %s5976
      // Predicated region
      $region61: #{tpu_custom_call.1} parent=59 // pred_check
        %p5978 = pneg %p254
      $region62: #{tpu_custom_call.1} parent=59 // pred_check_branch
        %5980 = sbr.rel (%p5978) target = $region64
      $region63: #{tpu_custom_call.1} parent=59 // pred_region
        _
      $region64: #{tpu_custom_call.1} parent=59 // pred_fallthru
        _
    $region60: #{tpu_custom_call.1} parent=5 // pred_fallthru
      _
    %p5981 = scmp.le.s32.totalorder 2, %s16
    // Predicated region
    $region65: #{tpu_custom_call.1} parent=5 // pred_check
      %p5982 = pneg %p5981
    $region66: #{tpu_custom_call.1} parent=5 // pred_check_branch
      %5984 = sbr.rel (%p5982) target = $region68
    $region67: #{tpu_custom_call.1} parent=5 // pred_region
      %s5985 = ssub.s32 %s16, 2
      // Predicated region
      $region69: #{tpu_custom_call.1} parent=67 // pred_check
        %p5986 = pneg %p260
      $region70: #{tpu_custom_call.1} parent=67 // pred_check_branch
        %5988 = sbr.rel (%p5986) target = $region72
      $region71: #{tpu_custom_call.1} parent=67 // pred_region
        %p5989 = scmp.lt.s32.totalorder %s22, 1
        %s5990 = scalar_select %p5989, %s22, 1
        %s5991 = smul.addr %s5990, 32
        %s5992 = smul.addr %s5991, 8
        %s5993 = scalar_lea.vmem %s10, %s5992
      $region72: #{tpu_custom_call.1} parent=67 // pred_fallthru
        _
    $region68: #{tpu_custom_call.1} parent=5 // pred_fallthru
      _
  $region6: #{tpu_custom_call.1} parent=0 // loop_footer
    %s20 = sadd.s32 1, %s16
  $region7: #{tpu_custom_call.1} parent=0 // loop_footer_branch
    %15 = sbr.rel target = $region3
  $region8: #{tpu_custom_call.1} parent=0 // loop_exit
    _

</llo_original>
